<compile_context>
chip_gen: v5e
topology: v5e:2x2
jax: 0.10.0
libtpu: 0.0.40
codegen_flags: <defaults>
</compile_context>

<pallas_src>
import functools

import jax
import jax.numpy as jnp
from jax import lax
from jax.experimental import pallas as pl
from jax.experimental.pallas import tpu as pltpu

EPS = 1e-5


# --------------------------- hardware-aware sizing ---------------------------

def _vmem_capacity_bytes():
    try:
        return int(getattr(pltpu.get_tpu_info(), "vmem_capacity_bytes", 64 << 20))
    except Exception:
        return 64 << 20          # conservative fallback (v7x-sized)


def _per_row_bytes(W, Cin, Cmid, Cout):
    # Conservative per-H-row working-set bound over the worst stage
    # (double-buffered I/O blocks, f32 accumulators, rowc staging).
    return W * (6 * Cin + 30 * Cmid + 26 * Cout)


def _choose_tile_rows(H, W, Cin, Cmid, Cout):
    """Largest H-divisor tile whose per-step working set fits ~35% of VMEM."""
    budget = int(0.35 * _vmem_capacity_bytes())
    per_row = _per_row_bytes(W, Cin, Cmid, Cout)
    th = 1
    for d in range(1, H + 1):
        if H % d == 0 and d * per_row <= budget:
            th = d
    return th


def _vmem_limit_bytes(th, W, Cin, Cmid, Cout):
    cap = _vmem_capacity_bytes()
    need = (2 * th * _per_row_bytes(W, Cin, Cmid, Cout)
            + 2 * (Cin * Cmid + 9 * Cmid * Cmid + Cmid * Cout)
            + (1 << 20))
    return int(min(max(need, 16 << 20), int(0.75 * cap)))


# --------------------------------- kernels -----------------------------------

def _conv1x1_stats_kernel(*refs, apply_bn_relu):
    """1x1 conv (matmul) on a row tile + per-image partial BN stats.

    If apply_bn_relu, first applies relu(x*scale + shift) (previous layer's
    fused BN + ReLU) to the input tile.
    refs (apply_bn_relu=False): x, w, h_out, sum_out, ssq_out
    refs (apply_bn_relu=True) : x, scale, shift, w, h_out, sum_out, ssq_out
    """
    if apply_bn_relu:
        x_ref, s_ref, t_ref, w_ref, h_ref, sum_ref, ssq_ref = refs
    else:
        x_ref, w_ref, h_ref, sum_ref, ssq_ref = refs
    i = pl.program_id(1)
    th, W, Cin = x_ref.shape
    C = w_ref.shape[1]

    xv = x_ref[...]
    if apply_bn_relu:
        xv = jnp.maximum(xv.astype(jnp.float32) * s_ref[...] + t_ref[...], 0.0)
    xb = xv.astype(jnp.bfloat16).reshape(th * W, Cin)

    h = jnp.dot(xb, w_ref[...], preferred_element_type=jnp.float32)   # (th*W, C)

    @pl.when(i == 0)
    def _():
        sum_ref[...] = jnp.zeros_like(sum_ref)
        ssq_ref[...] = jnp.zeros_like(ssq_ref)

    sum_ref[...] = sum_ref[...] + jnp.sum(h, axis=0).reshape(1, 1, C)
    ssq_ref[...] = ssq_ref[...] + jnp.sum(h * h, axis=0).reshape(1, 1, C)

    h_ref[...] = h.reshape(th, W, C).astype(h_ref.dtype)


def _conv3x3_stats_kernel(c_ref, top_ref, bot_ref, s_ref, t_ref, w_ref,
                          h_ref, sum_ref, ssq_ref):
    """BN1+ReLU -> 3x3 conv (stride 1, pad 1) on an H-tile + partial BN2 stats.

    c_ref   : (th, W, C)   bf16  pre-BN conv1 rows of this H-tile
    top_ref : (1, W, C)    bf16  row above the tile (clamped; masked at image top)
    bot_ref : (1, W, C)    bf16  row below the tile (clamped; masked at bottom)
    s_ref/t_ref : (1, C)   f32   fused BN1 scale / shift
    w_ref   : (3, 3*C, C)  bf16  per-kh weight slabs, rows ordered kw*C + cin
    h_ref   : (th, W, C)   bf16  pre-BN conv2 output rows
    sum_ref/ssq_ref : (1, 8, C) f32  per-image partial-stat accumulators
    """
    i = pl.program_id(1)
    th, W, C = c_ref.shape
    s = s_ref[...]
    t = t_ref[...]

    def bn_relu(v):
        return jnp.maximum(v.astype(jnp.float32) * s + t, 0.0)

    # Zero the halo rows at the image boundaries (conv2 pads each image).
    tmask = (i > 0).astype(jnp.float32)
    bmask = (i < pl.num_programs(1) - 1).astype(jnp.float32)
    a1 = jnp.concatenate(
        [bn_relu(top_ref[...]) * tmask,
         bn_relu(c_ref[...]),
         bn_relu(bot_ref[...]) * bmask],
        axis=0).astype(jnp.bfloat16)                              # (th+2, W, C)

    # rowc[h, w, kw*C + c] = a1[h, w + kw - 1, c]   (zero outside [0, W))
    zc = jnp.zeros((th + 2, 1, C), jnp.bfloat16)
    wm = jnp.concatenate([zc, a1[:, :W - 1, :]], axis=1)          # kw = 0
    wp = jnp.concatenate([a1[:, 1:, :], zc], axis=1)              # kw = 2
    rowc = jnp.concatenate([wm, a1, wp], axis=2)                  # (th+2, W, 3C)

    # Per-kh accumulation: 3 MXU matmuls with K = 3*C, f32 accumulation.
    acc = jnp.zeros((th * W, C), jnp.float32)
    for kh in range(3):
        lhs = rowc[kh:kh + th].reshape(th * W, 3 * C)             # major-axis slice
        acc = acc + jnp.dot(lhs, w_ref[kh], preferred_element_type=jnp.float32)

    @pl.when(i == 0)
    def _():
        sum_ref[...] = jnp.zeros_like(sum_ref)
        ssq_ref[...] = jnp.zeros_like(ssq_ref)

    sum_ref[...] = sum_ref[...] + jnp.sum(acc, axis=0).reshape(1, 1, C)
    ssq_ref[...] = ssq_ref[...] + jnp.sum(acc * acc, axis=0).reshape(1, 1, C)

    h_ref[...] = acc.reshape(th, W, C).astype(h_ref.dtype)


def _bn_add_relu_kernel(h_ref, x_ref, s_ref, t_ref, o_ref):
    """BN3 (fused scale/shift) + residual add + ReLU, all in f32."""
    h = h_ref[...].astype(jnp.float32) * s_ref[...] + t_ref[...]
    o_ref[...] = jnp.maximum(h + x_ref[...].astype(jnp.float32), 0.0
                             ).astype(o_ref.dtype)


# ----------------------------- stage wrappers ---------------------------------

def _stats_to_affine(sum_n8c, ssq_n8c, count, gamma, beta):
    """Partial per-image sums -> fused BN scale/shift (training-mode stats)."""
    s = jnp.sum(sum_n8c[:, 0, :], axis=0)
    q = jnp.sum(ssq_n8c[:, 0, :], axis=0)
    mean = s / count
    # NOTE: E[x^2]-E[x]^2 with f32 partial sums; clamp guards tiny negatives.
    var = jnp.maximum(q / count - mean * mean, 0.0)
    scale = gamma * lax.rsqrt(var + EPS)
    shift = beta - mean * scale
    return (scale.reshape(1, -1).astype(jnp.float32),
            shift.reshape(1, -1).astype(jnp.float32))


def _conv1x1_stats(x3, w, N, H, W, th, vmem_limit, scale=None, shift=None):
    NH = N * H
    nH = H // th
    Cin = x3.shape[-1]
    C = w.shape[-1]
    apply_bn = scale is not None

    row_in = pl.BlockSpec((th, W, Cin), lambda n, i: (n * nH + i, 0, 0))
    row_out = pl.BlockSpec((th, W, C), lambda n, i: (n * nH + i, 0, 0))
    const = lambda shape: pl.BlockSpec(shape, lambda n, i: (0,) * len(shape))
    stats = pl.BlockSpec((1, 8, C), lambda n, i: (n, 0, 0))

    in_specs = [row_in]
    args = [x3]
    if apply_bn:
        in_specs += [const((1, Cin)), const((1, Cin))]
        args += [scale, shift]
    in_specs += [const((Cin, C))]
    args += [w]

    kernel = functools.partial(_conv1x1_stats_kernel, apply_bn_relu=apply_bn)
    h, ssum, sssq = pl.pallas_call(
        kernel,
        grid=(N, nH),
        in_specs=in_specs,
        out_specs=[row_out, stats, stats],
        out_shape=(jax.ShapeDtypeStruct((NH, W, C), jnp.bfloat16),
                   jax.ShapeDtypeStruct((N, 8, C), jnp.float32),
                   jax.ShapeDtypeStruct((N, 8, C), jnp.float32)),
        compiler_params=pltpu.CompilerParams(
            dimension_semantics=("parallel", "arbitrary"),
            vmem_limit_bytes=vmem_limit),
    )(*args)
    return h, ssum, sssq


def _conv3x3_stats(h1, scale, shift, w2, N, H, W, th, vmem_limit):
    NH = N * H
    nH = H // th
    C = h1.shape[-1]

    center = pl.BlockSpec((th, W, C), lambda n, i: (n * nH + i, 0, 0))
    # Halo rows via clamped 1-row blocks (block size 1 => block idx == row idx).
    top = pl.BlockSpec((1, W, C),
                       lambda n, i: (jnp.maximum(n * H + i * th - 1, 0), 0, 0))
    bot = pl.BlockSpec((1, W, C),
                       lambda n, i: (jnp.minimum(n * H + (i + 1) * th, NH - 1), 0, 0))
    const = lambda shape: pl.BlockSpec(shape, lambda n, i: (0,) * len(shape))
    stats = pl.BlockSpec((1, 8, C), lambda n, i: (n, 0, 0))

    h2, ssum, sssq = pl.pallas_call(
        _conv3x3_stats_kernel,
        grid=(N, nH),
        in_specs=[center, top, bot, const((1, C)), const((1, C)),
                  const((3, 3 * C, C))],
        out_specs=[center, stats, stats],
        out_shape=(jax.ShapeDtypeStruct((NH, W, C), jnp.bfloat16),
                   jax.ShapeDtypeStruct((N, 8, C), jnp.float32),
                   jax.ShapeDtypeStruct((N, 8, C), jnp.float32)),
        compiler_params=pltpu.CompilerParams(
            dimension_semantics=("parallel", "arbitrary"),
            vmem_limit_bytes=vmem_limit),
    )(h1, h1, h1, scale, shift, w2)
    return h2, ssum, sssq


def _bn_add_relu(h3, x3, scale, shift, N, H, W, th, out_dtype, vmem_limit):
    NH = N * H
    nH = H // th
    C = h3.shape[-1]
    rows = pl.BlockSpec((th, W, C), lambda n, i: (n * nH + i, 0, 0))
    const = lambda shape: pl.BlockSpec(shape, lambda n, i: (0, 0))
    return pl.pallas_call(
        _bn_add_relu_kernel,
        grid=(N, nH),
        in_specs=[rows, rows, const((1, C)), const((1, C))],
        out_specs=rows,
        out_shape=jax.ShapeDtypeStruct((NH, W, C), out_dtype),
        compiler_params=pltpu.CompilerParams(
            dimension_semantics=("parallel", "parallel"),
            vmem_limit_bytes=vmem_limit),
    )(h3, x3, scale, shift)


# ------------------------------ public entry ----------------------------------

def bottleneck_pallas_nhwc(x_nhwc, params, out_dtype=None):
    """Primary entry point: x_nhwc (N, H, W, Cin), returns NHWC output."""
    w1, g1, b1, w2, g2, b2, w3, g3, b3 = params
    N, H, W, Cin = x_nhwc.shape
    Cmid = w1.shape[-1]
    Cout = w3.shape[-1]
    assert Cin == Cout, "residual add requires inpdepth == 4*outdepth"
    out_dtype = out_dtype or x_nhwc.dtype

    th = _choose_tile_rows(H, W, Cin, Cmid, Cout)
    vmem_limit = _vmem_limit_bytes(th, W, Cin, Cmid, Cout)
    count = jnp.float32(N * H * W)

    # bf16 activations in HBM (x feeds both conv1 and the residual add).
    x3 = x_nhwc.reshape(N * H, W, Cin).astype(jnp.bfloat16)
    w1b = w1.astype(jnp.bfloat16)                          # (Cin, Cmid)
    w2b = w2.reshape(3, 3 * Cmid, Cmid).astype(jnp.bfloat16)  # rows = kw*Cmid+cin
    w3b = w3.astype(jnp.bfloat16)                          # (Cmid, Cout)
    g1f, b1f = g1.reshape(-1).astype(jnp.float32), b1.reshape(-1).astype(jnp.float32)
    g2f, b2f = g2.reshape(-1).astype(jnp.float32), b2.reshape(-1).astype(jnp.float32)
    g3f, b3f = g3.reshape(-1).astype(jnp.float32), b3.reshape(-1).astype(jnp.float32)

    # Stage 1: conv1 (1x1) + BN1 batch stats.
    h1, s1, q1 = _conv1x1_stats(x3, w1b, N, H, W, th, vmem_limit)
    sc1, sh1 = _stats_to_affine(s1, q1, count, g1f, b1f)

    # Stage 2: BN1+ReLU -> conv2 (3x3, pad 1) + BN2 batch stats.
    h2, s2, q2 = _conv3x3_stats(h1, sc1, sh1, w2b, N, H, W, th, vmem_limit)
    sc2, sh2 = _stats_to_affine(s2, q2, count, g2f, b2f)

    # Stage 3: BN2+ReLU -> conv3 (1x1, 4x expand) + BN3 batch stats.
    h3, s3, q3 = _conv1x1_stats(h2, w3b, N, H, W, th, vmem_limit,
                                scale=sc2, shift=sh2)
    sc3, sh3 = _stats_to_affine(s3, q3, count, g3f, b3f)

    # Stage 4: BN3 + residual add + ReLU.
    out = _bn_add_relu(h3, x3, sc3, sh3, N, H, W, th, out_dtype, vmem_limit)
    return out.reshape(N, H, W, Cout)


def bottleneck_pallas(x_nchw, params, out_dtype=None):
    """NCHW compatibility shim matching the PyTorch interface (prefer NHWC)."""
    x = jnp.transpose(x_nchw, (0, 2, 3, 1))
    out = bottleneck_pallas_nhwc(x, params, out_dtype=out_dtype)
    return jnp.transpose(out, (0, 3, 1, 2))


# ---------------------------- pure-JAX reference ------------------------------

def _bn_ref(y_nhwc, gamma, beta):
    m = jnp.mean(y_nhwc, axis=(0, 1, 2), keepdims=True)
    v = jnp.mean((y_nhwc - m) ** 2, axis=(0, 1, 2), keepdims=True)
    return (y_nhwc - m) * lax.rsqrt(v + EPS) * gamma.reshape(1, 1, 1, -1) \
        + beta.reshape(1, 1, 1, -1)


def bottleneck_reference_nhwc(x_nhwc, params):
    w1, g1, b1, w2, g2, b2, w3, g3, b3 = params
    Cmid = w1.shape[1]
    dn = ("NHWC", "HWIO", "NHWC")
    h = lax.conv_general_dilated(x_nhwc, w1.reshape(1, 1, *w1.shape), (1, 1),
                                 "VALID", dimension_numbers=dn)
    h = jnp.maximum(_bn_ref(h, g1, b1), 0.0)
    h = lax.conv_general_dilated(h, w2.reshape(3, 3, Cmid, Cmid), (1, 1), "SAME",
                                 dimension_numbers=dn)
    h = jnp.maximum(_bn_ref(h, g2, b2), 0.0)
    h = lax.conv_general_dilated(h, w3.reshape(1, 1, *w3.shape), (1, 1), "VALID",
                                 dimension_numbers=dn)
    h = _bn_ref(h, g3, b3)
    return jnp.maximum(h + x_nhwc, 0.0)


if __name__ == "__main__":
    # Small shapes consistent with the module: Bottleneck(inpdepth=32, outdepth=8).
    N, H, W = 2, 8, 8
    Cmid = 8                      # outdepth
    Cout = 4 * Cmid               # expansion = 4
    Cin = Cout                    # == 32, so the residual adds (downsample=None)

    key = jax.random.PRNGKey(0)
    ks = jax.random.split(key, 10)
    x_nhwc = jax.random.normal(ks[0], (N, H, W, Cin), jnp.float32)

    # (To import PyTorch weights: conv (Co,Ci,kh,kw) -> transpose (kh,kw,Ci,Co)
    #  -> reshape (9, Ci, Co) for w2; (Co,Ci,1,1) -> (Ci, Co) for w1/w3.)
    w1 = 0.1 * jax.random.normal(ks[1], (Cin, Cmid), jnp.float32)
    w2 = 0.1 * jax.random.normal(ks[2], (9, Cmid, Cmid), jnp.float32)
    w3 = 0.1 * jax.random.normal(ks[3], (Cmid, Cout), jnp.float32)
    g1 = 1.0 + 0.1 * jax.random.normal(ks[4], (1, Cmid), jnp.float32)
    b1 = 0.1 * jax.random.normal(ks[5], (1, Cmid), jnp.float32)
    g2 = 1.0 + 0.1 * jax.random.normal(ks[6], (1, Cmid), jnp.float32)
    b2 = 0.1 * jax.random.normal(ks[7], (1, Cmid), jnp.float32)
    g3 = 1.0 + 0.1 * jax.random.normal(ks[8], (1, Cout), jnp.float32)
    b3 = 0.1 * jax.random.normal(ks[9], (1, Cout), jnp.float32)
    params = (w1, g1, b1, w2, g2, b2, w3, g3, b3)

    # NHWC-native path (primary).
    fwd = jax.jit(bottleneck_pallas_nhwc)
    out = jax.block_until_ready(fwd(x_nhwc, params))
    ref = jax.block_until_ready(bottleneck_reference_nhwc(x_nhwc, params))
    assert out.shape == (N, H, W, Cout), out.shape
    # bf16 activations / MXU operands (f32 accumulation & BN math) vs. the
    # all-f32 reference -> a few parts-per-thousand relative error.
    assert jnp.allclose(out, ref, atol=5e-2, rtol=5e-2), \
        f"max abs err {jnp.max(jnp.abs(out - ref))}"

    # NCHW compatibility shim (PyTorch layout).
    x_nchw = jnp.transpose(x_nhwc, (0, 3, 1, 2))
    out_nchw = jax.block_until_ready(jax.jit(bottleneck_pallas)(x_nchw, params))
    ref_nchw = jnp.transpose(ref, (0, 3, 1, 2))
    assert out_nchw.shape == (N, Cout, H, W), out_nchw.shape
    assert jnp.allclose(out_nchw, ref_nchw, atol=5e-2, rtol=5e-2), \
        f"max abs err {jnp.max(jnp.abs(out_nchw - ref_nchw))}"

    print("KERNEL_OK")
</pallas_src>

<mosaic_0001>
module attributes {stable_mosaic.version = 11 : i64} {
  func.func @_conv1x1_stats_kernel(%arg0: i32, %arg1: i32, %arg2: memref<8x8x32xbf16, #tpu.memory_space<vmem>>, %arg3: memref<32x8xbf16, #tpu.memory_space<vmem>>, %arg4: memref<8x8x8xbf16, #tpu.memory_space<vmem>>, %arg5: memref<1x8x8xf32, #tpu.memory_space<vmem>>, %arg6: memref<1x8x8xf32, #tpu.memory_space<vmem>>) attributes {dimension_semantics = [#tpu.dimension_semantics<parallel>, #tpu.dimension_semantics<arbitrary>], iteration_bounds = array<i64: 2, 1>, scalar_prefetch = 0 : i64, scratch_operands = 0 : i64, tpu.core_type = #tpu.core_type<tc>, window_params = [{transform_indices = @transform_0, window_bounds = array<i64: 8, 8, 32>}, {pipeline_mode = #tpu.pipeline_mode<synchronous>, transform_indices = @transform_1, window_bounds = array<i64: 32, 8>}, {transform_indices = @transform_2, window_bounds = array<i64: 8, 8, 8>}, {transform_indices = @transform_3, window_bounds = array<i64: 1, 8, 8>}, {transform_indices = @transform_4, window_bounds = array<i64: 1, 8, 8>}]} {
    %c0 = arith.constant 0 : index
    %c0_0 = arith.constant 0 : index
    %c0_1 = arith.constant 0 : index
    %0 = vector.load %arg2[%c0, %c0_0, %c0_1] : memref<8x8x32xbf16, #tpu.memory_space<vmem>>, vector<8x8x32xbf16>
    %1 = vector.shape_cast %0 : vector<8x8x32xbf16> to vector<64x32xbf16>
    %c0_2 = arith.constant 0 : index
    %c0_3 = arith.constant 0 : index
    %2 = vector.load %arg3[%c0_2, %c0_3] : memref<32x8xbf16, #tpu.memory_space<vmem>>, vector<32x8xbf16>
    %cst = arith.constant dense<0.000000e+00> : vector<64x8xf32>
    %3 = tpu.matmul %1, %2, %cst {dimension_numbers = #tpu.dot_dimension_numbers<[1], [0], [0], [1], [0, 0, 1, 1], [], []>} : vector<64x32xbf16>, vector<32x8xbf16>, vector<64x8xf32> -> vector<64x8xf32>
    %c0_i32 = arith.constant 0 : i32
    %4 = arith.cmpi eq, %arg1, %c0_i32 : i32
    %5 = arith.extui %4 : i1 to i32
    %c0_i32_4 = arith.constant 0 : i32
    %6 = arith.cmpi ne, %5, %c0_i32_4 : i32
    scf.if %6 {
      %cst_22 = arith.constant 0.000000e+00 : f32
      %23 = vector.broadcast %cst_22 : f32 to vector<1x8x8xf32>
      %c0_23 = arith.constant 0 : index
      %c0_24 = arith.constant 0 : index
      %c0_25 = arith.constant 0 : index
      %24 = vector.load %arg5[%c0_23, %c0_24, %c0_25] : memref<1x8x8xf32, #tpu.memory_space<vmem>>, vector<1x8x8xf32>
      tpu.vector_store %arg5[%c0_23, %c0_24, %c0_25], %23 {strides = array<i32>} : memref<1x8x8xf32, #tpu.memory_space<vmem>>, vector<1x8x8xf32>,
      %cst_26 = arith.constant 0.000000e+00 : f32
      %25 = vector.broadcast %cst_26 : f32 to vector<1x8x8xf32>
      %c0_27 = arith.constant 0 : index
      %c0_28 = arith.constant 0 : index
      %c0_29 = arith.constant 0 : index
      %26 = vector.load %arg6[%c0_27, %c0_28, %c0_29] : memref<1x8x8xf32, #tpu.memory_space<vmem>>, vector<1x8x8xf32>
      tpu.vector_store %arg6[%c0_27, %c0_28, %c0_29], %25 {strides = array<i32>} : memref<1x8x8xf32, #tpu.memory_space<vmem>>, vector<1x8x8xf32>,
    } else {
    }
    %c0_5 = arith.constant 0 : index
    %c0_6 = arith.constant 0 : index
    %c0_7 = arith.constant 0 : index
    %7 = vector.load %arg5[%c0_5, %c0_6, %c0_7] : memref<1x8x8xf32, #tpu.memory_space<vmem>>, vector<1x8x8xf32>
    %cst_8 = arith.constant dense<0.000000e+00> : vector<8xf32>
    %8 = vector.multi_reduction <add>, %3, %cst_8 [0] : vector<64x8xf32> to vector<8xf32>
    %9 = vector.shape_cast %8 : vector<8xf32> to vector<1x1x8xf32>
    %10 = vector.broadcast %9 : vector<1x1x8xf32> to vector<1x8x8xf32>
    %11 = arith.addf %7, %10 : vector<1x8x8xf32>
    %c0_9 = arith.constant 0 : index
    %c0_10 = arith.constant 0 : index
    %c0_11 = arith.constant 0 : index
    %12 = vector.load %arg5[%c0_9, %c0_10, %c0_11] : memref<1x8x8xf32, #tpu.memory_space<vmem>>, vector<1x8x8xf32>
    tpu.vector_store %arg5[%c0_9, %c0_10, %c0_11], %11 {strides = array<i32>} : memref<1x8x8xf32, #tpu.memory_space<vmem>>, vector<1x8x8xf32>,
    %c0_12 = arith.constant 0 : index
    %c0_13 = arith.constant 0 : index
    %c0_14 = arith.constant 0 : index
    %13 = vector.load %arg6[%c0_12, %c0_13, %c0_14] : memref<1x8x8xf32, #tpu.memory_space<vmem>>, vector<1x8x8xf32>
    %14 = arith.mulf %3, %3 : vector<64x8xf32>
    %cst_15 = arith.constant dense<0.000000e+00> : vector<8xf32>
    %15 = vector.multi_reduction <add>, %14, %cst_15 [0] : vector<64x8xf32> to vector<8xf32>
    %16 = vector.shape_cast %15 : vector<8xf32> to vector<1x1x8xf32>
    %17 = vector.broadcast %16 : vector<1x1x8xf32> to vector<1x8x8xf32>
    %18 = arith.addf %13, %17 : vector<1x8x8xf32>
    %c0_16 = arith.constant 0 : index
    %c0_17 = arith.constant 0 : index
    %c0_18 = arith.constant 0 : index
    %19 = vector.load %arg6[%c0_16, %c0_17, %c0_18] : memref<1x8x8xf32, #tpu.memory_space<vmem>>, vector<1x8x8xf32>
    tpu.vector_store %arg6[%c0_16, %c0_17, %c0_18], %18 {strides = array<i32>} : memref<1x8x8xf32, #tpu.memory_space<vmem>>, vector<1x8x8xf32>,
    %20 = vector.shape_cast %3 : vector<64x8xf32> to vector<8x8x8xf32>
    %21 = arith.truncf %20 : vector<8x8x8xf32> to vector<8x8x8xbf16>
    %c0_19 = arith.constant 0 : index
    %c0_20 = arith.constant 0 : index
    %c0_21 = arith.constant 0 : index
    %22 = vector.load %arg4[%c0_19, %c0_20, %c0_21] : memref<8x8x8xbf16, #tpu.memory_space<vmem>>, vector<8x8x8xbf16>
    tpu.vector_store %arg4[%c0_19, %c0_20, %c0_21], %21 {strides = array<i32>} : memref<8x8x8xbf16, #tpu.memory_space<vmem>>, vector<8x8x8xbf16>,
    return
  }
  func.func @transform_0(%arg0: i32, %arg1: i32) -> (i32, i32, i32) {
    %c1_i32 = arith.constant 1 : i32
    %0 = arith.muli %arg0, %c1_i32 : i32
    %1 = arith.addi %0, %arg1 : i32
    %c0_i32 = arith.constant 0 : i32
    %c0_i32_0 = arith.constant 0 : i32
    %c0_i32_1 = arith.constant 0 : i32
    return %1, %c0_i32, %c0_i32_0 : i32, i32, i32
  }
  func.func @transform_1(%arg0: i32, %arg1: i32) -> (i32, i32) {
    %c0_i32 = arith.constant 0 : i32
    %c0_i32_0 = arith.constant 0 : i32
    %c0_i32_1 = arith.constant 0 : i32
    return %c0_i32, %c0_i32_0 : i32, i32
  }
  func.func @transform_2(%arg0: i32, %arg1: i32) -> (i32, i32, i32) {
    %c1_i32 = arith.constant 1 : i32
    %0 = arith.muli %arg0, %c1_i32 : i32
    %1 = arith.addi %0, %arg1 : i32
    %c0_i32 = arith.constant 0 : i32
    %c0_i32_0 = arith.constant 0 : i32
    %c0_i32_1 = arith.constant 0 : i32
    return %1, %c0_i32, %c0_i32_0 : i32, i32, i32
  }
  func.func @transform_3(%arg0: i32, %arg1: i32) -> (i32, i32, i32) {
    %c0_i32 = arith.constant 0 : i32
    %c0_i32_0 = arith.constant 0 : i32
    %c0_i32_1 = arith.constant 0 : i32
    return %arg0, %c0_i32, %c0_i32_0 : i32, i32, i32
  }
  func.func @transform_4(%arg0: i32, %arg1: i32) -> (i32, i32, i32) {
    %c0_i32 = arith.constant 0 : i32
    %c0_i32_0 = arith.constant 0 : i32
    %c0_i32_1 = arith.constant 0 : i32
    return %arg0, %c0_i32, %c0_i32_0 : i32, i32, i32
  }
}

module attributes {stable_mosaic.version = 11 : i64} {
  func.func @_conv1x1_stats_kernel(%arg0: i32, %arg1: i32, %arg2: memref<8x8x8xbf16, #tpu.memory_space<vmem>>, %arg3: memref<1x8xf32, #tpu.memory_space<vmem>>, %arg4: memref<1x8xf32, #tpu.memory_space<vmem>>, %arg5: memref<8x32xbf16, #tpu.memory_space<vmem>>, %arg6: memref<8x8x32xbf16, #tpu.memory_space<vmem>>, %arg7: memref<1x8x32xf32, #tpu.memory_space<vmem>>, %arg8: memref<1x8x32xf32, #tpu.memory_space<vmem>>) attributes {dimension_semantics = [#tpu.dimension_semantics<parallel>, #tpu.dimension_semantics<arbitrary>], iteration_bounds = array<i64: 2, 1>, scalar_prefetch = 0 : i64, scratch_operands = 0 : i64, tpu.core_type = #tpu.core_type<tc>, window_params = [{transform_indices = @transform_0, window_bounds = array<i64: 8, 8, 8>}, {pipeline_mode = #tpu.pipeline_mode<synchronous>, transform_indices = @transform_1, window_bounds = array<i64: 1, 8>}, {pipeline_mode = #tpu.pipeline_mode<synchronous>, transform_indices = @transform_2, window_bounds = array<i64: 1, 8>}, {pipeline_mode = #tpu.pipeline_mode<synchronous>, transform_indices = @transform_3, window_bounds = array<i64: 8, 32>}, {transform_indices = @transform_4, window_bounds = array<i64: 8, 8, 32>}, {transform_indices = @transform_5, window_bounds = array<i64: 1, 8, 32>}, {transform_indices = @transform_6, window_bounds = array<i64: 1, 8, 32>}]} {
    %c0 = arith.constant 0 : index
    %c0_0 = arith.constant 0 : index
    %c0_1 = arith.constant 0 : index
    %0 = vector.load %arg2[%c0, %c0_0, %c0_1] : memref<8x8x8xbf16, #tpu.memory_space<vmem>>, vector<8x8x8xbf16>
    %1 = arith.extf %0 : vector<8x8x8xbf16> to vector<8x8x8xf32>
    %c0_2 = arith.constant 0 : index
    %c0_3 = arith.constant 0 : index
    %2 = vector.load %arg3[%c0_2, %c0_3] : memref<1x8xf32, #tpu.memory_space<vmem>>, vector<1x8xf32>
    %3 = vector.shape_cast %2 : vector<1x8xf32> to vector<1x1x8xf32>
    %4 = vector.broadcast %3 : vector<1x1x8xf32> to vector<8x8x8xf32>
    %5 = arith.mulf %1, %4 : vector<8x8x8xf32>
    %c0_4 = arith.constant 0 : index
    %c0_5 = arith.constant 0 : index
    %6 = vector.load %arg4[%c0_4, %c0_5] : memref<1x8xf32, #tpu.memory_space<vmem>>, vector<1x8xf32>
    %7 = vector.shape_cast %6 : vector<1x8xf32> to vector<1x1x8xf32>
    %8 = vector.broadcast %7 : vector<1x1x8xf32> to vector<8x8x8xf32>
    %9 = arith.addf %5, %8 : vector<8x8x8xf32>
    %cst = arith.constant 0.000000e+00 : f32
    %10 = vector.broadcast %cst : f32 to vector<8x8x8xf32>
    %11 = arith.maximumf %9, %10 : vector<8x8x8xf32>
    %12 = arith.truncf %11 : vector<8x8x8xf32> to vector<8x8x8xbf16>
    %13 = vector.shape_cast %12 : vector<8x8x8xbf16> to vector<64x8xbf16>
    %c0_6 = arith.constant 0 : index
    %c0_7 = arith.constant 0 : index
    %14 = vector.load %arg5[%c0_6, %c0_7] : memref<8x32xbf16, #tpu.memory_space<vmem>>, vector<8x32xbf16>
    %cst_8 = arith.constant dense<0.000000e+00> : vector<64x32xf32>
    %15 = tpu.matmul %13, %14, %cst_8 {dimension_numbers = #tpu.dot_dimension_numbers<[1], [0], [0], [1], [0, 0, 1, 1], [], []>} : vector<64x8xbf16>, vector<8x32xbf16>, vector<64x32xf32> -> vector<64x32xf32>
    %c0_i32 = arith.constant 0 : i32
    %16 = arith.cmpi eq, %arg1, %c0_i32 : i32
    %17 = arith.extui %16 : i1 to i32
    %c0_i32_9 = arith.constant 0 : i32
    %18 = arith.cmpi ne, %17, %c0_i32_9 : i32
    scf.if %18 {
      %cst_27 = arith.constant 0.000000e+00 : f32
      %35 = vector.broadcast %cst_27 : f32 to vector<1x8x32xf32>
      %c0_28 = arith.constant 0 : index
      %c0_29 = arith.constant 0 : index
      %c0_30 = arith.constant 0 : index
      %36 = vector.load %arg7[%c0_28, %c0_29, %c0_30] : memref<1x8x32xf32, #tpu.memory_space<vmem>>, vector<1x8x32xf32>
      tpu.vector_store %arg7[%c0_28, %c0_29, %c0_30], %35 {strides = array<i32>} : memref<1x8x32xf32, #tpu.memory_space<vmem>>, vector<1x8x32xf32>,
      %cst_31 = arith.constant 0.000000e+00 : f32
      %37 = vector.broadcast %cst_31 : f32 to vector<1x8x32xf32>
      %c0_32 = arith.constant 0 : index
      %c0_33 = arith.constant 0 : index
      %c0_34 = arith.constant 0 : index
      %38 = vector.load %arg8[%c0_32, %c0_33, %c0_34] : memref<1x8x32xf32, #tpu.memory_space<vmem>>, vector<1x8x32xf32>
      tpu.vector_store %arg8[%c0_32, %c0_33, %c0_34], %37 {strides = array<i32>} : memref<1x8x32xf32, #tpu.memory_space<vmem>>, vector<1x8x32xf32>,
    } else {
    }
    %c0_10 = arith.constant 0 : index
    %c0_11 = arith.constant 0 : index
    %c0_12 = arith.constant 0 : index
    %19 = vector.load %arg7[%c0_10, %c0_11, %c0_12] : memref<1x8x32xf32, #tpu.memory_space<vmem>>, vector<1x8x32xf32>
    %cst_13 = arith.constant dense<0.000000e+00> : vector<32xf32>
    %20 = vector.multi_reduction <add>, %15, %cst_13 [0] : vector<64x32xf32> to vector<32xf32>
    %21 = vector.shape_cast %20 : vector<32xf32> to vector<1x1x32xf32>
    %22 = vector.broadcast %21 : vector<1x1x32xf32> to vector<1x8x32xf32>
    %23 = arith.addf %19, %22 : vector<1x8x32xf32>
    %c0_14 = arith.constant 0 : index
    %c0_15 = arith.constant 0 : index
    %c0_16 = arith.constant 0 : index
    %24 = vector.load %arg7[%c0_14, %c0_15, %c0_16] : memref<1x8x32xf32, #tpu.memory_space<vmem>>, vector<1x8x32xf32>
    tpu.vector_store %arg7[%c0_14, %c0_15, %c0_16], %23 {strides = array<i32>} : memref<1x8x32xf32, #tpu.memory_space<vmem>>, vector<1x8x32xf32>,
    %c0_17 = arith.constant 0 : index
    %c0_18 = arith.constant 0 : index
    %c0_19 = arith.constant 0 : index
    %25 = vector.load %arg8[%c0_17, %c0_18, %c0_19] : memref<1x8x32xf32, #tpu.memory_space<vmem>>, vector<1x8x32xf32>
    %26 = arith.mulf %15, %15 : vector<64x32xf32>
    %cst_20 = arith.constant dense<0.000000e+00> : vector<32xf32>
    %27 = vector.multi_reduction <add>, %26, %cst_20 [0] : vector<64x32xf32> to vector<32xf32>
    %28 = vector.shape_cast %27 : vector<32xf32> to vector<1x1x32xf32>
    %29 = vector.broadcast %28 : vector<1x1x32xf32> to vector<1x8x32xf32>
    %30 = arith.addf %25, %29 : vector<1x8x32xf32>
    %c0_21 = arith.constant 0 : index
    %c0_22 = arith.constant 0 : index
    %c0_23 = arith.constant 0 : index
    %31 = vector.load %arg8[%c0_21, %c0_22, %c0_23] : memref<1x8x32xf32, #tpu.memory_space<vmem>>, vector<1x8x32xf32>
    tpu.vector_store %arg8[%c0_21, %c0_22, %c0_23], %30 {strides = array<i32>} : memref<1x8x32xf32, #tpu.memory_space<vmem>>, vector<1x8x32xf32>,
    %32 = vector.shape_cast %15 : vector<64x32xf32> to vector<8x8x32xf32>
    %33 = arith.truncf %32 : vector<8x8x32xf32> to vector<8x8x32xbf16>
    %c0_24 = arith.constant 0 : index
    %c0_25 = arith.constant 0 : index
    %c0_26 = arith.constant 0 : index
    %34 = vector.load %arg6[%c0_24, %c0_25, %c0_26] : memref<8x8x32xbf16, #tpu.memory_space<vmem>>, vector<8x8x32xbf16>
    tpu.vector_store %arg6[%c0_24, %c0_25, %c0_26], %33 {strides = array<i32>} : memref<8x8x32xbf16, #tpu.memory_space<vmem>>, vector<8x8x32xbf16>,
    return
  }
  func.func @transform_0(%arg0: i32, %arg1: i32) -> (i32, i32, i32) {
    %c1_i32 = arith.constant 1 : i32
    %0 = arith.muli %arg0, %c1_i32 : i32
    %1 = arith.addi %0, %arg1 : i32
    %c0_i32 = arith.constant 0 : i32
    %c0_i32_0 = arith.constant 0 : i32
    %c0_i32_1 = arith.constant 0 : i32
    return %1, %c0_i32, %c0_i32_0 : i32, i32, i32
  }
  func.func @transform_1(%arg0: i32, %arg1: i32) -> (i32, i32) {
    %c0_i32 = arith.constant 0 : i32
    %c0_i32_0 = arith.constant 0 : i32
    %c0_i32_1 = arith.constant 0 : i32
    return %c0_i32, %c0_i32_0 : i32, i32
  }
  func.func @transform_2(%arg0: i32, %arg1: i32) -> (i32, i32) {
    %c0_i32 = arith.constant 0 : i32
    %c0_i32_0 = arith.constant 0 : i32
    %c0_i32_1 = arith.constant 0 : i32
    return %c0_i32, %c0_i32_0 : i32, i32
  }
  func.func @transform_3(%arg0: i32, %arg1: i32) -> (i32, i32) {
    %c0_i32 = arith.constant 0 : i32
    %c0_i32_0 = arith.constant 0 : i32
    %c0_i32_1 = arith.constant 0 : i32
    return %c0_i32, %c0_i32_0 : i32, i32
  }
  func.func @transform_4(%arg0: i32, %arg1: i32) -> (i32, i32, i32) {
    %c1_i32 = arith.constant 1 : i32
    %0 = arith.muli %arg0, %c1_i32 : i32
    %1 = arith.addi %0, %arg1 : i32
    %c0_i32 = arith.constant 0 : i32
    %c0_i32_0 = arith.constant 0 : i32
    %c0_i32_1 = arith.constant 0 : i32
    return %1, %c0_i32, %c0_i32_0 : i32, i32, i32
  }
  func.func @transform_5(%arg0: i32, %arg1: i32) -> (i32, i32, i32) {
    %c0_i32 = arith.constant 0 : i32
    %c0_i32_0 = arith.constant 0 : i32
    %c0_i32_1 = arith.constant 0 : i32
    return %arg0, %c0_i32, %c0_i32_0 : i32, i32, i32
  }
  func.func @transform_6(%arg0: i32, %arg1: i32) -> (i32, i32, i32) {
    %c0_i32 = arith.constant 0 : i32
    %c0_i32_0 = arith.constant 0 : i32
    %c0_i32_1 = arith.constant 0 : i32
    return %arg0, %c0_i32, %c0_i32_0 : i32, i32, i32
  }
}

module attributes {stable_mosaic.version = 11 : i64} {
  func.func @_conv3x3_stats_kernel(%arg0: i32, %arg1: i32, %arg2: memref<8x8x8xbf16, #tpu.memory_space<vmem>>, %arg3: memref<1x8x8xbf16, #tpu.memory_space<vmem>>, %arg4: memref<1x8x8xbf16, #tpu.memory_space<vmem>>, %arg5: memref<1x8xf32, #tpu.memory_space<vmem>>, %arg6: memref<1x8xf32, #tpu.memory_space<vmem>>, %arg7: memref<3x24x8xbf16, #tpu.memory_space<vmem>>, %arg8: memref<8x8x8xbf16, #tpu.memory_space<vmem>>, %arg9: memref<1x8x8xf32, #tpu.memory_space<vmem>>, %arg10: memref<1x8x8xf32, #tpu.memory_space<vmem>>) attributes {dimension_semantics = [#tpu.dimension_semantics<parallel>, #tpu.dimension_semantics<arbitrary>], iteration_bounds = array<i64: 2, 1>, scalar_prefetch = 0 : i64, scratch_operands = 0 : i64, tpu.core_type = #tpu.core_type<tc>, window_params = [{transform_indices = @transform_0, window_bounds = array<i64: 8, 8, 8>}, {transform_indices = @transform_1, window_bounds = array<i64: 1, 8, 8>}, {transform_indices = @transform_2, window_bounds = array<i64: 1, 8, 8>}, {pipeline_mode = #tpu.pipeline_mode<synchronous>, transform_indices = @transform_3, window_bounds = array<i64: 1, 8>}, {pipeline_mode = #tpu.pipeline_mode<synchronous>, transform_indices = @transform_4, window_bounds = array<i64: 1, 8>}, {pipeline_mode = #tpu.pipeline_mode<synchronous>, transform_indices = @transform_5, window_bounds = array<i64: 3, 24, 8>}, {transform_indices = @transform_6, window_bounds = array<i64: 8, 8, 8>}, {transform_indices = @transform_7, window_bounds = array<i64: 1, 8, 8>}, {transform_indices = @transform_8, window_bounds = array<i64: 1, 8, 8>}]} {
    %c0 = arith.constant 0 : index
    %c0_0 = arith.constant 0 : index
    %0 = vector.load %arg5[%c0, %c0_0] : memref<1x8xf32, #tpu.memory_space<vmem>>, vector<1x8xf32>
    %c0_1 = arith.constant 0 : index
    %c0_2 = arith.constant 0 : index
    %1 = vector.load %arg6[%c0_1, %c0_2] : memref<1x8xf32, #tpu.memory_space<vmem>>, vector<1x8xf32>
    %c0_i32 = arith.constant 0 : i32
    %2 = arith.cmpi sgt, %arg1, %c0_i32 : i32
    %3 = arith.extui %2 : i1 to i32
    %4 = arith.sitofp %3 : i32 to f32
    %c0_i32_3 = arith.constant 0 : i32
    %5 = arith.cmpi slt, %arg1, %c0_i32_3 : i32
    %6 = arith.extui %5 : i1 to i32
    %7 = arith.sitofp %6 : i32 to f32
    %c0_4 = arith.constant 0 : index
    %c0_5 = arith.constant 0 : index
    %c0_6 = arith.constant 0 : index
    %8 = vector.load %arg3[%c0_4, %c0_5, %c0_6] : memref<1x8x8xbf16, #tpu.memory_space<vmem>>, vector<1x8x8xbf16>
    %9 = arith.extf %8 : vector<1x8x8xbf16> to vector<1x8x8xf32>
    %10 = vector.shape_cast %0 : vector<1x8xf32> to vector<1x1x8xf32>
    %11 = vector.broadcast %10 : vector<1x1x8xf32> to vector<1x8x8xf32>
    %12 = arith.mulf %9, %11 : vector<1x8x8xf32>
    %13 = vector.shape_cast %1 : vector<1x8xf32> to vector<1x1x8xf32>
    %14 = vector.broadcast %13 : vector<1x1x8xf32> to vector<1x8x8xf32>
    %15 = arith.addf %12, %14 : vector<1x8x8xf32>
    %cst = arith.constant 0.000000e+00 : f32
    %16 = vector.broadcast %cst : f32 to vector<1x8x8xf32>
    %17 = arith.maximumf %15, %16 : vector<1x8x8xf32>
    %18 = vector.broadcast %4 : f32 to vector<1x8x8xf32>
    %19 = arith.mulf %17, %18 : vector<1x8x8xf32>
    %c0_7 = arith.constant 0 : index
    %c0_8 = arith.constant 0 : index
    %c0_9 = arith.constant 0 : index
    %20 = vector.load %arg2[%c0_7, %c0_8, %c0_9] : memref<8x8x8xbf16, #tpu.memory_space<vmem>>, vector<8x8x8xbf16>
    %21 = arith.extf %20 : vector<8x8x8xbf16> to vector<8x8x8xf32>
    %22 = vector.shape_cast %0 : vector<1x8xf32> to vector<1x1x8xf32>
    %23 = vector.broadcast %22 : vector<1x1x8xf32> to vector<8x8x8xf32>
    %24 = arith.mulf %21, %23 : vector<8x8x8xf32>
    %25 = vector.shape_cast %1 : vector<1x8xf32> to vector<1x1x8xf32>
    %26 = vector.broadcast %25 : vector<1x1x8xf32> to vector<8x8x8xf32>
    %27 = arith.addf %24, %26 : vector<8x8x8xf32>
    %cst_10 = arith.constant 0.000000e+00 : f32
    %28 = vector.broadcast %cst_10 : f32 to vector<8x8x8xf32>
    %29 = arith.maximumf %27, %28 : vector<8x8x8xf32>
    %c0_11 = arith.constant 0 : index
    %c0_12 = arith.constant 0 : index
    %c0_13 = arith.constant 0 : index
    %30 = vector.load %arg4[%c0_11, %c0_12, %c0_13] : memref<1x8x8xbf16, #tpu.memory_space<vmem>>, vector<1x8x8xbf16>
    %31 = arith.extf %30 : vector<1x8x8xbf16> to vector<1x8x8xf32>
    %32 = vector.shape_cast %0 : vector<1x8xf32> to vector<1x1x8xf32>
    %33 = vector.broadcast %32 : vector<1x1x8xf32> to vector<1x8x8xf32>
    %34 = arith.mulf %31, %33 : vector<1x8x8xf32>
    %35 = vector.shape_cast %1 : vector<1x8xf32> to vector<1x1x8xf32>
    %36 = vector.broadcast %35 : vector<1x1x8xf32> to vector<1x8x8xf32>
    %37 = arith.addf %34, %36 : vector<1x8x8xf32>
    %cst_14 = arith.constant 0.000000e+00 : f32
    %38 = vector.broadcast %cst_14 : f32 to vector<1x8x8xf32>
    %39 = arith.maximumf %37, %38 : vector<1x8x8xf32>
    %40 = vector.broadcast %7 : f32 to vector<1x8x8xf32>
    %41 = arith.mulf %39, %40 : vector<1x8x8xf32>
    %42 = tpu.concatenate %19, %29, %41 in 0 : vector<1x8x8xf32>, vector<8x8x8xf32>, vector<1x8x8xf32> -> vector<10x8x8xf32>
    %43 = arith.truncf %42 : vector<10x8x8xf32> to vector<10x8x8xbf16>
    %cst_15 = arith.constant 0.000000e+00 : bf16
    %44 = vector.broadcast %cst_15 : bf16 to vector<10x1x8xbf16>
    %45 = vector.extract_strided_slice %43 {offsets = [0, 0, 0], sizes = [10, 7, 8], strides = [1, 1, 1]} : vector<10x8x8xbf16> to vector<10x7x8xbf16>
    %46 = tpu.concatenate %44, %45 in 1 : vector<10x1x8xbf16>, vector<10x7x8xbf16> -> vector<10x8x8xbf16>
    %47 = vector.extract_strided_slice %43 {offsets = [0, 1, 0], sizes = [10, 7, 8], strides = [1, 1, 1]} : vector<10x8x8xbf16> to vector<10x7x8xbf16>
    %48 = tpu.concatenate %47, %44 in 1 : vector<10x7x8xbf16>, vector<10x1x8xbf16> -> vector<10x8x8xbf16>
    %49 = tpu.concatenate %46, %43, %48 in 2 : vector<10x8x8xbf16>, vector<10x8x8xbf16>, vector<10x8x8xbf16> -> vector<10x8x24xbf16>
    %cst_16 = arith.constant 0.000000e+00 : f32
    %50 = vector.broadcast %cst_16 : f32 to vector<64x8xf32>
    %51 = vector.extract_strided_slice %49 {offsets = [0, 0, 0], sizes = [8, 8, 24], strides = [1, 1, 1]} : vector<10x8x24xbf16> to vector<8x8x24xbf16>
    %52 = vector.shape_cast %51 : vector<8x8x24xbf16> to vector<64x24xbf16>
    %c0_17 = arith.constant 0 : index
    %c0_18 = arith.constant 0 : index
    %c0_19 = arith.constant 0 : index
    %53 = vector.load %arg7[%c0_17, %c0_18, %c0_19] : memref<3x24x8xbf16, #tpu.memory_space<vmem>>, vector<1x24x8xbf16>
    %54 = vector.shape_cast %53 : vector<1x24x8xbf16> to vector<24x8xbf16>
    %cst_20 = arith.constant dense<0.000000e+00> : vector<64x8xf32>
    %55 = tpu.matmul %52, %54, %cst_20 {dimension_numbers = #tpu.dot_dimension_numbers<[1], [0], [0], [1], [0, 0, 1, 1], [], []>} : vector<64x24xbf16>, vector<24x8xbf16>, vector<64x8xf32> -> vector<64x8xf32>
    %56 = arith.addf %50, %55 : vector<64x8xf32>
    %57 = vector.extract_strided_slice %49 {offsets = [1, 0, 0], sizes = [8, 8, 24], strides = [1, 1, 1]} : vector<10x8x24xbf16> to vector<8x8x24xbf16>
    %58 = vector.shape_cast %57 : vector<8x8x24xbf16> to vector<64x24xbf16>
    %c1 = arith.constant 1 : index
    %c0_21 = arith.constant 0 : index
    %c0_22 = arith.constant 0 : index
    %59 = vector.load %arg7[%c1, %c0_21, %c0_22] : memref<3x24x8xbf16, #tpu.memory_space<vmem>>, vector<1x24x8xbf16>
    %60 = vector.shape_cast %59 : vector<1x24x8xbf16> to vector<24x8xbf16>
    %cst_23 = arith.constant dense<0.000000e+00> : vector<64x8xf32>
    %61 = tpu.matmul %58, %60, %cst_23 {dimension_numbers = #tpu.dot_dimension_numbers<[1], [0], [0], [1], [0, 0, 1, 1], [], []>} : vector<64x24xbf16>, vector<24x8xbf16>, vector<64x8xf32> -> vector<64x8xf32>
    %62 = arith.addf %56, %61 : vector<64x8xf32>
    %63 = vector.extract_strided_slice %49 {offsets = [2, 0, 0], sizes = [8, 8, 24], strides = [1, 1, 1]} : vector<10x8x24xbf16> to vector<8x8x24xbf16>
    %64 = vector.shape_cast %63 : vector<8x8x24xbf16> to vector<64x24xbf16>
    %c2 = arith.constant 2 : index
    %c0_24 = arith.constant 0 : index
    %c0_25 = arith.constant 0 : index
    %65 = vector.load %arg7[%c2, %c0_24, %c0_25] : memref<3x24x8xbf16, #tpu.memory_space<vmem>>, vector<1x24x8xbf16>
    %66 = vector.shape_cast %65 : vector<1x24x8xbf16> to vector<24x8xbf16>
    %cst_26 = arith.constant dense<0.000000e+00> : vector<64x8xf32>
    %67 = tpu.matmul %64, %66, %cst_26 {dimension_numbers = #tpu.dot_dimension_numbers<[1], [0], [0], [1], [0, 0, 1, 1], [], []>} : vector<64x24xbf16>, vector<24x8xbf16>, vector<64x8xf32> -> vector<64x8xf32>
    %68 = arith.addf %62, %67 : vector<64x8xf32>
    %c0_i32_27 = arith.constant 0 : i32
    %69 = arith.cmpi eq, %arg1, %c0_i32_27 : i32
    %70 = arith.extui %69 : i1 to i32
    %c0_i32_28 = arith.constant 0 : i32
    %71 = arith.cmpi ne, %70, %c0_i32_28 : i32
    scf.if %71 {
      %cst_46 = arith.constant 0.000000e+00 : f32
      %88 = vector.broadcast %cst_46 : f32 to vector<1x8x8xf32>
      %c0_47 = arith.constant 0 : index
      %c0_48 = arith.constant 0 : index
      %c0_49 = arith.constant 0 : index
      %89 = vector.load %arg9[%c0_47, %c0_48, %c0_49] : memref<1x8x8xf32, #tpu.memory_space<vmem>>, vector<1x8x8xf32>
      tpu.vector_store %arg9[%c0_47, %c0_48, %c0_49], %88 {strides = array<i32>} : memref<1x8x8xf32, #tpu.memory_space<vmem>>, vector<1x8x8xf32>,
      %cst_50 = arith.constant 0.000000e+00 : f32
      %90 = vector.broadcast %cst_50 : f32 to vector<1x8x8xf32>
      %c0_51 = arith.constant 0 : index
      %c0_52 = arith.constant 0 : index
      %c0_53 = arith.constant 0 : index
      %91 = vector.load %arg10[%c0_51, %c0_52, %c0_53] : memref<1x8x8xf32, #tpu.memory_space<vmem>>, vector<1x8x8xf32>
      tpu.vector_store %arg10[%c0_51, %c0_52, %c0_53], %90 {strides = array<i32>} : memref<1x8x8xf32, #tpu.memory_space<vmem>>, vector<1x8x8xf32>,
    } else {
    }
    %c0_29 = arith.constant 0 : index
    %c0_30 = arith.constant 0 : index
    %c0_31 = arith.constant 0 : index
    %72 = vector.load %arg9[%c0_29, %c0_30, %c0_31] : memref<1x8x8xf32, #tpu.memory_space<vmem>>, vector<1x8x8xf32>
    %cst_32 = arith.constant dense<0.000000e+00> : vector<8xf32>
    %73 = vector.multi_reduction <add>, %68, %cst_32 [0] : vector<64x8xf32> to vector<8xf32>
    %74 = vector.shape_cast %73 : vector<8xf32> to vector<1x1x8xf32>
    %75 = vector.broadcast %74 : vector<1x1x8xf32> to vector<1x8x8xf32>
    %76 = arith.addf %72, %75 : vector<1x8x8xf32>
    %c0_33 = arith.constant 0 : index
    %c0_34 = arith.constant 0 : index
    %c0_35 = arith.constant 0 : index
    %77 = vector.load %arg9[%c0_33, %c0_34, %c0_35] : memref<1x8x8xf32, #tpu.memory_space<vmem>>, vector<1x8x8xf32>
    tpu.vector_store %arg9[%c0_33, %c0_34, %c0_35], %76 {strides = array<i32>} : memref<1x8x8xf32, #tpu.memory_space<vmem>>, vector<1x8x8xf32>,
    %c0_36 = arith.constant 0 : index
    %c0_37 = arith.constant 0 : index
    %c0_38 = arith.constant 0 : index
    %78 = vector.load %arg10[%c0_36, %c0_37, %c0_38] : memref<1x8x8xf32, #tpu.memory_space<vmem>>, vector<1x8x8xf32>
    %79 = arith.mulf %68, %68 : vector<64x8xf32>
    %cst_39 = arith.constant dense<0.000000e+00> : vector<8xf32>
    %80 = vector.multi_reduction <add>, %79, %cst_39 [0] : vector<64x8xf32> to vector<8xf32>
    %81 = vector.shape_cast %80 : vector<8xf32> to vector<1x1x8xf32>
    %82 = vector.broadcast %81 : vector<1x1x8xf32> to vector<1x8x8xf32>
    %83 = arith.addf %78, %82 : vector<1x8x8xf32>
    %c0_40 = arith.constant 0 : index
    %c0_41 = arith.constant 0 : index
    %c0_42 = arith.constant 0 : index
    %84 = vector.load %arg10[%c0_40, %c0_41, %c0_42] : memref<1x8x8xf32, #tpu.memory_space<vmem>>, vector<1x8x8xf32>
    tpu.vector_store %arg10[%c0_40, %c0_41, %c0_42], %83 {strides = array<i32>} : memref<1x8x8xf32, #tpu.memory_space<vmem>>, vector<1x8x8xf32>,
    %85 = vector.shape_cast %68 : vector<64x8xf32> to vector<8x8x8xf32>
    %86 = arith.truncf %85 : vector<8x8x8xf32> to vector<8x8x8xbf16>
    %c0_43 = arith.constant 0 : index
    %c0_44 = arith.constant 0 : index
    %c0_45 = arith.constant 0 : index
    %87 = vector.load %arg8[%c0_43, %c0_44, %c0_45] : memref<8x8x8xbf16, #tpu.memory_space<vmem>>, vector<8x8x8xbf16>
    tpu.vector_store %arg8[%c0_43, %c0_44, %c0_45], %86 {strides = array<i32>} : memref<8x8x8xbf16, #tpu.memory_space<vmem>>, vector<8x8x8xbf16>,
    return
  }
  func.func @transform_0(%arg0: i32, %arg1: i32) -> (i32, i32, i32) {
    %c1_i32 = arith.constant 1 : i32
    %0 = arith.muli %arg0, %c1_i32 : i32
    %1 = arith.addi %0, %arg1 : i32
    %c0_i32 = arith.constant 0 : i32
    %c0_i32_0 = arith.constant 0 : i32
    %c0_i32_1 = arith.constant 0 : i32
    return %1, %c0_i32, %c0_i32_0 : i32, i32, i32
  }
  func.func @transform_1(%arg0: i32, %arg1: i32) -> (i32, i32, i32) {
    %c8_i32 = arith.constant 8 : i32
    %0 = arith.muli %arg0, %c8_i32 : i32
    %c8_i32_0 = arith.constant 8 : i32
    %1 = arith.muli %arg1, %c8_i32_0 : i32
    %2 = arith.addi %0, %1 : i32
    %c1_i32 = arith.constant 1 : i32
    %3 = arith.subi %2, %c1_i32 : i32
    %c0_i32 = arith.constant 0 : i32
    %4 = arith.maxsi %3, %c0_i32 : i32
    %c0_i32_1 = arith.constant 0 : i32
    %c0_i32_2 = arith.constant 0 : i32
    %c0_i32_3 = arith.constant 0 : i32
    return %4, %c0_i32_1, %c0_i32_2 : i32, i32, i32
  }
  func.func @transform_2(%arg0: i32, %arg1: i32) -> (i32, i32, i32) {
    %c8_i32 = arith.constant 8 : i32
    %0 = arith.muli %arg0, %c8_i32 : i32
    %c1_i32 = arith.constant 1 : i32
    %1 = arith.addi %arg1, %c1_i32 : i32
    %c8_i32_0 = arith.constant 8 : i32
    %2 = arith.muli %1, %c8_i32_0 : i32
    %3 = arith.addi %0, %2 : i32
    %c15_i32 = arith.constant 15 : i32
    %4 = arith.minsi %3, %c15_i32 : i32
    %c0_i32 = arith.constant 0 : i32
    %c0_i32_1 = arith.constant 0 : i32
    %c0_i32_2 = arith.constant 0 : i32
    return %4, %c0_i32, %c0_i32_1 : i32, i32, i32
  }
  func.func @transform_3(%arg0: i32, %arg1: i32) -> (i32, i32) {
    %c0_i32 = arith.constant 0 : i32
    %c0_i32_0 = arith.constant 0 : i32
    %c0_i32_1 = arith.constant 0 : i32
    return %c0_i32, %c0_i32_0 : i32, i32
  }
  func.func @transform_4(%arg0: i32, %arg1: i32) -> (i32, i32) {
    %c0_i32 = arith.constant 0 : i32
    %c0_i32_0 = arith.constant 0 : i32
    %c0_i32_1 = arith.constant 0 : i32
    return %c0_i32, %c0_i32_0 : i32, i32
  }
  func.func @transform_5(%arg0: i32, %arg1: i32) -> (i32, i32, i32) {
    %c0_i32 = arith.constant 0 : i32
    %c0_i32_0 = arith.constant 0 : i32
    %c0_i32_1 = arith.constant 0 : i32
    %c0_i32_2 = arith.constant 0 : i32
    return %c0_i32, %c0_i32_0, %c0_i32_1 : i32, i32, i32
  }
  func.func @transform_6(%arg0: i32, %arg1: i32) -> (i32, i32, i32) {
    %c1_i32 = arith.constant 1 : i32
    %0 = arith.muli %arg0, %c1_i32 : i32
    %1 = arith.addi %0, %arg1 : i32
    %c0_i32 = arith.constant 0 : i32
    %c0_i32_0 = arith.constant 0 : i32
    %c0_i32_1 = arith.constant 0 : i32
    return %1, %c0_i32, %c0_i32_0 : i32, i32, i32
  }
  func.func @transform_7(%arg0: i32, %arg1: i32) -> (i32, i32, i32) {
    %c0_i32 = arith.constant 0 : i32
    %c0_i32_0 = arith.constant 0 : i32
    %c0_i32_1 = arith.constant 0 : i32
    return %arg0, %c0_i32, %c0_i32_0 : i32, i32, i32
  }
  func.func @transform_8(%arg0: i32, %arg1: i32) -> (i32, i32, i32) {
    %c0_i32 = arith.constant 0 : i32
    %c0_i32_0 = arith.constant 0 : i32
    %c0_i32_1 = arith.constant 0 : i32
    return %arg0, %c0_i32, %c0_i32_0 : i32, i32, i32
  }
}

module attributes {stable_mosaic.version = 11 : i64} {
  func.func @_bn_add_relu_kernel(%arg0: i32, %arg1: i32, %arg2: memref<8x8x32xbf16, #tpu.memory_space<vmem>>, %arg3: memref<8x8x32xbf16, #tpu.memory_space<vmem>>, %arg4: memref<1x32xf32, #tpu.memory_space<vmem>>, %arg5: memref<1x32xf32, #tpu.memory_space<vmem>>, %arg6: memref<8x8x32xf32, #tpu.memory_space<vmem>>) attributes {dimension_semantics = [#tpu.dimension_semantics<parallel>, #tpu.dimension_semantics<parallel>], iteration_bounds = array<i64: 2, 1>, scalar_prefetch = 0 : i64, scratch_operands = 0 : i64, tpu.core_type = #tpu.core_type<tc>, window_params = [{transform_indices = @transform_0, window_bounds = array<i64: 8, 8, 32>}, {transform_indices = @transform_1, window_bounds = array<i64: 8, 8, 32>}, {pipeline_mode = #tpu.pipeline_mode<synchronous>, transform_indices = @transform_2, window_bounds = array<i64: 1, 32>}, {pipeline_mode = #tpu.pipeline_mode<synchronous>, transform_indices = @transform_3, window_bounds = array<i64: 1, 32>}, {transform_indices = @transform_4, window_bounds = array<i64: 8, 8, 32>}]} {
    %c0 = arith.constant 0 : index
    %c0_0 = arith.constant 0 : index
    %c0_1 = arith.constant 0 : index
    %0 = vector.load %arg2[%c0, %c0_0, %c0_1] : memref<8x8x32xbf16, #tpu.memory_space<vmem>>, vector<8x8x32xbf16>
    %1 = arith.extf %0 : vector<8x8x32xbf16> to vector<8x8x32xf32>
    %c0_2 = arith.constant 0 : index
    %c0_3 = arith.constant 0 : index
    %2 = vector.load %arg4[%c0_2, %c0_3] : memref<1x32xf32, #tpu.memory_space<vmem>>, vector<1x32xf32>
    %3 = vector.shape_cast %2 : vector<1x32xf32> to vector<1x1x32xf32>
    %4 = vector.broadcast %3 : vector<1x1x32xf32> to vector<8x8x32xf32>
    %5 = arith.mulf %1, %4 : vector<8x8x32xf32>
    %c0_4 = arith.constant 0 : index
    %c0_5 = arith.constant 0 : index
    %6 = vector.load %arg5[%c0_4, %c0_5] : memref<1x32xf32, #tpu.memory_space<vmem>>, vector<1x32xf32>
    %7 = vector.shape_cast %6 : vector<1x32xf32> to vector<1x1x32xf32>
    %8 = vector.broadcast %7 : vector<1x1x32xf32> to vector<8x8x32xf32>
    %9 = arith.addf %5, %8 : vector<8x8x32xf32>
    %c0_6 = arith.constant 0 : index
    %c0_7 = arith.constant 0 : index
    %c0_8 = arith.constant 0 : index
    %10 = vector.load %arg3[%c0_6, %c0_7, %c0_8] : memref<8x8x32xbf16, #tpu.memory_space<vmem>>, vector<8x8x32xbf16>
    %11 = arith.extf %10 : vector<8x8x32xbf16> to vector<8x8x32xf32>
    %12 = arith.addf %9, %11 : vector<8x8x32xf32>
    %cst = arith.constant 0.000000e+00 : f32
    %13 = vector.broadcast %cst : f32 to vector<8x8x32xf32>
    %14 = arith.maximumf %12, %13 : vector<8x8x32xf32>
    %c0_9 = arith.constant 0 : index
    %c0_10 = arith.constant 0 : index
    %c0_11 = arith.constant 0 : index
    %15 = vector.load %arg6[%c0_9, %c0_10, %c0_11] : memref<8x8x32xf32, #tpu.memory_space<vmem>>, vector<8x8x32xf32>
    tpu.vector_store %arg6[%c0_9, %c0_10, %c0_11], %14 {strides = array<i32>} : memref<8x8x32xf32, #tpu.memory_space<vmem>>, vector<8x8x32xf32>,
    return
  }
  func.func @transform_0(%arg0: i32, %arg1: i32) -> (i32, i32, i32) {
    %c1_i32 = arith.constant 1 : i32
    %0 = arith.muli %arg0, %c1_i32 : i32
    %1 = arith.addi %0, %arg1 : i32
    %c0_i32 = arith.constant 0 : i32
    %c0_i32_0 = arith.constant 0 : i32
    %c0_i32_1 = arith.constant 0 : i32
    return %1, %c0_i32, %c0_i32_0 : i32, i32, i32
  }
  func.func @transform_1(%arg0: i32, %arg1: i32) -> (i32, i32, i32) {
    %c1_i32 = arith.constant 1 : i32
    %0 = arith.muli %arg0, %c1_i32 : i32
    %1 = arith.addi %0, %arg1 : i32
    %c0_i32 = arith.constant 0 : i32
    %c0_i32_0 = arith.constant 0 : i32
    %c0_i32_1 = arith.constant 0 : i32
    return %1, %c0_i32, %c0_i32_0 : i32, i32, i32
  }
  func.func @transform_2(%arg0: i32, %arg1: i32) -> (i32, i32) {
    %c0_i32 = arith.constant 0 : i32
    %c0_i32_0 = arith.constant 0 : i32
    %c0_i32_1 = arith.constant 0 : i32
    return %c0_i32, %c0_i32_0 : i32, i32
  }
  func.func @transform_3(%arg0: i32, %arg1: i32) -> (i32, i32) {
    %c0_i32 = arith.constant 0 : i32
    %c0_i32_0 = arith.constant 0 : i32
    %c0_i32_1 = arith.constant 0 : i32
    return %c0_i32, %c0_i32_0 : i32, i32
  }
  func.func @transform_4(%arg0: i32, %arg1: i32) -> (i32, i32, i32) {
    %c1_i32 = arith.constant 1 : i32
    %0 = arith.muli %arg0, %c1_i32 : i32
    %1 = arith.addi %0, %arg1 : i32
    %c0_i32 = arith.constant 0 : i32
    %c0_i32_0 = arith.constant 0 : i32
    %c0_i32_1 = arith.constant 0 : i32
    return %1, %c0_i32, %c0_i32_0 : i32, i32, i32
  }
}

</mosaic_0001>

<llo_original>
// kernel: bottleneck_pallas_nhwc.4
$region0: #{bottleneck_pallas_nhwc.4}
  #allocation0 [shape = 'u32[]', space=smem, size = 0x4, offset = 0x4, fixed_abs, tag = 'smem constant byte address 0x4 - core index']
  #allocation1 [shape = 'u32[72,128]{1,0:T(1,128)}', space=vmem, size = 0x9000, scoped, tag = 'internal scratch']
  %s0 = inlined_call_operand.vmem [shape: bf16[16,8,32], index: 0, kind: input, shape index: {}]
  %s1 = inlined_call_operand.vmem [shape: bf16[32,8], index: 1, kind: input, shape index: {}]
  %s2 = inlined_call_operand.vmem [shape: bf16[16,8,8], index: 2, kind: output, shape index: {0}]
  %s3 = inlined_call_operand.vmem [shape: f32[2,8,8], index: 3, kind: output, shape index: {1}]
  %s4 = inlined_call_operand.vmem [shape: f32[2,8,8], index: 4, kind: output, shape index: {2}]
  %5 = xla_tuple %s2, %s3, %s4
  %s6 = sld [smem:[#allocation0]]
  $region61: #{bottleneck_pallas_nhwc.4} parent=0
    _
  %s8 = ssub.s32 1, %s6
  %s9 = scalar_select 0, %s8, %s6
  loop: start=0, step=1, limit=4
  $region2: #{bottleneck_pallas_nhwc.4} parent=0 // loop_pre_header
    _
  $region3: #{bottleneck_pallas_nhwc.4} parent=0 // loop_header
    %s11 = sphi 0, %s15
    %p12 = scmp.ge.s32.totalorder %s11, 4
    %s18 = sphi 0, %s30
    %s19 = sphi 0, %s26
    %s20 = sphi 0, %s18
    %s21 = sphi 0, %s19
    %s22 = sphi 0, %s20
    %s23 = sphi 0, %s21
    %s35 = sphi 0, %s37
    %s38 = sphi 0, %s35
    %s39 = sphi 0, %s38
    %s55 = sphi 0, %s39
    %s59 = sphi 0, %s59
    %s61 = sphi 0, %s59
    %s62 = sphi 0, %s61
    %s76 = sphi 0, %s62
    %s84 = sphi 0, %s86
    %s87 = sphi 0, %s84
    %s88 = sphi 0, %s87
    %s104 = sphi 0, %s88
    %s110 = sphi 0, %s112
    %s113 = sphi 0, %s110
    %s114 = sphi 0, %s113
    %s130 = sphi 0, %s114
    %s136 = sphi 0, %s138
    %s139 = sphi 0, %s136
    %s140 = sphi 0, %s139
    %s156 = sphi 0, %s140
  $region4: #{bottleneck_pallas_nhwc.4} parent=0 // loop_header_branch
    %14 = sbr.rel (%p12) target = $region8
  $region5: #{bottleneck_pallas_nhwc.4} parent=0 // loop_body
    %s16 = ssub.s32 %s11, 1
    %s17 = ssub.s32 %s11, 2
    %s24 = sadd.s32 1, %s19
    %p25 = scmp.ge.s32.totalorder %s24, 1
    %s26 = scalar_select %p25, 0, %s24
    %s27 = sadd.s32 1, %s18
    %s28 = scalar_select %p25, %s27, %s18
    %p29 = scmp.ge.s32.totalorder %s28, 2
    %s30 = scalar_select %p29, 0, %s28
    %s31 = sadd.s32 %s18, %s19
    %s32 = sadd.s32 %s30, %s26
    %s33 = ssub.s32 %s31, %s32
    %p34 = scmp.eq.s32.totalorder %s33, 0
    %s36 = sadd.s32 %s35, 1
    %s37 = scalar_select %p34, %s35, %s36
    %p40 = pneg %p34
    %p41 = scmp.eq.s32.totalorder %s11, 1
    %p42 = por %p40, %p41
    %p43 = scmp.ne.s32.totalorder %s35, %s38
    %p44 = scmp.eq.s32.totalorder %s11, 0
    %p45 = por %p43, %p44
    %p46 = scmp.ne.s32.totalorder %s35, %s38
    %p47 = scmp.eq.s32.totalorder %s16, 1
    %p48 = por %p46, %p47
    %p49 = scmp.ne.s32.totalorder %s38, %s39
    %p50 = scmp.eq.s32.totalorder %s16, 0
    %p51 = por %p49, %p50
    %p52 = scmp.ne.s32.totalorder %s38, %s39
    %p53 = scmp.eq.s32.totalorder %s17, 1
    %p54 = por %p52, %p53
    %p56 = scmp.ne.s32.totalorder %s39, %s55
    %p57 = scmp.eq.s32.totalorder %s17, 0
    %p58 = por %p56, %p57
    %s60 = sadd.s32 %s59, 1
    %p63 = scmp.eq.s32.totalorder %s11, 1
    %p64 = scmp.ne.s32.totalorder %s59, %s61
    %p65 = scmp.eq.s32.totalorder %s11, 0
    %p66 = por %p64, %p65
    %p67 = scmp.ne.s32.totalorder %s59, %s61
    %p68 = scmp.eq.s32.totalorder %s16, 1
    %p69 = por %p67, %p68
    %p70 = scmp.ne.s32.totalorder %s61, %s62
    %p71 = scmp.eq.s32.totalorder %s16, 0
    %p72 = por %p70, %p71
    %p73 = scmp.ne.s32.totalorder %s61, %s62
    %p74 = scmp.eq.s32.totalorder %s17, 1
    %p75 = por %p73, %p74
    %p77 = scmp.ne.s32.totalorder %s62, %s76
    %p78 = scmp.eq.s32.totalorder %s17, 0
    %p79 = por %p77, %p78
    %s80 = sadd.s32 %s18, %s19
    %s81 = sadd.s32 %s30, %s26
    %s82 = ssub.s32 %s80, %s81
    %p83 = scmp.eq.s32.totalorder %s82, 0
    %s85 = sadd.s32 %s84, 1
    %s86 = scalar_select %p83, %s84, %s85
    %p89 = pneg %p83
    %p90 = scmp.eq.s32.totalorder %s11, 1
    %p91 = por %p89, %p90
    %p92 = scmp.ne.s32.totalorder %s84, %s87
    %p93 = scmp.eq.s32.totalorder %s11, 0
    %p94 = por %p92, %p93
    %p95 = scmp.ne.s32.totalorder %s84, %s87
    %p96 = scmp.eq.s32.totalorder %s16, 1
    %p97 = por %p95, %p96
    %p98 = scmp.ne.s32.totalorder %s87, %s88
    %p99 = scmp.eq.s32.totalorder %s16, 0
    %p100 = por %p98, %p99
    %p101 = scmp.ne.s32.totalorder %s87, %s88
    %p102 = scmp.eq.s32.totalorder %s17, 1
    %p103 = por %p101, %p102
    %p105 = scmp.ne.s32.totalorder %s88, %s104
    %p106 = scmp.eq.s32.totalorder %s17, 0
    %p107 = por %p105, %p106
    %s108 = ssub.s32 %s18, %s30
    %p109 = scmp.eq.s32.totalorder %s108, 0
    %s111 = sadd.s32 %s110, 1
    %s112 = scalar_select %p109, %s110, %s111
    %p115 = pneg %p109
    %p116 = scmp.eq.s32.totalorder %s11, 1
    %p117 = por %p115, %p116
    %p118 = scmp.ne.s32.totalorder %s110, %s113
    %p119 = scmp.eq.s32.totalorder %s11, 0
    %p120 = por %p118, %p119
    %p121 = scmp.ne.s32.totalorder %s110, %s113
    %p122 = scmp.eq.s32.totalorder %s16, 1
    %p123 = por %p121, %p122
    %p124 = scmp.ne.s32.totalorder %s113, %s114
    %p125 = scmp.eq.s32.totalorder %s16, 0
    %p126 = por %p124, %p125
    %p127 = scmp.ne.s32.totalorder %s113, %s114
    %p128 = scmp.eq.s32.totalorder %s17, 1
    %p129 = por %p127, %p128
    %p131 = scmp.ne.s32.totalorder %s114, %s130
    %p132 = scmp.eq.s32.totalorder %s17, 0
    %p133 = por %p131, %p132
    %s134 = ssub.s32 %s18, %s30
    %p135 = scmp.eq.s32.totalorder %s134, 0
    %s137 = sadd.s32 %s136, 1
    %s138 = scalar_select %p135, %s136, %s137
    %p141 = pneg %p135
    %p142 = scmp.eq.s32.totalorder %s11, 1
    %p143 = por %p141, %p142
    %p144 = scmp.ne.s32.totalorder %s136, %s139
    %p145 = scmp.eq.s32.totalorder %s11, 0
    %p146 = por %p144, %p145
    %p147 = scmp.ne.s32.totalorder %s136, %s139
    %p148 = scmp.eq.s32.totalorder %s16, 1
    %p149 = por %p147, %p148
    %p150 = scmp.ne.s32.totalorder %s139, %s140
    %p151 = scmp.eq.s32.totalorder %s16, 0
    %p152 = por %p150, %p151
    %p153 = scmp.ne.s32.totalorder %s139, %s140
    %p154 = scmp.eq.s32.totalorder %s17, 1
    %p155 = por %p153, %p154
    %p157 = scmp.ne.s32.totalorder %s140, %s156
    %p158 = scmp.eq.s32.totalorder %s17, 0
    %p159 = por %p157, %p158
    %p160 = scmp.le.s32.totalorder 1, %s11
    %p161 = scmp.lt.s32.totalorder %s11, 3
    %p162 = pnand %p160, %p161
    %p163 = pneg %p162
    // Predicated region
    $region9: #{bottleneck_pallas_nhwc.4} parent=5 // pred_check
      _
    $region10: #{bottleneck_pallas_nhwc.4} parent=5 // pred_check_branch
      %165 = sbr.rel (%p162) target = $region12
    $region11: #{bottleneck_pallas_nhwc.4} parent=5 // pred_region
      %s166 = ssub.s32 %s11, 1
      // Predicated region
      $region13: #{bottleneck_pallas_nhwc.4} parent=11 // pred_check
        %p167 = pneg %p72
      $region14: #{bottleneck_pallas_nhwc.4} parent=11 // pred_check_branch
        %169 = sbr.rel (%p167) target = $region16
      $region15: #{bottleneck_pallas_nhwc.4} parent=11 // pred_region
        _
      $region16: #{bottleneck_pallas_nhwc.4} parent=11 // pred_fallthru
        _
    $region12: #{bottleneck_pallas_nhwc.4} parent=5 // pred_fallthru
      _
    %p170 = scmp.lt.s32.totalorder %s11, 2
    // Predicated region
    $region17: #{bottleneck_pallas_nhwc.4} parent=5 // pred_check
      %p171 = pneg %p170
    $region18: #{bottleneck_pallas_nhwc.4} parent=5 // pred_check_branch
      %173 = sbr.rel (%p171) target = $region20
    $region19: #{bottleneck_pallas_nhwc.4} parent=5 // pred_region
      // Predicated region
      $region21: #{bottleneck_pallas_nhwc.4} parent=19 // pred_check
        %p174 = pneg %p45
      $region22: #{bottleneck_pallas_nhwc.4} parent=19 // pred_check_branch
        %176 = sbr.rel (%p174) target = $region24
      $region23: #{bottleneck_pallas_nhwc.4} parent=19 // pred_region
        %s177 = sadd.s32 %s18, %s19
        %s178 = smul.u32 8, %s177
        %p179 = scmp.lt.s32.totalorder %s178, 15
        %s180 = scalar_select %p179, %s178, 15
        %s181 = smul.addr %s180, 4
        %s182 = scalar_lea.vmem %s0, %s181
        %s183 = sadd.s32 %s18, %s19
        %s184 = smul.u32 8, %s183
      $region24: #{bottleneck_pallas_nhwc.4} parent=19 // pred_fallthru
        _
    $region20: #{bottleneck_pallas_nhwc.4} parent=5 // pred_fallthru
      _
    %p185 = scmp.le.s32.totalorder 1, %s11
    %p186 = scmp.lt.s32.totalorder %s11, 3
    %p187 = pnand %p185, %p186
    %p188 = pneg %p187
    // Predicated region
    $region25: #{bottleneck_pallas_nhwc.4} parent=5 // pred_check
      _
    $region26: #{bottleneck_pallas_nhwc.4} parent=5 // pred_check_branch
      %190 = sbr.rel (%p187) target = $region28
    $region27: #{bottleneck_pallas_nhwc.4} parent=5 // pred_region
      %s191 = ssub.s32 %s11, 1
      %s192 = sadd.s32 %s20, %s21
      %s193 = smul.u32 8, %s192
      %p194 = scmp.lt.s32.totalorder %s193, 15
      %s195 = scalar_select %p194, %s193, 15
      %s196 = smul.addr %s195, 4
      %s197 = scalar_lea.vmem %s0, %s196
      %p198 = pneg %p51
      %p199 = pneg %p48
      %p200 = pneg %p72
      %p201 = pneg %p69
      %p202 = pneg %p100
      %p203 = pneg %p97
      %s204 = sadd.s32 %s20, %s21
      %s205 = smul.u32 8, %s204
      %p206 = scmp.lt.s32.totalorder %s205, 15
      %s207 = scalar_select %p206, %s205, 15
      %s208 = smul.addr %s207, 4
      %s209 = scalar_lea.vmem %s2, %s208
      %p210 = pneg %p126
      %p211 = pneg %p123
      %p212 = scmp.lt.s32.totalorder %s20, 1
      %s213 = scalar_select %p212, %s20, 1
      %s214 = smul.addr %s213, 8
      %s215 = scalar_lea.vmem %s3, %s214
      %p216 = pneg %p152
      %p217 = pneg %p149
      %p218 = scmp.lt.s32.totalorder %s20, 1
      %s219 = scalar_select %p218, %s20, 1
      %s220 = smul.addr %s219, 8
      %s221 = scalar_lea.vmem %s4, %s220
      %s222 = sadd.s32 %s20, %s21
      %s223 = smul.u32 8, %s222
      %p224 = scmp.lt.s32.totalorder %s223, 15
      %s225 = scalar_select %p224, %s223, 15
      %s226 = smul.addr %s225, 4
      %s227 = scalar_lea.vmem %s0, %s226
      %s228 = sadd.s32 %s20, %s21
      %s229 = smul.u32 8, %s228
      %s230 = sadd.s32 %s20, %s21
      %s231 = smul.u32 8, %s230
      %p232 = scmp.lt.s32.totalorder %s231, 15
      %s233 = scalar_select %p232, %s231, 15
      %s234 = smul.addr %s233, 4
      %s235 = scalar_lea.vmem %s2, %s234
      %s236 = sadd.s32 %s20, %s21
      %s237 = smul.u32 8, %s236
      %p238 = scmp.lt.s32.totalorder %s20, 1
      %s239 = scalar_select %p238, %s20, 1
      %s240 = smul.addr %s239, 8
      %s241 = scalar_lea.vmem %s3, %s240
      %p242 = scmp.lt.s32.totalorder %s20, 1
      %s243 = scalar_select %p242, %s20, 1
      %s244 = smul.addr %s243, 8
      %s245 = scalar_lea.vmem %s4, %s244
      %v247 = vld [vmem:[%s227] sm:$0xf]
      %v248 = vld [vmem:[%s227 + $0x4] sm:$0xf]
      %v249 = vld [vmem:[%s227 + $0x8] sm:$0xf]
      %v250 = vld [vmem:[%s227 + $0xc] sm:$0xf]
      %v251 = vld [vmem:[%s227 + $0x10] sm:$0xf]
      %v252 = vld [vmem:[%s227 + $0x14] sm:$0xf]
      %v253 = vld [vmem:[%s227 + $0x18] sm:$0xf]
      %v254 = vld [vmem:[%s227 + $0x1c] sm:$0xf]
      %v255 = vld [vmem:[%s1] sm:$0xf]
      %v256 = vld [vmem:[%s1 + $0x4] sm:$0xf]
      %v257 = vld [vmem:[%s1 + $0x8] sm:$0xf]
      %v258 = vld [vmem:[%s1 + $0xc] sm:$0xf]
      %v267 = vunpack.c.l.b16 %v247
      %v268 = vunpack.c.l.b16 %v248
      %v269 = vunpack.c.l.b16 %v249
      %v270 = vunpack.c.l.b16 %v250
      %v271 = vunpack.c.l.b16 %v251
      %v272 = vunpack.c.l.b16 %v252
      %v273 = vunpack.c.l.b16 %v253
      %v274 = vunpack.c.l.b16 %v254
      %v275 = vpack.c.b16 %v268, %v267
      %v276 = vpack.c.b16 %v270, %v269
      %v277 = vpack.c.b16 %v272, %v271
      %v278 = vpack.c.b16 %v274, %v273
      %v283 = vunpack.c.l.b16 %v255
      %v284 = vunpack.c.l.b16 %v256
      %v285 = vunpack.c.l.b16 %v257
      %v286 = vunpack.c.l.b16 %v258
      %v287 = vpack.c.b16 %v284, %v283
      %v288 = vpack.c.b16 %v286, %v285
      %vm291 = vcmask 261120
      %v293 = vsel %vm291, %v275, 0
      %v296 = vsel %vm291, %v276, 0
      %v299 = vsel %vm291, %v277, 0
      %v302 = vsel %vm291, %v278, 0
      %304 = vmatpush.bf16.msra.mxu0 0
      %305 = vmatpush.bf16.msra.mxu0 0
      %306 = vmatpush.bf16.msra.mxu0 0
      %307 = vmatpush.bf16.msra.mxu0 0
      %308 = vmatpush.bf16.msra.mxu0 0
      %309 = vmatpush.bf16.msra.mxu0 0
      %310 = vmatpush.bf16.msra.mxu0 %v288
      %311 = vmatpush.bf16.msra.mxu0 %v287
      %312 = vmatmul.bf16.gmra.mxu0 %v293
      %v313 = vpop.f32.mrf.mxu0
      %v314 = vadd.f32 0.0, %v313
      %v315 = vpop.f32.mrf.mxu0
      %v316 = vadd.f32 0.0, %v315
      %317 = vmatmul.bf16.gmra.mxu0 %v296
      %v318 = vpop.f32.mrf.mxu0
      %v319 = vadd.f32 0.0, %v318
      %v320 = vpop.f32.mrf.mxu0
      %v321 = vadd.f32 0.0, %v320
      %322 = vmatmul.bf16.gmra.mxu0 %v299
      %v323 = vpop.f32.mrf.mxu0
      %v324 = vadd.f32 0.0, %v323
      %v325 = vpop.f32.mrf.mxu0
      %v326 = vadd.f32 0.0, %v325
      %327 = vmatmul.bf16.gmra.mxu0 %v302
      %v328 = vpop.f32.mrf.mxu0
      %v329 = vadd.f32 0.0, %v328
      %v330 = vpop.f32.mrf.mxu0
      %v331 = vadd.f32 0.0, %v330
      %332 = vdwg.mxu0
      %p333 = scmp.eq.s32.totalorder %s21, 0
      // Predicated region
      $region29: #{bottleneck_pallas_nhwc.4} parent=27 // pred_check
        %p334 = pneg %p333
      $region30: #{bottleneck_pallas_nhwc.4} parent=27 // pred_check_branch
        %336 = sbr.rel (%p334) target = $region32
      $region31: #{bottleneck_pallas_nhwc.4} parent=27 // pred_region
        %vm337 = vcmask 64512
        %338 = vst.msk [vmem:[%s241] sm:$0xff] %vm337, 0.0
        %339 = vst.msk [vmem:[%s245] sm:$0xff] %vm337, 0.0
      $region32: #{bottleneck_pallas_nhwc.4} parent=27 // pred_fallthru
        _
      %v340 = vld [vmem:[%s241] sm:$0xff]
      %vm341 = vcmask 64512
      %v342 = vsel %vm341, %v314, 0.0
      %v343 = vsel %vm341, %v316, 0.0
      %v344 = vadd.f32 %v342, %v343
      %v345 = vsel %vm341, %v319, 0.0
      %v346 = vadd.f32 %v344, %v345
      %v347 = vsel %vm341, %v321, 0.0
      %v348 = vadd.f32 %v346, %v347
      %v349 = vsel %vm341, %v324, 0.0
      %v350 = vadd.f32 %v348, %v349
      %v351 = vsel %vm341, %v326, 0.0
      %v352 = vadd.f32 %v350, %v351
      %v353 = vsel %vm341, %v329, 0.0
      %v354 = vadd.f32 %v352, %v353
      %v355 = vsel %vm341, %v331, 0.0
      %v356 = vadd.f32 %v354, %v355
      %v357 = vrot.slane %v356, 4
      %v358 = vadd.f32 %v356, %v357
      %v359 = vrot.slane %v358, 2
      %v360 = vadd.f32 %v358, %v359
      %v361 = vrot.slane %v360, 1
      %v362 = vadd.f32 %v360, %v361
      %v363 = vadd.f32 %v340, %v362
      %364 = vst.msk [vmem:[%s241] sm:$0xff] %vm341, %v363
      %v365 = vld [vmem:[%s245] sm:$0xff]
      %v366 = vmul.f32 %v314, %v314
      %v367 = vmul.f32 %v316, %v316
      %v368 = vmul.f32 %v319, %v319
      %v369 = vmul.f32 %v321, %v321
      %v370 = vmul.f32 %v324, %v324
      %v371 = vmul.f32 %v326, %v326
      %v372 = vmul.f32 %v329, %v329
      %v373 = vmul.f32 %v331, %v331
      %v374 = vsel %vm341, %v366, 0.0
      %v375 = vsel %vm341, %v367, 0.0
      %v376 = vadd.f32 %v374, %v375
      %v377 = vsel %vm341, %v368, 0.0
      %v378 = vadd.f32 %v376, %v377
      %v379 = vsel %vm341, %v369, 0.0
      %v380 = vadd.f32 %v378, %v379
      %v381 = vsel %vm341, %v370, 0.0
      %v382 = vadd.f32 %v380, %v381
      %v383 = vsel %vm341, %v371, 0.0
      %v384 = vadd.f32 %v382, %v383
      %v385 = vsel %vm341, %v372, 0.0
      %v386 = vadd.f32 %v384, %v385
      %v387 = vsel %vm341, %v373, 0.0
      %v388 = vadd.f32 %v386, %v387
      %v389 = vrot.slane %v388, 4
      %v390 = vadd.f32 %v388, %v389
      %v391 = vrot.slane %v390, 2
      %v392 = vadd.f32 %v390, %v391
      %v393 = vrot.slane %v392, 1
      %v394 = vadd.f32 %v392, %v393
      %v395 = vadd.f32 %v365, %v394
      %396 = vst.msk [vmem:[%s245] sm:$0xff] %vm341, %v395
      %v397 = vpack.c.bf16 %v314, %v314
      %v398 = vpack.c.bf16 %v316, %v316
      %v399 = vpack.c.bf16 %v319, %v319
      %v400 = vpack.c.bf16 %v321, %v321
      %v401 = vpack.c.bf16 %v324, %v324
      %v402 = vpack.c.bf16 %v326, %v326
      %v403 = vpack.c.bf16 %v329, %v329
      %v404 = vpack.c.bf16 %v331, %v331
      %vm405 = vcmask 60416
      %406 = vst.msk [vmem:[%s235] sm:$0xf] %vm405, %v397
      %407 = vst.msk [vmem:[%s235 + $0x4] sm:$0xf] %vm405, %v398
      %408 = vst.msk [vmem:[%s235 + $0x8] sm:$0xf] %vm405, %v399
      %409 = vst.msk [vmem:[%s235 + $0xc] sm:$0xf] %vm405, %v400
      %410 = vst.msk [vmem:[%s235 + $0x10] sm:$0xf] %vm405, %v401
      %411 = vst.msk [vmem:[%s235 + $0x14] sm:$0xf] %vm405, %v402
      %412 = vst.msk [vmem:[%s235 + $0x18] sm:$0xf] %vm405, %v403
      %413 = vst.msk [vmem:[%s235 + $0x1c] sm:$0xf] %vm405, %v404
      %s414 = sadd.s32 %s20, %s21
      %s415 = smul.u32 8, %s414
      %p416 = scmp.lt.s32.totalorder %s415, 15
      %s417 = scalar_select %p416, %s415, 15
      %s418 = smul.addr %s417, 4
      %s419 = scalar_lea.vmem %s2, %s418
      %p420 = scmp.lt.s32.totalorder %s20, 1
      %s421 = scalar_select %p420, %s20, 1
      %s422 = smul.addr %s421, 8
      %s423 = scalar_lea.vmem %s3, %s422
      %p424 = scmp.lt.s32.totalorder %s20, 1
      %s425 = scalar_select %p424, %s20, 1
      %s426 = smul.addr %s425, 8
      %s427 = scalar_lea.vmem %s4, %s426
      // Predicated region
      $region33: #{bottleneck_pallas_nhwc.4} parent=27 // pred_check
        %p428 = pneg %p97
      $region34: #{bottleneck_pallas_nhwc.4} parent=27 // pred_check_branch
        %430 = sbr.rel (%p428) target = $region36
      $region35: #{bottleneck_pallas_nhwc.4} parent=27 // pred_region
        %s431 = sadd.s32 %s20, %s21
        %s432 = smul.u32 8, %s431
      $region36: #{bottleneck_pallas_nhwc.4} parent=27 // pred_fallthru
        _
      // Predicated region
      $region37: #{bottleneck_pallas_nhwc.4} parent=27 // pred_check
        %p433 = pneg %p123
      $region38: #{bottleneck_pallas_nhwc.4} parent=27 // pred_check_branch
        %435 = sbr.rel (%p433) target = $region40
      $region39: #{bottleneck_pallas_nhwc.4} parent=27 // pred_region
        _
      $region40: #{bottleneck_pallas_nhwc.4} parent=27 // pred_fallthru
        _
      // Predicated region
      $region41: #{bottleneck_pallas_nhwc.4} parent=27 // pred_check
        %p436 = pneg %p149
      $region42: #{bottleneck_pallas_nhwc.4} parent=27 // pred_check_branch
        %438 = sbr.rel (%p436) target = $region44
      $region43: #{bottleneck_pallas_nhwc.4} parent=27 // pred_region
        _
      $region44: #{bottleneck_pallas_nhwc.4} parent=27 // pred_fallthru
        _
    $region28: #{bottleneck_pallas_nhwc.4} parent=5 // pred_fallthru
      _
    %p439 = scmp.le.s32.totalorder 2, %s11
    // Predicated region
    $region45: #{bottleneck_pallas_nhwc.4} parent=5 // pred_check
      %p440 = pneg %p439
    $region46: #{bottleneck_pallas_nhwc.4} parent=5 // pred_check_branch
      %442 = sbr.rel (%p440) target = $region48
    $region47: #{bottleneck_pallas_nhwc.4} parent=5 // pred_region
      %s443 = ssub.s32 %s11, 2
      // Predicated region
      $region49: #{bottleneck_pallas_nhwc.4} parent=47 // pred_check
        %p444 = pneg %p103
      $region50: #{bottleneck_pallas_nhwc.4} parent=47 // pred_check_branch
        %446 = sbr.rel (%p444) target = $region52
      $region51: #{bottleneck_pallas_nhwc.4} parent=47 // pred_region
        %s447 = sadd.s32 %s22, %s23
        %s448 = smul.u32 8, %s447
        %p449 = scmp.lt.s32.totalorder %s448, 15
        %s450 = scalar_select %p449, %s448, 15
        %s451 = smul.addr %s450, 4
        %s452 = scalar_lea.vmem %s2, %s451
      $region52: #{bottleneck_pallas_nhwc.4} parent=47 // pred_fallthru
        _
      // Predicated region
      $region53: #{bottleneck_pallas_nhwc.4} parent=47 // pred_check
        %p453 = pneg %p129
      $region54: #{bottleneck_pallas_nhwc.4} parent=47 // pred_check_branch
        %455 = sbr.rel (%p453) target = $region56
      $region55: #{bottleneck_pallas_nhwc.4} parent=47 // pred_region
        %p456 = scmp.lt.s32.totalorder %s22, 1
        %s457 = scalar_select %p456, %s22, 1
        %s458 = smul.addr %s457, 8
        %s459 = scalar_lea.vmem %s3, %s458
      $region56: #{bottleneck_pallas_nhwc.4} parent=47 // pred_fallthru
        _
      // Predicated region
      $region57: #{bottleneck_pallas_nhwc.4} parent=47 // pred_check
        %p460 = pneg %p155
      $region58: #{bottleneck_pallas_nhwc.4} parent=47 // pred_check_branch
        %462 = sbr.rel (%p460) target = $region60
      $region59: #{bottleneck_pallas_nhwc.4} parent=47 // pred_region
        %p463 = scmp.lt.s32.totalorder %s22, 1
        %s464 = scalar_select %p463, %s22, 1
        %s465 = smul.addr %s464, 8
        %s466 = scalar_lea.vmem %s4, %s465
      $region60: #{bottleneck_pallas_nhwc.4} parent=47 // pred_fallthru
        _
    $region48: #{bottleneck_pallas_nhwc.4} parent=5 // pred_fallthru
      _
  $region6: #{bottleneck_pallas_nhwc.4} parent=0 // loop_footer
    %s15 = sadd.s32 1, %s11
  $region7: #{bottleneck_pallas_nhwc.4} parent=0 // loop_footer_branch
    %10 = sbr.rel target = $region3
  $region8: #{bottleneck_pallas_nhwc.4} parent=0 // loop_exit
    _

// kernel: bottleneck_pallas_nhwc.6
$region0: #{bottleneck_pallas_nhwc.6}
  #allocation0 [shape = 'u32[]', space=smem, size = 0x4, offset = 0x4, fixed_abs, tag = 'smem constant byte address 0x4 - core index']
  #allocation1 [shape = 'u32[72,128]{1,0:T(1,128)}', space=vmem, size = 0x9000, scoped, tag = 'internal scratch']
  %s0 = inlined_call_operand.vmem [shape: bf16[16,8,8], index: 0, kind: input, shape index: {}]
  %s1 = inlined_call_operand.vmem [shape: f32[1,8], index: 1, kind: input, shape index: {}]
  %s2 = inlined_call_operand.vmem [shape: f32[1,8], index: 2, kind: input, shape index: {}]
  %s3 = inlined_call_operand.vmem [shape: bf16[8,32], index: 3, kind: input, shape index: {}]
  %s4 = inlined_call_operand.vmem [shape: bf16[16,8,32], index: 4, kind: output, shape index: {0}]
  %s5 = inlined_call_operand.vmem [shape: f32[2,8,32], index: 5, kind: output, shape index: {1}]
  %s6 = inlined_call_operand.vmem [shape: f32[2,8,32], index: 6, kind: output, shape index: {2}]
  %7 = xla_tuple %s4, %s5, %s6
  %s8 = sld [smem:[#allocation0]]
  $region69: #{bottleneck_pallas_nhwc.6} parent=0
    _
  %s10 = ssub.s32 1, %s8
  %s11 = scalar_select 0, %s10, %s8
  loop: start=0, step=1, limit=4
  $region2: #{bottleneck_pallas_nhwc.6} parent=0 // loop_pre_header
    _
  $region3: #{bottleneck_pallas_nhwc.6} parent=0 // loop_header
    %s13 = sphi 0, %s17
    %p14 = scmp.ge.s32.totalorder %s13, 4
    %s20 = sphi 0, %s32
    %s21 = sphi 0, %s28
    %s22 = sphi 0, %s20
    %s23 = sphi 0, %s21
    %s24 = sphi 0, %s22
    %s25 = sphi 0, %s23
    %s37 = sphi 0, %s39
    %s40 = sphi 0, %s37
    %s41 = sphi 0, %s40
    %s57 = sphi 0, %s41
    %s61 = sphi 0, %s61
    %s63 = sphi 0, %s61
    %s64 = sphi 0, %s63
    %s78 = sphi 0, %s64
    %s82 = sphi 0, %s82
    %s84 = sphi 0, %s82
    %s85 = sphi 0, %s84
    %s99 = sphi 0, %s85
    %s103 = sphi 0, %s103
    %s105 = sphi 0, %s103
    %s106 = sphi 0, %s105
    %s120 = sphi 0, %s106
    %s128 = sphi 0, %s130
    %s131 = sphi 0, %s128
    %s132 = sphi 0, %s131
    %s148 = sphi 0, %s132
    %s154 = sphi 0, %s156
    %s157 = sphi 0, %s154
    %s158 = sphi 0, %s157
    %s174 = sphi 0, %s158
    %s180 = sphi 0, %s182
    %s183 = sphi 0, %s180
    %s184 = sphi 0, %s183
    %s200 = sphi 0, %s184
  $region4: #{bottleneck_pallas_nhwc.6} parent=0 // loop_header_branch
    %16 = sbr.rel (%p14) target = $region8
  $region5: #{bottleneck_pallas_nhwc.6} parent=0 // loop_body
    %s18 = ssub.s32 %s13, 1
    %s19 = ssub.s32 %s13, 2
    %s26 = sadd.s32 1, %s21
    %p27 = scmp.ge.s32.totalorder %s26, 1
    %s28 = scalar_select %p27, 0, %s26
    %s29 = sadd.s32 1, %s20
    %s30 = scalar_select %p27, %s29, %s20
    %p31 = scmp.ge.s32.totalorder %s30, 2
    %s32 = scalar_select %p31, 0, %s30
    %s33 = sadd.s32 %s20, %s21
    %s34 = sadd.s32 %s32, %s28
    %s35 = ssub.s32 %s33, %s34
    %p36 = scmp.eq.s32.totalorder %s35, 0
    %s38 = sadd.s32 %s37, 1
    %s39 = scalar_select %p36, %s37, %s38
    %p42 = pneg %p36
    %p43 = scmp.eq.s32.totalorder %s13, 1
    %p44 = por %p42, %p43
    %p45 = scmp.ne.s32.totalorder %s37, %s40
    %p46 = scmp.eq.s32.totalorder %s13, 0
    %p47 = por %p45, %p46
    %p48 = scmp.ne.s32.totalorder %s37, %s40
    %p49 = scmp.eq.s32.totalorder %s18, 1
    %p50 = por %p48, %p49
    %p51 = scmp.ne.s32.totalorder %s40, %s41
    %p52 = scmp.eq.s32.totalorder %s18, 0
    %p53 = por %p51, %p52
    %p54 = scmp.ne.s32.totalorder %s40, %s41
    %p55 = scmp.eq.s32.totalorder %s19, 1
    %p56 = por %p54, %p55
    %p58 = scmp.ne.s32.totalorder %s41, %s57
    %p59 = scmp.eq.s32.totalorder %s19, 0
    %p60 = por %p58, %p59
    %s62 = sadd.s32 %s61, 1
    %p65 = scmp.eq.s32.totalorder %s13, 1
    %p66 = scmp.ne.s32.totalorder %s61, %s63
    %p67 = scmp.eq.s32.totalorder %s13, 0
    %p68 = por %p66, %p67
    %p69 = scmp.ne.s32.totalorder %s61, %s63
    %p70 = scmp.eq.s32.totalorder %s18, 1
    %p71 = por %p69, %p70
    %p72 = scmp.ne.s32.totalorder %s63, %s64
    %p73 = scmp.eq.s32.totalorder %s18, 0
    %p74 = por %p72, %p73
    %p75 = scmp.ne.s32.totalorder %s63, %s64
    %p76 = scmp.eq.s32.totalorder %s19, 1
    %p77 = por %p75, %p76
    %p79 = scmp.ne.s32.totalorder %s64, %s78
    %p80 = scmp.eq.s32.totalorder %s19, 0
    %p81 = por %p79, %p80
    %s83 = sadd.s32 %s82, 1
    %p86 = scmp.eq.s32.totalorder %s13, 1
    %p87 = scmp.ne.s32.totalorder %s82, %s84
    %p88 = scmp.eq.s32.totalorder %s13, 0
    %p89 = por %p87, %p88
    %p90 = scmp.ne.s32.totalorder %s82, %s84
    %p91 = scmp.eq.s32.totalorder %s18, 1
    %p92 = por %p90, %p91
    %p93 = scmp.ne.s32.totalorder %s84, %s85
    %p94 = scmp.eq.s32.totalorder %s18, 0
    %p95 = por %p93, %p94
    %p96 = scmp.ne.s32.totalorder %s84, %s85
    %p97 = scmp.eq.s32.totalorder %s19, 1
    %p98 = por %p96, %p97
    %p100 = scmp.ne.s32.totalorder %s85, %s99
    %p101 = scmp.eq.s32.totalorder %s19, 0
    %p102 = por %p100, %p101
    %s104 = sadd.s32 %s103, 1
    %p107 = scmp.eq.s32.totalorder %s13, 1
    %p108 = scmp.ne.s32.totalorder %s103, %s105
    %p109 = scmp.eq.s32.totalorder %s13, 0
    %p110 = por %p108, %p109
    %p111 = scmp.ne.s32.totalorder %s103, %s105
    %p112 = scmp.eq.s32.totalorder %s18, 1
    %p113 = por %p111, %p112
    %p114 = scmp.ne.s32.totalorder %s105, %s106
    %p115 = scmp.eq.s32.totalorder %s18, 0
    %p116 = por %p114, %p115
    %p117 = scmp.ne.s32.totalorder %s105, %s106
    %p118 = scmp.eq.s32.totalorder %s19, 1
    %p119 = por %p117, %p118
    %p121 = scmp.ne.s32.totalorder %s106, %s120
    %p122 = scmp.eq.s32.totalorder %s19, 0
    %p123 = por %p121, %p122
    %s124 = sadd.s32 %s20, %s21
    %s125 = sadd.s32 %s32, %s28
    %s126 = ssub.s32 %s124, %s125
    %p127 = scmp.eq.s32.totalorder %s126, 0
    %s129 = sadd.s32 %s128, 1
    %s130 = scalar_select %p127, %s128, %s129
    %p133 = pneg %p127
    %p134 = scmp.eq.s32.totalorder %s13, 1
    %p135 = por %p133, %p134
    %p136 = scmp.ne.s32.totalorder %s128, %s131
    %p137 = scmp.eq.s32.totalorder %s13, 0
    %p138 = por %p136, %p137
    %p139 = scmp.ne.s32.totalorder %s128, %s131
    %p140 = scmp.eq.s32.totalorder %s18, 1
    %p141 = por %p139, %p140
    %p142 = scmp.ne.s32.totalorder %s131, %s132
    %p143 = scmp.eq.s32.totalorder %s18, 0
    %p144 = por %p142, %p143
    %p145 = scmp.ne.s32.totalorder %s131, %s132
    %p146 = scmp.eq.s32.totalorder %s19, 1
    %p147 = por %p145, %p146
    %p149 = scmp.ne.s32.totalorder %s132, %s148
    %p150 = scmp.eq.s32.totalorder %s19, 0
    %p151 = por %p149, %p150
    %s152 = ssub.s32 %s20, %s32
    %p153 = scmp.eq.s32.totalorder %s152, 0
    %s155 = sadd.s32 %s154, 1
    %s156 = scalar_select %p153, %s154, %s155
    %p159 = pneg %p153
    %p160 = scmp.eq.s32.totalorder %s13, 1
    %p161 = por %p159, %p160
    %p162 = scmp.ne.s32.totalorder %s154, %s157
    %p163 = scmp.eq.s32.totalorder %s13, 0
    %p164 = por %p162, %p163
    %p165 = scmp.ne.s32.totalorder %s154, %s157
    %p166 = scmp.eq.s32.totalorder %s18, 1
    %p167 = por %p165, %p166
    %p168 = scmp.ne.s32.totalorder %s157, %s158
    %p169 = scmp.eq.s32.totalorder %s18, 0
    %p170 = por %p168, %p169
    %p171 = scmp.ne.s32.totalorder %s157, %s158
    %p172 = scmp.eq.s32.totalorder %s19, 1
    %p173 = por %p171, %p172
    %p175 = scmp.ne.s32.totalorder %s158, %s174
    %p176 = scmp.eq.s32.totalorder %s19, 0
    %p177 = por %p175, %p176
    %s178 = ssub.s32 %s20, %s32
    %p179 = scmp.eq.s32.totalorder %s178, 0
    %s181 = sadd.s32 %s180, 1
    %s182 = scalar_select %p179, %s180, %s181
    %p185 = pneg %p179
    %p186 = scmp.eq.s32.totalorder %s13, 1
    %p187 = por %p185, %p186
    %p188 = scmp.ne.s32.totalorder %s180, %s183
    %p189 = scmp.eq.s32.totalorder %s13, 0
    %p190 = por %p188, %p189
    %p191 = scmp.ne.s32.totalorder %s180, %s183
    %p192 = scmp.eq.s32.totalorder %s18, 1
    %p193 = por %p191, %p192
    %p194 = scmp.ne.s32.totalorder %s183, %s184
    %p195 = scmp.eq.s32.totalorder %s18, 0
    %p196 = por %p194, %p195
    %p197 = scmp.ne.s32.totalorder %s183, %s184
    %p198 = scmp.eq.s32.totalorder %s19, 1
    %p199 = por %p197, %p198
    %p201 = scmp.ne.s32.totalorder %s184, %s200
    %p202 = scmp.eq.s32.totalorder %s19, 0
    %p203 = por %p201, %p202
    %p204 = scmp.le.s32.totalorder 1, %s13
    %p205 = scmp.lt.s32.totalorder %s13, 3
    %p206 = pnand %p204, %p205
    %p207 = pneg %p206
    // Predicated region
    $region9: #{bottleneck_pallas_nhwc.6} parent=5 // pred_check
      _
    $region10: #{bottleneck_pallas_nhwc.6} parent=5 // pred_check_branch
      %209 = sbr.rel (%p206) target = $region12
    $region11: #{bottleneck_pallas_nhwc.6} parent=5 // pred_region
      %s210 = ssub.s32 %s13, 1
      // Predicated region
      $region13: #{bottleneck_pallas_nhwc.6} parent=11 // pred_check
        %p211 = pneg %p74
      $region14: #{bottleneck_pallas_nhwc.6} parent=11 // pred_check_branch
        %213 = sbr.rel (%p211) target = $region16
      $region15: #{bottleneck_pallas_nhwc.6} parent=11 // pred_region
        _
      $region16: #{bottleneck_pallas_nhwc.6} parent=11 // pred_fallthru
        _
      // Predicated region
      $region17: #{bottleneck_pallas_nhwc.6} parent=11 // pred_check
        %p214 = pneg %p95
      $region18: #{bottleneck_pallas_nhwc.6} parent=11 // pred_check_branch
        %216 = sbr.rel (%p214) target = $region20
      $region19: #{bottleneck_pallas_nhwc.6} parent=11 // pred_region
        _
      $region20: #{bottleneck_pallas_nhwc.6} parent=11 // pred_fallthru
        _
      // Predicated region
      $region21: #{bottleneck_pallas_nhwc.6} parent=11 // pred_check
        %p217 = pneg %p116
      $region22: #{bottleneck_pallas_nhwc.6} parent=11 // pred_check_branch
        %219 = sbr.rel (%p217) target = $region24
      $region23: #{bottleneck_pallas_nhwc.6} parent=11 // pred_region
        _
      $region24: #{bottleneck_pallas_nhwc.6} parent=11 // pred_fallthru
        _
    $region12: #{bottleneck_pallas_nhwc.6} parent=5 // pred_fallthru
      _
    %p220 = scmp.lt.s32.totalorder %s13, 2
    // Predicated region
    $region25: #{bottleneck_pallas_nhwc.6} parent=5 // pred_check
      %p221 = pneg %p220
    $region26: #{bottleneck_pallas_nhwc.6} parent=5 // pred_check_branch
      %223 = sbr.rel (%p221) target = $region28
    $region27: #{bottleneck_pallas_nhwc.6} parent=5 // pred_region
      // Predicated region
      $region29: #{bottleneck_pallas_nhwc.6} parent=27 // pred_check
        %p224 = pneg %p47
      $region30: #{bottleneck_pallas_nhwc.6} parent=27 // pred_check_branch
        %226 = sbr.rel (%p224) target = $region32
      $region31: #{bottleneck_pallas_nhwc.6} parent=27 // pred_region
        %s227 = sadd.s32 %s20, %s21
        %s228 = smul.u32 8, %s227
        %p229 = scmp.lt.s32.totalorder %s228, 15
        %s230 = scalar_select %p229, %s228, 15
        %s231 = smul.addr %s230, 4
        %s232 = scalar_lea.vmem %s0, %s231
        %s233 = sadd.s32 %s20, %s21
        %s234 = smul.u32 8, %s233
      $region32: #{bottleneck_pallas_nhwc.6} parent=27 // pred_fallthru
        _
    $region28: #{bottleneck_pallas_nhwc.6} parent=5 // pred_fallthru
      _
    %p235 = scmp.le.s32.totalorder 1, %s13
    %p236 = scmp.lt.s32.totalorder %s13, 3
    %p237 = pnand %p235, %p236
    %p238 = pneg %p237
    // Predicated region
    $region33: #{bottleneck_pallas_nhwc.6} parent=5 // pred_check
      _
    $region34: #{bottleneck_pallas_nhwc.6} parent=5 // pred_check_branch
      %240 = sbr.rel (%p237) target = $region36
    $region35: #{bottleneck_pallas_nhwc.6} parent=5 // pred_region
      %s241 = ssub.s32 %s13, 1
      %s242 = sadd.s32 %s22, %s23
      %s243 = smul.u32 8, %s242
      %p244 = scmp.lt.s32.totalorder %s243, 15
      %s245 = scalar_select %p244, %s243, 15
      %s246 = smul.addr %s245, 4
      %s247 = scalar_lea.vmem %s0, %s246
      %p248 = pneg %p53
      %p249 = pneg %p50
      %p250 = pneg %p74
      %p251 = pneg %p71
      %p252 = pneg %p95
      %p253 = pneg %p92
      %p254 = pneg %p116
      %p255 = pneg %p113
      %p256 = pneg %p144
      %p257 = pneg %p141
      %s258 = sadd.s32 %s22, %s23
      %s259 = smul.u32 8, %s258
      %p260 = scmp.lt.s32.totalorder %s259, 15
      %s261 = scalar_select %p260, %s259, 15
      %s262 = smul.addr %s261, 4
      %s263 = scalar_lea.vmem %s4, %s262
      %p264 = pneg %p170
      %p265 = pneg %p167
      %p266 = scmp.lt.s32.totalorder %s22, 1
      %s267 = scalar_select %p266, %s22, 1
      %s268 = smul.addr %s267, 8
      %s269 = scalar_lea.vmem %s5, %s268
      %p270 = pneg %p196
      %p271 = pneg %p193
      %p272 = scmp.lt.s32.totalorder %s22, 1
      %s273 = scalar_select %p272, %s22, 1
      %s274 = smul.addr %s273, 8
      %s275 = scalar_lea.vmem %s6, %s274
      %s276 = sadd.s32 %s22, %s23
      %s277 = smul.u32 8, %s276
      %p278 = scmp.lt.s32.totalorder %s277, 15
      %s279 = scalar_select %p278, %s277, 15
      %s280 = smul.addr %s279, 4
      %s281 = scalar_lea.vmem %s0, %s280
      %s282 = sadd.s32 %s22, %s23
      %s283 = smul.u32 8, %s282
      %s284 = sadd.s32 %s22, %s23
      %s285 = smul.u32 8, %s284
      %p286 = scmp.lt.s32.totalorder %s285, 15
      %s287 = scalar_select %p286, %s285, 15
      %s288 = smul.addr %s287, 4
      %s289 = scalar_lea.vmem %s4, %s288
      %s290 = sadd.s32 %s22, %s23
      %s291 = smul.u32 8, %s290
      %p292 = scmp.lt.s32.totalorder %s22, 1
      %s293 = scalar_select %p292, %s22, 1
      %s294 = smul.addr %s293, 8
      %s295 = scalar_lea.vmem %s5, %s294
      %p296 = scmp.lt.s32.totalorder %s22, 1
      %s297 = scalar_select %p296, %s22, 1
      %s298 = smul.addr %s297, 8
      %s299 = scalar_lea.vmem %s6, %s298
      %v301 = vld [vmem:[%s281] sm:$0xf]
      %v302 = vld [vmem:[%s281 + $0x4] sm:$0xf]
      %v303 = vld [vmem:[%s281 + $0x8] sm:$0xf]
      %v304 = vld [vmem:[%s281 + $0xc] sm:$0xf]
      %v305 = vld [vmem:[%s281 + $0x10] sm:$0xf]
      %v306 = vld [vmem:[%s281 + $0x14] sm:$0xf]
      %v307 = vld [vmem:[%s281 + $0x18] sm:$0xf]
      %v308 = vld [vmem:[%s281 + $0x1c] sm:$0xf]
      %v309 = vunpack.c.l.bf16 %v301
      %v310 = vunpack.c.l.bf16 %v302
      %v311 = vunpack.c.l.bf16 %v303
      %v312 = vunpack.c.l.bf16 %v304
      %v313 = vunpack.c.l.bf16 %v305
      %v314 = vunpack.c.l.bf16 %v306
      %v315 = vunpack.c.l.bf16 %v307
      %v316 = vunpack.c.l.bf16 %v308
      %v317 = vld [vmem:[%s1] sm:$0x1]
      %v319 = vperm.slane %v317, 0
      %v321 = vmul.f32 %v309, %v319
      %v322 = vmul.f32 %v310, %v319
      %v323 = vmul.f32 %v311, %v319
      %v324 = vmul.f32 %v312, %v319
      %v325 = vmul.f32 %v313, %v319
      %v326 = vmul.f32 %v314, %v319
      %v327 = vmul.f32 %v315, %v319
      %v328 = vmul.f32 %v316, %v319
      %v329 = vld [vmem:[%s2] sm:$0x1]
      %v331 = vperm.slane %v329, 0
      %v333 = vadd.f32 %v321, %v331
      %v334 = vadd.f32 %v322, %v331
      %v335 = vadd.f32 %v323, %v331
      %v336 = vadd.f32 %v324, %v331
      %v337 = vadd.f32 %v325, %v331
      %v338 = vadd.f32 %v326, %v331
      %v339 = vadd.f32 %v327, %v331
      %v340 = vadd.f32 %v328, %v331
      %v341 = vmax.f32 %v333, 0.0
      %v342 = vmax.f32 %v334, 0.0
      %v343 = vmax.f32 %v335, 0.0
      %v344 = vmax.f32 %v336, 0.0
      %v345 = vmax.f32 %v337, 0.0
      %v346 = vmax.f32 %v338, 0.0
      %v347 = vmax.f32 %v339, 0.0
      %v348 = vmax.f32 %v340, 0.0
      %v349 = vpack.c.bf16 %v341, %v341
      %v350 = vpack.c.bf16 %v342, %v342
      %v351 = vpack.c.bf16 %v343, %v343
      %v352 = vpack.c.bf16 %v344, %v344
      %v353 = vpack.c.bf16 %v345, %v345
      %v354 = vpack.c.bf16 %v346, %v346
      %v355 = vpack.c.bf16 %v347, %v347
      %v356 = vpack.c.bf16 %v348, %v348
      %v357 = vld [vmem:[%s3] sm:$0xf]
      %v366 = vunpack.c.l.b16 %v349
      %v367 = vunpack.c.l.b16 %v350
      %v368 = vunpack.c.l.b16 %v351
      %v369 = vunpack.c.l.b16 %v352
      %v370 = vunpack.c.l.b16 %v353
      %v371 = vunpack.c.l.b16 %v354
      %v372 = vunpack.c.l.b16 %v355
      %v373 = vunpack.c.l.b16 %v356
      %v374 = vpack.c.b16 %v367, %v366
      %v375 = vpack.c.b16 %v369, %v368
      %v376 = vpack.c.b16 %v371, %v370
      %v377 = vpack.c.b16 %v373, %v372
      %vm378 = vcmask 64512
      %v380 = vsel %vm378, %v374, 0
      %v383 = vsel %vm378, %v375, 0
      %v386 = vsel %vm378, %v376, 0
      %v389 = vsel %vm378, %v377, 0
      %vm391 = vcmask 1043456
      %v393 = vsel %vm391, %v357, 0
      %395 = vmatpush.bf16.msra.mxu0 0
      %396 = vmatpush.bf16.msra.mxu0 0
      %397 = vmatpush.bf16.msra.mxu0 0
      %398 = vmatpush.bf16.msra.mxu0 0
      %399 = vmatpush.bf16.msra.mxu0 0
      %400 = vmatpush.bf16.msra.mxu0 0
      %401 = vmatpush.bf16.msra.mxu0 0
      %402 = vmatpush.bf16.msra.mxu0 %v393
      %403 = vmatmul.bf16.gmra.mxu0 %v380
      %v404 = vpop.f32.mrf.mxu0
      %v405 = vadd.f32 0.0, %v404
      %v406 = vpop.f32.mrf.mxu0
      %v407 = vadd.f32 0.0, %v406
      %408 = vmatmul.bf16.gmra.mxu0 %v383
      %v409 = vpop.f32.mrf.mxu0
      %v410 = vadd.f32 0.0, %v409
      %v411 = vpop.f32.mrf.mxu0
      %v412 = vadd.f32 0.0, %v411
      %413 = vmatmul.bf16.gmra.mxu0 %v386
      %v414 = vpop.f32.mrf.mxu0
      %v415 = vadd.f32 0.0, %v414
      %v416 = vpop.f32.mrf.mxu0
      %v417 = vadd.f32 0.0, %v416
      %418 = vmatmul.bf16.gmra.mxu0 %v389
      %v419 = vpop.f32.mrf.mxu0
      %v420 = vadd.f32 0.0, %v419
      %v421 = vpop.f32.mrf.mxu0
      %v422 = vadd.f32 0.0, %v421
      %423 = vdwg.mxu0
      %p424 = scmp.eq.s32.totalorder %s23, 0
      // Predicated region
      $region37: #{bottleneck_pallas_nhwc.6} parent=35 // pred_check
        %p425 = pneg %p424
      $region38: #{bottleneck_pallas_nhwc.6} parent=35 // pred_check_branch
        %427 = sbr.rel (%p425) target = $region40
      $region39: #{bottleneck_pallas_nhwc.6} parent=35 // pred_region
        %vm428 = vcmask 261120
        %429 = vst.msk [vmem:[%s295] sm:$0xff] %vm428, 0.0
        %430 = vst.msk [vmem:[%s299] sm:$0xff] %vm428, 0.0
      $region40: #{bottleneck_pallas_nhwc.6} parent=35 // pred_fallthru
        _
      %v431 = vld [vmem:[%s295] sm:$0xff]
      %vm432 = vcmask 261120
      %v433 = vsel %vm432, %v405, 0.0
      %v434 = vsel %vm432, %v407, 0.0
      %v435 = vadd.f32 %v433, %v434
      %v436 = vsel %vm432, %v410, 0.0
      %v437 = vadd.f32 %v435, %v436
      %v438 = vsel %vm432, %v412, 0.0
      %v439 = vadd.f32 %v437, %v438
      %v440 = vsel %vm432, %v415, 0.0
      %v441 = vadd.f32 %v439, %v440
      %v442 = vsel %vm432, %v417, 0.0
      %v443 = vadd.f32 %v441, %v442
      %v444 = vsel %vm432, %v420, 0.0
      %v445 = vadd.f32 %v443, %v444
      %v446 = vsel %vm432, %v422, 0.0
      %v447 = vadd.f32 %v445, %v446
      %v448 = vrot.slane %v447, 4
      %v449 = vadd.f32 %v447, %v448
      %v450 = vrot.slane %v449, 2
      %v451 = vadd.f32 %v449, %v450
      %v452 = vrot.slane %v451, 1
      %v453 = vadd.f32 %v451, %v452
      %v454 = vadd.f32 %v431, %v453
      %455 = vst.msk [vmem:[%s295] sm:$0xff] %vm432, %v454
      %v456 = vld [vmem:[%s299] sm:$0xff]
      %v457 = vmul.f32 %v405, %v405
      %v458 = vmul.f32 %v407, %v407
      %v459 = vmul.f32 %v410, %v410
      %v460 = vmul.f32 %v412, %v412
      %v461 = vmul.f32 %v415, %v415
      %v462 = vmul.f32 %v417, %v417
      %v463 = vmul.f32 %v420, %v420
      %v464 = vmul.f32 %v422, %v422
      %v465 = vsel %vm432, %v457, 0.0
      %v466 = vsel %vm432, %v458, 0.0
      %v467 = vadd.f32 %v465, %v466
      %v468 = vsel %vm432, %v459, 0.0
      %v469 = vadd.f32 %v467, %v468
      %v470 = vsel %vm432, %v460, 0.0
      %v471 = vadd.f32 %v469, %v470
      %v472 = vsel %vm432, %v461, 0.0
      %v473 = vadd.f32 %v471, %v472
      %v474 = vsel %vm432, %v462, 0.0
      %v475 = vadd.f32 %v473, %v474
      %v476 = vsel %vm432, %v463, 0.0
      %v477 = vadd.f32 %v475, %v476
      %v478 = vsel %vm432, %v464, 0.0
      %v479 = vadd.f32 %v477, %v478
      %v480 = vrot.slane %v479, 4
      %v481 = vadd.f32 %v479, %v480
      %v482 = vrot.slane %v481, 2
      %v483 = vadd.f32 %v481, %v482
      %v484 = vrot.slane %v483, 1
      %v485 = vadd.f32 %v483, %v484
      %v486 = vadd.f32 %v456, %v485
      %487 = vst.msk [vmem:[%s299] sm:$0xff] %vm432, %v486
      %v488 = vpack.c.bf16 %v405, %v405
      %v489 = vpack.c.bf16 %v407, %v407
      %v490 = vpack.c.bf16 %v410, %v410
      %v491 = vpack.c.bf16 %v412, %v412
      %v492 = vpack.c.bf16 %v415, %v415
      %v493 = vpack.c.bf16 %v417, %v417
      %v494 = vpack.c.bf16 %v420, %v420
      %v495 = vpack.c.bf16 %v422, %v422
      %vm496 = vcmask 257024
      %497 = vst.msk [vmem:[%s289] sm:$0xf] %vm496, %v488
      %498 = vst.msk [vmem:[%s289 + $0x4] sm:$0xf] %vm496, %v489
      %499 = vst.msk [vmem:[%s289 + $0x8] sm:$0xf] %vm496, %v490
      %500 = vst.msk [vmem:[%s289 + $0xc] sm:$0xf] %vm496, %v491
      %501 = vst.msk [vmem:[%s289 + $0x10] sm:$0xf] %vm496, %v492
      %502 = vst.msk [vmem:[%s289 + $0x14] sm:$0xf] %vm496, %v493
      %503 = vst.msk [vmem:[%s289 + $0x18] sm:$0xf] %vm496, %v494
      %504 = vst.msk [vmem:[%s289 + $0x1c] sm:$0xf] %vm496, %v495
      %s505 = sadd.s32 %s22, %s23
      %s506 = smul.u32 8, %s505
      %p507 = scmp.lt.s32.totalorder %s506, 15
      %s508 = scalar_select %p507, %s506, 15
      %s509 = smul.addr %s508, 4
      %s510 = scalar_lea.vmem %s4, %s509
      %p511 = scmp.lt.s32.totalorder %s22, 1
      %s512 = scalar_select %p511, %s22, 1
      %s513 = smul.addr %s512, 8
      %s514 = scalar_lea.vmem %s5, %s513
      %p515 = scmp.lt.s32.totalorder %s22, 1
      %s516 = scalar_select %p515, %s22, 1
      %s517 = smul.addr %s516, 8
      %s518 = scalar_lea.vmem %s6, %s517
      // Predicated region
      $region41: #{bottleneck_pallas_nhwc.6} parent=35 // pred_check
        %p519 = pneg %p141
      $region42: #{bottleneck_pallas_nhwc.6} parent=35 // pred_check_branch
        %521 = sbr.rel (%p519) target = $region44
      $region43: #{bottleneck_pallas_nhwc.6} parent=35 // pred_region
        %s522 = sadd.s32 %s22, %s23
        %s523 = smul.u32 8, %s522
      $region44: #{bottleneck_pallas_nhwc.6} parent=35 // pred_fallthru
        _
      // Predicated region
      $region45: #{bottleneck_pallas_nhwc.6} parent=35 // pred_check
        %p524 = pneg %p167
      $region46: #{bottleneck_pallas_nhwc.6} parent=35 // pred_check_branch
        %526 = sbr.rel (%p524) target = $region48
      $region47: #{bottleneck_pallas_nhwc.6} parent=35 // pred_region
        _
      $region48: #{bottleneck_pallas_nhwc.6} parent=35 // pred_fallthru
        _
      // Predicated region
      $region49: #{bottleneck_pallas_nhwc.6} parent=35 // pred_check
        %p527 = pneg %p193
      $region50: #{bottleneck_pallas_nhwc.6} parent=35 // pred_check_branch
        %529 = sbr.rel (%p527) target = $region52
      $region51: #{bottleneck_pallas_nhwc.6} parent=35 // pred_region
        _
      $region52: #{bottleneck_pallas_nhwc.6} parent=35 // pred_fallthru
        _
    $region36: #{bottleneck_pallas_nhwc.6} parent=5 // pred_fallthru
      _
    %p530 = scmp.le.s32.totalorder 2, %s13
    // Predicated region
    $region53: #{bottleneck_pallas_nhwc.6} parent=5 // pred_check
      %p531 = pneg %p530
    $region54: #{bottleneck_pallas_nhwc.6} parent=5 // pred_check_branch
      %533 = sbr.rel (%p531) target = $region56
    $region55: #{bottleneck_pallas_nhwc.6} parent=5 // pred_region
      %s534 = ssub.s32 %s13, 2
      // Predicated region
      $region57: #{bottleneck_pallas_nhwc.6} parent=55 // pred_check
        %p535 = pneg %p147
      $region58: #{bottleneck_pallas_nhwc.6} parent=55 // pred_check_branch
        %537 = sbr.rel (%p535) target = $region60
      $region59: #{bottleneck_pallas_nhwc.6} parent=55 // pred_region
        %s538 = sadd.s32 %s24, %s25
        %s539 = smul.u32 8, %s538
        %p540 = scmp.lt.s32.totalorder %s539, 15
        %s541 = scalar_select %p540, %s539, 15
        %s542 = smul.addr %s541, 4
        %s543 = scalar_lea.vmem %s4, %s542
      $region60: #{bottleneck_pallas_nhwc.6} parent=55 // pred_fallthru
        _
      // Predicated region
      $region61: #{bottleneck_pallas_nhwc.6} parent=55 // pred_check
        %p544 = pneg %p173
      $region62: #{bottleneck_pallas_nhwc.6} parent=55 // pred_check_branch
        %546 = sbr.rel (%p544) target = $region64
      $region63: #{bottleneck_pallas_nhwc.6} parent=55 // pred_region
        %p547 = scmp.lt.s32.totalorder %s24, 1
        %s548 = scalar_select %p547, %s24, 1
        %s549 = smul.addr %s548, 8
        %s550 = scalar_lea.vmem %s5, %s549
      $region64: #{bottleneck_pallas_nhwc.6} parent=55 // pred_fallthru
        _
      // Predicated region
      $region65: #{bottleneck_pallas_nhwc.6} parent=55 // pred_check
        %p551 = pneg %p199
      $region66: #{bottleneck_pallas_nhwc.6} parent=55 // pred_check_branch
        %553 = sbr.rel (%p551) target = $region68
      $region67: #{bottleneck_pallas_nhwc.6} parent=55 // pred_region
        %p554 = scmp.lt.s32.totalorder %s24, 1
        %s555 = scalar_select %p554, %s24, 1
        %s556 = smul.addr %s555, 8
        %s557 = scalar_lea.vmem %s6, %s556
      $region68: #{bottleneck_pallas_nhwc.6} parent=55 // pred_fallthru
        _
    $region56: #{bottleneck_pallas_nhwc.6} parent=5 // pred_fallthru
      _
  $region6: #{bottleneck_pallas_nhwc.6} parent=0 // loop_footer
    %s17 = sadd.s32 1, %s13
  $region7: #{bottleneck_pallas_nhwc.6} parent=0 // loop_footer_branch
    %12 = sbr.rel target = $region3
  $region8: #{bottleneck_pallas_nhwc.6} parent=0 // loop_exit
    _

// kernel: bottleneck_pallas_nhwc.7
$region0: #{bottleneck_pallas_nhwc.7}
  #allocation0 [shape = 'u32[]', space=smem, size = 0x4, offset = 0x4, fixed_abs, tag = 'smem constant byte address 0x4 - core index']
  #allocation1 [shape = 'u32[72,128]{1,0:T(1,128)}', space=vmem, size = 0x9000, scoped, tag = 'internal scratch']
  %s0 = inlined_call_operand.vmem [shape: bf16[16,8,32], index: 0, kind: input, shape index: {}]
  %s1 = inlined_call_operand.vmem [shape: bf16[16,8,32], index: 1, kind: input, shape index: {}]
  %s2 = inlined_call_operand.vmem [shape: f32[1,32], index: 2, kind: input, shape index: {}]
  %s3 = inlined_call_operand.vmem [shape: f32[1,32], index: 3, kind: input, shape index: {}]
  %s4 = inlined_call_operand.hbm [shape: f32[16,8,32], index: 4, kind: output, shape index: {}]
  %s5 = sld [smem:[#allocation0]]
  $region49: #{bottleneck_pallas_nhwc.7} parent=0
    _
  %s7 = ssub.s32 1, %s5
  %s8 = scalar_select 0, %s7, %s5
  $region1: #{bottleneck_pallas_nhwc.7} parent=0
    #allocation2 [shape = 'u8[65536]{0}', space=vmem, size = 0x10000, scoped, tag = 'output window, operand 0']
    #allocation3 [shape = 's32[2]{0}', space=sflag, size = 0x8, scoped, tag = 'scoped memory for bottleneck_pallas_nhwc.7']
    %9 = vsyncpa [#allocation3], 0
    %s10 = scalar_lea.sflag [#allocation3], 1
    %11 = vsyncpa %s10, 0
    loop: start=0, step=1, limit=4
    $region2: #{bottleneck_pallas_nhwc.7} parent=1 // loop_pre_header
      _
    $region3: #{bottleneck_pallas_nhwc.7} parent=1 // loop_header
      %s13 = sphi 0, %s17
      %p14 = scmp.ge.s32.totalorder %s13, 4
      %s20 = sphi 0, %s32
      %s21 = sphi 0, %s28
      %s22 = sphi 0, %s20
      %s23 = sphi 0, %s21
      %s24 = sphi 0, %s22
      %s25 = sphi 0, %s23
      %s37 = sphi 0, %s39
      %s40 = sphi 0, %s37
      %s41 = sphi 0, %s40
      %s57 = sphi 0, %s41
      %s65 = sphi 0, %s67
      %s68 = sphi 0, %s65
      %s69 = sphi 0, %s68
      %s85 = sphi 0, %s69
      %s89 = sphi 0, %s89
      %s91 = sphi 0, %s89
      %s92 = sphi 0, %s91
      %s106 = sphi 0, %s92
      %s110 = sphi 0, %s110
      %s112 = sphi 0, %s110
      %s113 = sphi 0, %s112
      %s127 = sphi 0, %s113
      %s135 = sphi 0, %s137
      %s138 = sphi 0, %s135
      %s139 = sphi 0, %s138
      %s155 = sphi 0, %s139
    $region4: #{bottleneck_pallas_nhwc.7} parent=1 // loop_header_branch
      %16 = sbr.rel (%p14) target = $region8
    $region5: #{bottleneck_pallas_nhwc.7} parent=1 // loop_body
      %s18 = ssub.s32 %s13, 1
      %s19 = ssub.s32 %s13, 2
      %s26 = sadd.s32 1, %s21
      %p27 = scmp.ge.s32.totalorder %s26, 1
      %s28 = scalar_select %p27, 0, %s26
      %s29 = sadd.s32 1, %s20
      %s30 = scalar_select %p27, %s29, %s20
      %p31 = scmp.ge.s32.totalorder %s30, 2
      %s32 = scalar_select %p31, 0, %s30
      %s33 = sadd.s32 %s20, %s21
      %s34 = sadd.s32 %s32, %s28
      %s35 = ssub.s32 %s33, %s34
      %p36 = scmp.eq.s32.totalorder %s35, 0
      %s38 = sadd.s32 %s37, 1
      %s39 = scalar_select %p36, %s37, %s38
      %p42 = pneg %p36
      %p43 = scmp.eq.s32.totalorder %s13, 1
      %p44 = por %p42, %p43
      %p45 = scmp.ne.s32.totalorder %s37, %s40
      %p46 = scmp.eq.s32.totalorder %s13, 0
      %p47 = por %p45, %p46
      %p48 = scmp.ne.s32.totalorder %s37, %s40
      %p49 = scmp.eq.s32.totalorder %s18, 1
      %p50 = por %p48, %p49
      %p51 = scmp.ne.s32.totalorder %s40, %s41
      %p52 = scmp.eq.s32.totalorder %s18, 0
      %p53 = por %p51, %p52
      %p54 = scmp.ne.s32.totalorder %s40, %s41
      %p55 = scmp.eq.s32.totalorder %s19, 1
      %p56 = por %p54, %p55
      %p58 = scmp.ne.s32.totalorder %s41, %s57
      %p59 = scmp.eq.s32.totalorder %s19, 0
      %p60 = por %p58, %p59
      %s61 = sadd.s32 %s20, %s21
      %s62 = sadd.s32 %s32, %s28
      %s63 = ssub.s32 %s61, %s62
      %p64 = scmp.eq.s32.totalorder %s63, 0
      %s66 = sadd.s32 %s65, 1
      %s67 = scalar_select %p64, %s65, %s66
      %p70 = pneg %p64
      %p71 = scmp.eq.s32.totalorder %s13, 1
      %p72 = por %p70, %p71
      %p73 = scmp.ne.s32.totalorder %s65, %s68
      %p74 = scmp.eq.s32.totalorder %s13, 0
      %p75 = por %p73, %p74
      %p76 = scmp.ne.s32.totalorder %s65, %s68
      %p77 = scmp.eq.s32.totalorder %s18, 1
      %p78 = por %p76, %p77
      %p79 = scmp.ne.s32.totalorder %s68, %s69
      %p80 = scmp.eq.s32.totalorder %s18, 0
      %p81 = por %p79, %p80
      %p82 = scmp.ne.s32.totalorder %s68, %s69
      %p83 = scmp.eq.s32.totalorder %s19, 1
      %p84 = por %p82, %p83
      %p86 = scmp.ne.s32.totalorder %s69, %s85
      %p87 = scmp.eq.s32.totalorder %s19, 0
      %p88 = por %p86, %p87
      %s90 = sadd.s32 %s89, 1
      %p93 = scmp.eq.s32.totalorder %s13, 1
      %p94 = scmp.ne.s32.totalorder %s89, %s91
      %p95 = scmp.eq.s32.totalorder %s13, 0
      %p96 = por %p94, %p95
      %p97 = scmp.ne.s32.totalorder %s89, %s91
      %p98 = scmp.eq.s32.totalorder %s18, 1
      %p99 = por %p97, %p98
      %p100 = scmp.ne.s32.totalorder %s91, %s92
      %p101 = scmp.eq.s32.totalorder %s18, 0
      %p102 = por %p100, %p101
      %p103 = scmp.ne.s32.totalorder %s91, %s92
      %p104 = scmp.eq.s32.totalorder %s19, 1
      %p105 = por %p103, %p104
      %p107 = scmp.ne.s32.totalorder %s92, %s106
      %p108 = scmp.eq.s32.totalorder %s19, 0
      %p109 = por %p107, %p108
      %s111 = sadd.s32 %s110, 1
      %p114 = scmp.eq.s32.totalorder %s13, 1
      %p115 = scmp.ne.s32.totalorder %s110, %s112
      %p116 = scmp.eq.s32.totalorder %s13, 0
      %p117 = por %p115, %p116
      %p118 = scmp.ne.s32.totalorder %s110, %s112
      %p119 = scmp.eq.s32.totalorder %s18, 1
      %p120 = por %p118, %p119
      %p121 = scmp.ne.s32.totalorder %s112, %s113
      %p122 = scmp.eq.s32.totalorder %s18, 0
      %p123 = por %p121, %p122
      %p124 = scmp.ne.s32.totalorder %s112, %s113
      %p125 = scmp.eq.s32.totalorder %s19, 1
      %p126 = por %p124, %p125
      %p128 = scmp.ne.s32.totalorder %s113, %s127
      %p129 = scmp.eq.s32.totalorder %s19, 0
      %p130 = por %p128, %p129
      %s131 = sadd.s32 %s20, %s21
      %s132 = sadd.s32 %s32, %s28
      %s133 = ssub.s32 %s131, %s132
      %p134 = scmp.eq.s32.totalorder %s133, 0
      %s136 = sadd.s32 %s135, 1
      %s137 = scalar_select %p134, %s135, %s136
      %p140 = pneg %p134
      %p141 = scmp.eq.s32.totalorder %s13, 1
      %p142 = por %p140, %p141
      %p143 = scmp.ne.s32.totalorder %s135, %s138
      %p144 = scmp.eq.s32.totalorder %s13, 0
      %p145 = por %p143, %p144
      %p146 = scmp.ne.s32.totalorder %s135, %s138
      %p147 = scmp.eq.s32.totalorder %s18, 1
      %p148 = por %p146, %p147
      %p149 = scmp.ne.s32.totalorder %s138, %s139
      %p150 = scmp.eq.s32.totalorder %s18, 0
      %p151 = por %p149, %p150
      %p152 = scmp.ne.s32.totalorder %s138, %s139
      %p153 = scmp.eq.s32.totalorder %s19, 1
      %p154 = por %p152, %p153
      %p156 = scmp.ne.s32.totalorder %s139, %s155
      %p157 = scmp.eq.s32.totalorder %s19, 0
      %p158 = por %p156, %p157
      %p159 = scmp.le.s32.totalorder 1, %s13
      %p160 = scmp.lt.s32.totalorder %s13, 3
      %p161 = pnand %p159, %p160
      %p162 = pneg %p161
      // Predicated region
      $region9: #{bottleneck_pallas_nhwc.7} parent=5 // pred_check
        _
      $region10: #{bottleneck_pallas_nhwc.7} parent=5 // pred_check_branch
        %164 = sbr.rel (%p161) target = $region12
      $region11: #{bottleneck_pallas_nhwc.7} parent=5 // pred_region
        %s165 = ssub.s32 %s13, 1
        // Predicated region
        $region13: #{bottleneck_pallas_nhwc.7} parent=11 // pred_check
          %p166 = pneg %p102
        $region14: #{bottleneck_pallas_nhwc.7} parent=11 // pred_check_branch
          %168 = sbr.rel (%p166) target = $region16
        $region15: #{bottleneck_pallas_nhwc.7} parent=11 // pred_region
          _
        $region16: #{bottleneck_pallas_nhwc.7} parent=11 // pred_fallthru
          _
        // Predicated region
        $region17: #{bottleneck_pallas_nhwc.7} parent=11 // pred_check
          %p169 = pneg %p123
        $region18: #{bottleneck_pallas_nhwc.7} parent=11 // pred_check_branch
          %171 = sbr.rel (%p169) target = $region20
        $region19: #{bottleneck_pallas_nhwc.7} parent=11 // pred_region
          _
        $region20: #{bottleneck_pallas_nhwc.7} parent=11 // pred_fallthru
          _
      $region12: #{bottleneck_pallas_nhwc.7} parent=5 // pred_fallthru
        _
      %p172 = scmp.lt.s32.totalorder %s13, 2
      // Predicated region
      $region21: #{bottleneck_pallas_nhwc.7} parent=5 // pred_check
        %p173 = pneg %p172
      $region22: #{bottleneck_pallas_nhwc.7} parent=5 // pred_check_branch
        %175 = sbr.rel (%p173) target = $region24
      $region23: #{bottleneck_pallas_nhwc.7} parent=5 // pred_region
        // Predicated region
        $region25: #{bottleneck_pallas_nhwc.7} parent=23 // pred_check
          %p176 = pneg %p47
        $region26: #{bottleneck_pallas_nhwc.7} parent=23 // pred_check_branch
          %178 = sbr.rel (%p176) target = $region28
        $region27: #{bottleneck_pallas_nhwc.7} parent=23 // pred_region
          %s179 = sadd.s32 %s20, %s21
          %s180 = smul.u32 8, %s179
          %p181 = scmp.lt.s32.totalorder %s180, 15
          %s182 = scalar_select %p181, %s180, 15
          %s183 = smul.addr %s182, 4
          %s184 = scalar_lea.vmem %s0, %s183
          %s185 = sadd.s32 %s20, %s21
          %s186 = smul.u32 8, %s185
        $region28: #{bottleneck_pallas_nhwc.7} parent=23 // pred_fallthru
          _
        // Predicated region
        $region29: #{bottleneck_pallas_nhwc.7} parent=23 // pred_check
          %p187 = pneg %p75
        $region30: #{bottleneck_pallas_nhwc.7} parent=23 // pred_check_branch
          %189 = sbr.rel (%p187) target = $region32
        $region31: #{bottleneck_pallas_nhwc.7} parent=23 // pred_region
          %s190 = sadd.s32 %s20, %s21
          %s191 = smul.u32 8, %s190
          %p192 = scmp.lt.s32.totalorder %s191, 15
          %s193 = scalar_select %p192, %s191, 15
          %s194 = smul.addr %s193, 4
          %s195 = scalar_lea.vmem %s1, %s194
          %s196 = sadd.s32 %s20, %s21
          %s197 = smul.u32 8, %s196
        $region32: #{bottleneck_pallas_nhwc.7} parent=23 // pred_fallthru
          _
      $region24: #{bottleneck_pallas_nhwc.7} parent=5 // pred_fallthru
        _
      %p198 = scmp.le.s32.totalorder 1, %s13
      %p199 = scmp.lt.s32.totalorder %s13, 3
      %p200 = pnand %p198, %p199
      %p201 = pneg %p200
      // Predicated region
      $region33: #{bottleneck_pallas_nhwc.7} parent=5 // pred_check
        _
      $region34: #{bottleneck_pallas_nhwc.7} parent=5 // pred_check_branch
        %203 = sbr.rel (%p200) target = $region36
      $region35: #{bottleneck_pallas_nhwc.7} parent=5 // pred_region
        %s204 = ssub.s32 %s13, 1
        %s205 = sadd.s32 %s22, %s23
        %s206 = smul.u32 8, %s205
        %p207 = scmp.lt.s32.totalorder %s206, 15
        %s208 = scalar_select %p207, %s206, 15
        %s209 = smul.addr %s208, 4
        %s210 = scalar_lea.vmem %s0, %s209
        %p211 = pneg %p53
        %p212 = pneg %p50
        %s213 = sadd.s32 %s22, %s23
        %s214 = smul.u32 8, %s213
        %p215 = scmp.lt.s32.totalorder %s214, 15
        %s216 = scalar_select %p215, %s214, 15
        %s217 = smul.addr %s216, 4
        %s218 = scalar_lea.vmem %s1, %s217
        %p219 = pneg %p81
        %p220 = pneg %p78
        %p221 = pneg %p102
        %p222 = pneg %p99
        %p223 = pneg %p123
        %p224 = pneg %p120
        %p225 = pneg %p151
        %p226 = pneg %p148
        %s227 = sand.u32 %s138, 1
        %s228 = scalar_lea.sflag [#allocation3], %s227
        %s229 = sand.u32 %s138, 1
        %s230 = smul.addr %s229, 64
        %s231 = scalar_lea.vmem [#allocation2], %s230
        %s232 = sadd.s32 %s22, %s23
        %s233 = smul.u32 8, %s232
        %p234 = scmp.lt.s32.totalorder %s233, 15
        %s235 = scalar_select %p234, %s233, 15
        %s236 = smul.addr %s235, 4
        %s237 = scalar_lea.vmem %s0, %s236
        %s238 = sadd.s32 %s22, %s23
        %s239 = smul.u32 8, %s238
        %s240 = sadd.s32 %s22, %s23
        %s241 = smul.u32 8, %s240
        %p242 = scmp.lt.s32.totalorder %s241, 15
        %s243 = scalar_select %p242, %s241, 15
        %s244 = smul.addr %s243, 4
        %s245 = scalar_lea.vmem %s1, %s244
        %s246 = sadd.s32 %s22, %s23
        %s247 = smul.u32 8, %s246
        %s248 = sadd.s32 %s22, %s23
        %s249 = smul.u32 8, %s248
        %v250 = vld [vmem:[%s237] sm:$0xf]
        %v251 = vld [vmem:[%s237 + $0x4] sm:$0xf]
        %v252 = vld [vmem:[%s237 + $0x8] sm:$0xf]
        %v253 = vld [vmem:[%s237 + $0xc] sm:$0xf]
        %v254 = vld [vmem:[%s237 + $0x10] sm:$0xf]
        %v255 = vld [vmem:[%s237 + $0x14] sm:$0xf]
        %v256 = vld [vmem:[%s237 + $0x18] sm:$0xf]
        %v257 = vld [vmem:[%s237 + $0x1c] sm:$0xf]
        %v258 = vunpack.c.l.bf16 %v250
        %v259 = vunpack.c.l.bf16 %v251
        %v260 = vunpack.c.l.bf16 %v252
        %v261 = vunpack.c.l.bf16 %v253
        %v262 = vunpack.c.l.bf16 %v254
        %v263 = vunpack.c.l.bf16 %v255
        %v264 = vunpack.c.l.bf16 %v256
        %v265 = vunpack.c.l.bf16 %v257
        %v266 = vld [vmem:[%s2] sm:$0x1]
        %v268 = vperm.slane %v266, 0
        %v270 = vmul.f32 %v258, %v268
        %v271 = vmul.f32 %v259, %v268
        %v272 = vmul.f32 %v260, %v268
        %v273 = vmul.f32 %v261, %v268
        %v274 = vmul.f32 %v262, %v268
        %v275 = vmul.f32 %v263, %v268
        %v276 = vmul.f32 %v264, %v268
        %v277 = vmul.f32 %v265, %v268
        %v278 = vld [vmem:[%s3] sm:$0x1]
        %v280 = vperm.slane %v278, 0
        %v282 = vadd.f32 %v270, %v280
        %v283 = vadd.f32 %v271, %v280
        %v284 = vadd.f32 %v272, %v280
        %v285 = vadd.f32 %v273, %v280
        %v286 = vadd.f32 %v274, %v280
        %v287 = vadd.f32 %v275, %v280
        %v288 = vadd.f32 %v276, %v280
        %v289 = vadd.f32 %v277, %v280
        %v290 = vld [vmem:[%s245] sm:$0xf]
        %v291 = vld [vmem:[%s245 + $0x4] sm:$0xf]
        %v292 = vld [vmem:[%s245 + $0x8] sm:$0xf]
        %v293 = vld [vmem:[%s245 + $0xc] sm:$0xf]
        %v294 = vld [vmem:[%s245 + $0x10] sm:$0xf]
        %v295 = vld [vmem:[%s245 + $0x14] sm:$0xf]
        %v296 = vld [vmem:[%s245 + $0x18] sm:$0xf]
        %v297 = vld [vmem:[%s245 + $0x1c] sm:$0xf]
        %v298 = vunpack.c.l.bf16 %v290
        %v299 = vunpack.c.l.bf16 %v291
        %v300 = vunpack.c.l.bf16 %v292
        %v301 = vunpack.c.l.bf16 %v293
        %v302 = vunpack.c.l.bf16 %v294
        %v303 = vunpack.c.l.bf16 %v295
        %v304 = vunpack.c.l.bf16 %v296
        %v305 = vunpack.c.l.bf16 %v297
        %v306 = vadd.f32 %v282, %v298
        %v307 = vadd.f32 %v283, %v299
        %v308 = vadd.f32 %v284, %v300
        %v309 = vadd.f32 %v285, %v301
        %v310 = vadd.f32 %v286, %v302
        %v311 = vadd.f32 %v287, %v303
        %v312 = vadd.f32 %v288, %v304
        %v313 = vadd.f32 %v289, %v305
        %v314 = vmax.f32 %v306, 0.0
        %v315 = vmax.f32 %v307, 0.0
        %v316 = vmax.f32 %v308, 0.0
        %v317 = vmax.f32 %v309, 0.0
        %v318 = vmax.f32 %v310, 0.0
        %v319 = vmax.f32 %v311, 0.0
        %v320 = vmax.f32 %v312, 0.0
        %v321 = vmax.f32 %v313, 0.0
        %vm322 = vcmask 261120
        %323 = vst.msk [vmem:[%s231] sm:$0xff] %vm322, %v314
        %324 = vst.msk [vmem:[%s231 + $0x8] sm:$0xff] %vm322, %v315
        %325 = vst.msk [vmem:[%s231 + $0x10] sm:$0xff] %vm322, %v316
        %326 = vst.msk [vmem:[%s231 + $0x18] sm:$0xff] %vm322, %v317
        %327 = vst.msk [vmem:[%s231 + $0x20] sm:$0xff] %vm322, %v318
        %328 = vst.msk [vmem:[%s231 + $0x28] sm:$0xff] %vm322, %v319
        %329 = vst.msk [vmem:[%s231 + $0x30] sm:$0xff] %vm322, %v320
        %330 = vst.msk [vmem:[%s231 + $0x38] sm:$0xff] %vm322, %v321
        %s331 = sand.u32 %s138, 1
        %s332 = scalar_lea.sflag [#allocation3], %s331
        %s333 = sand.u32 %s138, 1
        %s334 = smul.addr %s333, 64
        %s335 = scalar_lea.vmem [#allocation2], %s334
        // Predicated region
        $region37: #{bottleneck_pallas_nhwc.7} parent=35 // pred_check
          %p336 = pneg %p148
        $region38: #{bottleneck_pallas_nhwc.7} parent=35 // pred_check_branch
          %338 = sbr.rel (%p336) target = $region40
        $region39: #{bottleneck_pallas_nhwc.7} parent=35 // pred_region
          %s339 = sadd.s32 %s22, %s23
          %s340 = smul.u32 8, %s339
          %342 = vsyncadd %s332, 0
          %s343 = smul.addr %s340, 8
          %s344 = scalar_lea.hbm %s4, %s343
          %s345 = sshll.u32 %s335, 4
          %s346 = int_to_ptr.vmem [resolvable:$true] %s345
          %s347 = sshll.u32 %s344, 4
          %s348 = int_to_ptr.hbm [resolvable:$true] %s347
          %353 = dma.vmem_to_hbm [thread:$0]  %s346, 1024, %s348, %s332, 128, 128, 8
        $region40: #{bottleneck_pallas_nhwc.7} parent=35 // pred_fallthru
          _
      $region36: #{bottleneck_pallas_nhwc.7} parent=5 // pred_fallthru
        _
      %p354 = scmp.le.s32.totalorder 2, %s13
      // Predicated region
      $region41: #{bottleneck_pallas_nhwc.7} parent=5 // pred_check
        %p355 = pneg %p354
      $region42: #{bottleneck_pallas_nhwc.7} parent=5 // pred_check_branch
        %357 = sbr.rel (%p355) target = $region44
      $region43: #{bottleneck_pallas_nhwc.7} parent=5 // pred_region
        %s358 = ssub.s32 %s13, 2
        // Predicated region
        $region45: #{bottleneck_pallas_nhwc.7} parent=43 // pred_check
          %p359 = pneg %p154
        $region46: #{bottleneck_pallas_nhwc.7} parent=43 // pred_check_branch
          %361 = sbr.rel (%p359) target = $region48
        $region47: #{bottleneck_pallas_nhwc.7} parent=43 // pred_region
          %s362 = sand.u32 %s139, 1
          %s363 = scalar_lea.sflag [#allocation3], %s362
          %s364 = sand.u32 %s139, 1
          %s365 = smul.addr %s364, 64
          %s366 = scalar_lea.vmem [#allocation2], %s365
          %368 = dma.done %s363, 1024
        $region48: #{bottleneck_pallas_nhwc.7} parent=43 // pred_fallthru
          _
      $region44: #{bottleneck_pallas_nhwc.7} parent=5 // pred_fallthru
        _
    $region6: #{bottleneck_pallas_nhwc.7} parent=1 // loop_footer
      %s17 = sadd.s32 1, %s13
    $region7: #{bottleneck_pallas_nhwc.7} parent=1 // loop_footer_branch
      %12 = sbr.rel target = $region3
    $region8: #{bottleneck_pallas_nhwc.7} parent=1 // loop_exit
      _
    %369 = vsyncpa [#allocation3], 1
    %s370 = scalar_lea.sflag [#allocation3], 1
    %371 = vsyncpa %s370, 1

// kernel: bottleneck_pallas_nhwc.5
$region0: #{bottleneck_pallas_nhwc.5}
  #allocation0 [shape = 'u32[]', space=smem, size = 0x4, offset = 0x4, fixed_abs, tag = 'smem constant byte address 0x4 - core index']
  #allocation1 [shape = 'u32[72,128]{1,0:T(1,128)}', space=vmem, size = 0x9000, scoped, tag = 'internal scratch']
  %s0 = inlined_call_operand.vmem [shape: bf16[16,8,8], index: 0, kind: input, shape index: {}, may-alias: {0,1,2}]
  %s1 = inlined_call_operand.vmem [shape: bf16[16,8,8], index: 1, kind: input, shape index: {}, may-alias: {0,1,2}]
  %s2 = inlined_call_operand.vmem [shape: bf16[16,8,8], index: 2, kind: input, shape index: {}, may-alias: {0,1,2}]
  %s3 = inlined_call_operand.vmem [shape: f32[1,8], index: 3, kind: input, shape index: {}]
  %s4 = inlined_call_operand.vmem [shape: f32[1,8], index: 4, kind: input, shape index: {}]
  %s5 = inlined_call_operand.vmem [shape: bf16[3,24,8], index: 5, kind: input, shape index: {}]
  %s6 = inlined_call_operand.vmem [shape: bf16[16,8,8], index: 6, kind: output, shape index: {0}]
  %s7 = inlined_call_operand.vmem [shape: f32[2,8,8], index: 7, kind: output, shape index: {1}]
  %s8 = inlined_call_operand.vmem [shape: f32[2,8,8], index: 8, kind: output, shape index: {2}]
  %9 = xla_tuple %s6, %s7, %s8
  %s10 = sld [smem:[#allocation0]]
  $region77: #{bottleneck_pallas_nhwc.5} parent=0
    _
  %s12 = ssub.s32 1, %s10
  %s13 = scalar_select 0, %s12, %s10
  loop: start=0, step=1, limit=4
  $region2: #{bottleneck_pallas_nhwc.5} parent=0 // loop_pre_header
    _
  $region3: #{bottleneck_pallas_nhwc.5} parent=0 // loop_header
    %s15 = sphi 0, %s19
    %p16 = scmp.ge.s32.totalorder %s15, 4
    %s22 = sphi 0, %s34
    %s23 = sphi 0, %s30
    %s24 = sphi 0, %s22
    %s25 = sphi 0, %s23
    %s26 = sphi 0, %s24
    %s27 = sphi 0, %s25
    %s39 = sphi 0, %s41
    %s42 = sphi 0, %s39
    %s43 = sphi 0, %s42
    %s59 = sphi 0, %s43
    %s77 = sphi 0, %s79
    %s80 = sphi 0, %s77
    %s81 = sphi 0, %s80
    %s97 = sphi 0, %s81
    %s115 = sphi 0, %s117
    %s118 = sphi 0, %s115
    %s119 = sphi 0, %s118
    %s135 = sphi 0, %s119
    %s139 = sphi 0, %s139
    %s141 = sphi 0, %s139
    %s142 = sphi 0, %s141
    %s156 = sphi 0, %s142
    %s160 = sphi 0, %s160
    %s162 = sphi 0, %s160
    %s163 = sphi 0, %s162
    %s177 = sphi 0, %s163
    %s181 = sphi 0, %s181
    %s183 = sphi 0, %s181
    %s184 = sphi 0, %s183
    %s198 = sphi 0, %s184
    %s206 = sphi 0, %s208
    %s209 = sphi 0, %s206
    %s210 = sphi 0, %s209
    %s226 = sphi 0, %s210
    %s232 = sphi 0, %s234
    %s235 = sphi 0, %s232
    %s236 = sphi 0, %s235
    %s252 = sphi 0, %s236
    %s258 = sphi 0, %s260
    %s261 = sphi 0, %s258
    %s262 = sphi 0, %s261
    %s278 = sphi 0, %s262
  $region4: #{bottleneck_pallas_nhwc.5} parent=0 // loop_header_branch
    %18 = sbr.rel (%p16) target = $region8
  $region5: #{bottleneck_pallas_nhwc.5} parent=0 // loop_body
    %s20 = ssub.s32 %s15, 1
    %s21 = ssub.s32 %s15, 2
    %s28 = sadd.s32 1, %s23
    %p29 = scmp.ge.s32.totalorder %s28, 1
    %s30 = scalar_select %p29, 0, %s28
    %s31 = sadd.s32 1, %s22
    %s32 = scalar_select %p29, %s31, %s22
    %p33 = scmp.ge.s32.totalorder %s32, 2
    %s34 = scalar_select %p33, 0, %s32
    %s35 = sadd.s32 %s22, %s23
    %s36 = sadd.s32 %s34, %s30
    %s37 = ssub.s32 %s35, %s36
    %p38 = scmp.eq.s32.totalorder %s37, 0
    %s40 = sadd.s32 %s39, 1
    %s41 = scalar_select %p38, %s39, %s40
    %p44 = pneg %p38
    %p45 = scmp.eq.s32.totalorder %s15, 1
    %p46 = por %p44, %p45
    %p47 = scmp.ne.s32.totalorder %s39, %s42
    %p48 = scmp.eq.s32.totalorder %s15, 0
    %p49 = por %p47, %p48
    %p50 = scmp.ne.s32.totalorder %s39, %s42
    %p51 = scmp.eq.s32.totalorder %s20, 1
    %p52 = por %p50, %p51
    %p53 = scmp.ne.s32.totalorder %s42, %s43
    %p54 = scmp.eq.s32.totalorder %s20, 0
    %p55 = por %p53, %p54
    %p56 = scmp.ne.s32.totalorder %s42, %s43
    %p57 = scmp.eq.s32.totalorder %s21, 1
    %p58 = por %p56, %p57
    %p60 = scmp.ne.s32.totalorder %s43, %s59
    %p61 = scmp.eq.s32.totalorder %s21, 0
    %p62 = por %p60, %p61
    %s63 = smul.u32 %s22, 8
    %s64 = smul.u32 %s23, 8
    %s65 = sadd.s32 %s63, %s64
    %s66 = ssub.s32 %s65, 1
    %p67 = scmp.gt.s32.totalorder %s66, 0
    %s68 = scalar_select %p67, %s66, 0
    %s69 = smul.u32 %s34, 8
    %s70 = smul.u32 %s30, 8
    %s71 = sadd.s32 %s69, %s70
    %s72 = ssub.s32 %s71, 1
    %p73 = scmp.gt.s32.totalorder %s72, 0
    %s74 = scalar_select %p73, %s72, 0
    %s75 = ssub.s32 %s68, %s74
    %p76 = scmp.eq.s32.totalorder %s75, 0
    %s78 = sadd.s32 %s77, 1
    %s79 = scalar_select %p76, %s77, %s78
    %p82 = pneg %p76
    %p83 = scmp.eq.s32.totalorder %s15, 1
    %p84 = por %p82, %p83
    %p85 = scmp.ne.s32.totalorder %s77, %s80
    %p86 = scmp.eq.s32.totalorder %s15, 0
    %p87 = por %p85, %p86
    %p88 = scmp.ne.s32.totalorder %s77, %s80
    %p89 = scmp.eq.s32.totalorder %s20, 1
    %p90 = por %p88, %p89
    %p91 = scmp.ne.s32.totalorder %s80, %s81
    %p92 = scmp.eq.s32.totalorder %s20, 0
    %p93 = por %p91, %p92
    %p94 = scmp.ne.s32.totalorder %s80, %s81
    %p95 = scmp.eq.s32.totalorder %s21, 1
    %p96 = por %p94, %p95
    %p98 = scmp.ne.s32.totalorder %s81, %s97
    %p99 = scmp.eq.s32.totalorder %s21, 0
    %p100 = por %p98, %p99
    %s101 = smul.u32 %s22, 8
    %s102 = sadd.s32 %s23, 1
    %s103 = smul.u32 %s102, 8
    %s104 = sadd.s32 %s101, %s103
    %p105 = scmp.lt.s32.totalorder %s104, 15
    %s106 = scalar_select %p105, %s104, 15
    %s107 = smul.u32 %s34, 8
    %s108 = sadd.s32 %s30, 1
    %s109 = smul.u32 %s108, 8
    %s110 = sadd.s32 %s107, %s109
    %p111 = scmp.lt.s32.totalorder %s110, 15
    %s112 = scalar_select %p111, %s110, 15
    %s113 = ssub.s32 %s106, %s112
    %p114 = scmp.eq.s32.totalorder %s113, 0
    %s116 = sadd.s32 %s115, 1
    %s117 = scalar_select %p114, %s115, %s116
    %p120 = pneg %p114
    %p121 = scmp.eq.s32.totalorder %s15, 1
    %p122 = por %p120, %p121
    %p123 = scmp.ne.s32.totalorder %s115, %s118
    %p124 = scmp.eq.s32.totalorder %s15, 0
    %p125 = por %p123, %p124
    %p126 = scmp.ne.s32.totalorder %s115, %s118
    %p127 = scmp.eq.s32.totalorder %s20, 1
    %p128 = por %p126, %p127
    %p129 = scmp.ne.s32.totalorder %s118, %s119
    %p130 = scmp.eq.s32.totalorder %s20, 0
    %p131 = por %p129, %p130
    %p132 = scmp.ne.s32.totalorder %s118, %s119
    %p133 = scmp.eq.s32.totalorder %s21, 1
    %p134 = por %p132, %p133
    %p136 = scmp.ne.s32.totalorder %s119, %s135
    %p137 = scmp.eq.s32.totalorder %s21, 0
    %p138 = por %p136, %p137
    %s140 = sadd.s32 %s139, 1
    %p143 = scmp.eq.s32.totalorder %s15, 1
    %p144 = scmp.ne.s32.totalorder %s139, %s141
    %p145 = scmp.eq.s32.totalorder %s15, 0
    %p146 = por %p144, %p145
    %p147 = scmp.ne.s32.totalorder %s139, %s141
    %p148 = scmp.eq.s32.totalorder %s20, 1
    %p149 = por %p147, %p148
    %p150 = scmp.ne.s32.totalorder %s141, %s142
    %p151 = scmp.eq.s32.totalorder %s20, 0
    %p152 = por %p150, %p151
    %p153 = scmp.ne.s32.totalorder %s141, %s142
    %p154 = scmp.eq.s32.totalorder %s21, 1
    %p155 = por %p153, %p154
    %p157 = scmp.ne.s32.totalorder %s142, %s156
    %p158 = scmp.eq.s32.totalorder %s21, 0
    %p159 = por %p157, %p158
    %s161 = sadd.s32 %s160, 1
    %p164 = scmp.eq.s32.totalorder %s15, 1
    %p165 = scmp.ne.s32.totalorder %s160, %s162
    %p166 = scmp.eq.s32.totalorder %s15, 0
    %p167 = por %p165, %p166
    %p168 = scmp.ne.s32.totalorder %s160, %s162
    %p169 = scmp.eq.s32.totalorder %s20, 1
    %p170 = por %p168, %p169
    %p171 = scmp.ne.s32.totalorder %s162, %s163
    %p172 = scmp.eq.s32.totalorder %s20, 0
    %p173 = por %p171, %p172
    %p174 = scmp.ne.s32.totalorder %s162, %s163
    %p175 = scmp.eq.s32.totalorder %s21, 1
    %p176 = por %p174, %p175
    %p178 = scmp.ne.s32.totalorder %s163, %s177
    %p179 = scmp.eq.s32.totalorder %s21, 0
    %p180 = por %p178, %p179
    %s182 = sadd.s32 %s181, 1
    %p185 = scmp.eq.s32.totalorder %s15, 1
    %p186 = scmp.ne.s32.totalorder %s181, %s183
    %p187 = scmp.eq.s32.totalorder %s15, 0
    %p188 = por %p186, %p187
    %p189 = scmp.ne.s32.totalorder %s181, %s183
    %p190 = scmp.eq.s32.totalorder %s20, 1
    %p191 = por %p189, %p190
    %p192 = scmp.ne.s32.totalorder %s183, %s184
    %p193 = scmp.eq.s32.totalorder %s20, 0
    %p194 = por %p192, %p193
    %p195 = scmp.ne.s32.totalorder %s183, %s184
    %p196 = scmp.eq.s32.totalorder %s21, 1
    %p197 = por %p195, %p196
    %p199 = scmp.ne.s32.totalorder %s184, %s198
    %p200 = scmp.eq.s32.totalorder %s21, 0
    %p201 = por %p199, %p200
    %s202 = sadd.s32 %s22, %s23
    %s203 = sadd.s32 %s34, %s30
    %s204 = ssub.s32 %s202, %s203
    %p205 = scmp.eq.s32.totalorder %s204, 0
    %s207 = sadd.s32 %s206, 1
    %s208 = scalar_select %p205, %s206, %s207
    %p211 = pneg %p205
    %p212 = scmp.eq.s32.totalorder %s15, 1
    %p213 = por %p211, %p212
    %p214 = scmp.ne.s32.totalorder %s206, %s209
    %p215 = scmp.eq.s32.totalorder %s15, 0
    %p216 = por %p214, %p215
    %p217 = scmp.ne.s32.totalorder %s206, %s209
    %p218 = scmp.eq.s32.totalorder %s20, 1
    %p219 = por %p217, %p218
    %p220 = scmp.ne.s32.totalorder %s209, %s210
    %p221 = scmp.eq.s32.totalorder %s20, 0
    %p222 = por %p220, %p221
    %p223 = scmp.ne.s32.totalorder %s209, %s210
    %p224 = scmp.eq.s32.totalorder %s21, 1
    %p225 = por %p223, %p224
    %p227 = scmp.ne.s32.totalorder %s210, %s226
    %p228 = scmp.eq.s32.totalorder %s21, 0
    %p229 = por %p227, %p228
    %s230 = ssub.s32 %s22, %s34
    %p231 = scmp.eq.s32.totalorder %s230, 0
    %s233 = sadd.s32 %s232, 1
    %s234 = scalar_select %p231, %s232, %s233
    %p237 = pneg %p231
    %p238 = scmp.eq.s32.totalorder %s15, 1
    %p239 = por %p237, %p238
    %p240 = scmp.ne.s32.totalorder %s232, %s235
    %p241 = scmp.eq.s32.totalorder %s15, 0
    %p242 = por %p240, %p241
    %p243 = scmp.ne.s32.totalorder %s232, %s235
    %p244 = scmp.eq.s32.totalorder %s20, 1
    %p245 = por %p243, %p244
    %p246 = scmp.ne.s32.totalorder %s235, %s236
    %p247 = scmp.eq.s32.totalorder %s20, 0
    %p248 = por %p246, %p247
    %p249 = scmp.ne.s32.totalorder %s235, %s236
    %p250 = scmp.eq.s32.totalorder %s21, 1
    %p251 = por %p249, %p250
    %p253 = scmp.ne.s32.totalorder %s236, %s252
    %p254 = scmp.eq.s32.totalorder %s21, 0
    %p255 = por %p253, %p254
    %s256 = ssub.s32 %s22, %s34
    %p257 = scmp.eq.s32.totalorder %s256, 0
    %s259 = sadd.s32 %s258, 1
    %s260 = scalar_select %p257, %s258, %s259
    %p263 = pneg %p257
    %p264 = scmp.eq.s32.totalorder %s15, 1
    %p265 = por %p263, %p264
    %p266 = scmp.ne.s32.totalorder %s258, %s261
    %p267 = scmp.eq.s32.totalorder %s15, 0
    %p268 = por %p266, %p267
    %p269 = scmp.ne.s32.totalorder %s258, %s261
    %p270 = scmp.eq.s32.totalorder %s20, 1
    %p271 = por %p269, %p270
    %p272 = scmp.ne.s32.totalorder %s261, %s262
    %p273 = scmp.eq.s32.totalorder %s20, 0
    %p274 = por %p272, %p273
    %p275 = scmp.ne.s32.totalorder %s261, %s262
    %p276 = scmp.eq.s32.totalorder %s21, 1
    %p277 = por %p275, %p276
    %p279 = scmp.ne.s32.totalorder %s262, %s278
    %p280 = scmp.eq.s32.totalorder %s21, 0
    %p281 = por %p279, %p280
    %p282 = scmp.le.s32.totalorder 1, %s15
    %p283 = scmp.lt.s32.totalorder %s15, 3
    %p284 = pnand %p282, %p283
    %p285 = pneg %p284
    // Predicated region
    $region9: #{bottleneck_pallas_nhwc.5} parent=5 // pred_check
      _
    $region10: #{bottleneck_pallas_nhwc.5} parent=5 // pred_check_branch
      %287 = sbr.rel (%p284) target = $region12
    $region11: #{bottleneck_pallas_nhwc.5} parent=5 // pred_region
      %s288 = ssub.s32 %s15, 1
      // Predicated region
      $region13: #{bottleneck_pallas_nhwc.5} parent=11 // pred_check
        %p289 = pneg %p152
      $region14: #{bottleneck_pallas_nhwc.5} parent=11 // pred_check_branch
        %291 = sbr.rel (%p289) target = $region16
      $region15: #{bottleneck_pallas_nhwc.5} parent=11 // pred_region
        _
      $region16: #{bottleneck_pallas_nhwc.5} parent=11 // pred_fallthru
        _
      // Predicated region
      $region17: #{bottleneck_pallas_nhwc.5} parent=11 // pred_check
        %p292 = pneg %p173
      $region18: #{bottleneck_pallas_nhwc.5} parent=11 // pred_check_branch
        %294 = sbr.rel (%p292) target = $region20
      $region19: #{bottleneck_pallas_nhwc.5} parent=11 // pred_region
        _
      $region20: #{bottleneck_pallas_nhwc.5} parent=11 // pred_fallthru
        _
      // Predicated region
      $region21: #{bottleneck_pallas_nhwc.5} parent=11 // pred_check
        %p295 = pneg %p194
      $region22: #{bottleneck_pallas_nhwc.5} parent=11 // pred_check_branch
        %297 = sbr.rel (%p295) target = $region24
      $region23: #{bottleneck_pallas_nhwc.5} parent=11 // pred_region
        _
      $region24: #{bottleneck_pallas_nhwc.5} parent=11 // pred_fallthru
        _
    $region12: #{bottleneck_pallas_nhwc.5} parent=5 // pred_fallthru
      _
    %p298 = scmp.lt.s32.totalorder %s15, 2
    // Predicated region
    $region25: #{bottleneck_pallas_nhwc.5} parent=5 // pred_check
      %p299 = pneg %p298
    $region26: #{bottleneck_pallas_nhwc.5} parent=5 // pred_check_branch
      %301 = sbr.rel (%p299) target = $region28
    $region27: #{bottleneck_pallas_nhwc.5} parent=5 // pred_region
      // Predicated region
      $region29: #{bottleneck_pallas_nhwc.5} parent=27 // pred_check
        %p302 = pneg %p49
      $region30: #{bottleneck_pallas_nhwc.5} parent=27 // pred_check_branch
        %304 = sbr.rel (%p302) target = $region32
      $region31: #{bottleneck_pallas_nhwc.5} parent=27 // pred_region
        %s305 = sadd.s32 %s22, %s23
        %s306 = smul.u32 8, %s305
        %p307 = scmp.lt.s32.totalorder %s306, 15
        %s308 = scalar_select %p307, %s306, 15
        %s309 = smul.addr %s308, 4
        %s310 = scalar_lea.vmem %s0, %s309
        %s311 = sadd.s32 %s22, %s23
        %s312 = smul.u32 8, %s311
      $region32: #{bottleneck_pallas_nhwc.5} parent=27 // pred_fallthru
        _
      // Predicated region
      $region33: #{bottleneck_pallas_nhwc.5} parent=27 // pred_check
        %p313 = pneg %p87
      $region34: #{bottleneck_pallas_nhwc.5} parent=27 // pred_check_branch
        %315 = sbr.rel (%p313) target = $region36
      $region35: #{bottleneck_pallas_nhwc.5} parent=27 // pred_region
        %s316 = smul.u32 %s22, 8
        %s317 = smul.u32 %s23, 8
        %s318 = sadd.s32 %s316, %s317
        %s319 = ssub.s32 %s318, 1
        %p320 = scmp.gt.s32.totalorder %s319, 0
        %s321 = scalar_select %p320, %s319, 0
        %p322 = scmp.lt.s32.totalorder %s321, 15
        %s323 = scalar_select %p322, %s321, 15
        %s324 = smul.addr %s323, 4
        %s325 = scalar_lea.vmem %s1, %s324
        %s326 = smul.u32 %s22, 8
        %s327 = smul.u32 %s23, 8
        %s328 = sadd.s32 %s326, %s327
        %s329 = ssub.s32 %s328, 1
        %p330 = scmp.gt.s32.totalorder %s329, 0
        %s331 = scalar_select %p330, %s329, 0
      $region36: #{bottleneck_pallas_nhwc.5} parent=27 // pred_fallthru
        _
      // Predicated region
      $region37: #{bottleneck_pallas_nhwc.5} parent=27 // pred_check
        %p332 = pneg %p125
      $region38: #{bottleneck_pallas_nhwc.5} parent=27 // pred_check_branch
        %334 = sbr.rel (%p332) target = $region40
      $region39: #{bottleneck_pallas_nhwc.5} parent=27 // pred_region
        %s335 = smul.u32 %s22, 8
        %s336 = sadd.s32 %s23, 1
        %s337 = smul.u32 %s336, 8
        %s338 = sadd.s32 %s335, %s337
        %p339 = scmp.lt.s32.totalorder %s338, 15
        %s340 = scalar_select %p339, %s338, 15
        %p341 = scmp.lt.s32.totalorder %s340, 15
        %s342 = scalar_select %p341, %s340, 15
        %s343 = smul.addr %s342, 4
        %s344 = scalar_lea.vmem %s2, %s343
        %s345 = smul.u32 %s22, 8
        %s346 = sadd.s32 %s23, 1
        %s347 = smul.u32 %s346, 8
        %s348 = sadd.s32 %s345, %s347
        %p349 = scmp.lt.s32.totalorder %s348, 15
        %s350 = scalar_select %p349, %s348, 15
      $region40: #{bottleneck_pallas_nhwc.5} parent=27 // pred_fallthru
        _
    $region28: #{bottleneck_pallas_nhwc.5} parent=5 // pred_fallthru
      _
    %p351 = scmp.le.s32.totalorder 1, %s15
    %p352 = scmp.lt.s32.totalorder %s15, 3
    %p353 = pnand %p351, %p352
    %p354 = pneg %p353
    // Predicated region
    $region41: #{bottleneck_pallas_nhwc.5} parent=5 // pred_check
      _
    $region42: #{bottleneck_pallas_nhwc.5} parent=5 // pred_check_branch
      %356 = sbr.rel (%p353) target = $region44
    $region43: #{bottleneck_pallas_nhwc.5} parent=5 // pred_region
      %s357 = ssub.s32 %s15, 1
      %s358 = sadd.s32 %s24, %s25
      %s359 = smul.u32 8, %s358
      %p360 = scmp.lt.s32.totalorder %s359, 15
      %s361 = scalar_select %p360, %s359, 15
      %s362 = smul.addr %s361, 4
      %s363 = scalar_lea.vmem %s0, %s362
      %p364 = pneg %p55
      %p365 = pneg %p52
      %s366 = smul.u32 %s24, 8
      %s367 = smul.u32 %s25, 8
      %s368 = sadd.s32 %s366, %s367
      %s369 = ssub.s32 %s368, 1
      %p370 = scmp.gt.s32.totalorder %s369, 0
      %s371 = scalar_select %p370, %s369, 0
      %p372 = scmp.lt.s32.totalorder %s371, 15
      %s373 = scalar_select %p372, %s371, 15
      %s374 = smul.addr %s373, 4
      %s375 = scalar_lea.vmem %s1, %s374
      %p376 = pneg %p93
      %p377 = pneg %p90
      %s378 = smul.u32 %s24, 8
      %s379 = sadd.s32 %s25, 1
      %s380 = smul.u32 %s379, 8
      %s381 = sadd.s32 %s378, %s380
      %p382 = scmp.lt.s32.totalorder %s381, 15
      %s383 = scalar_select %p382, %s381, 15
      %p384 = scmp.lt.s32.totalorder %s383, 15
      %s385 = scalar_select %p384, %s383, 15
      %s386 = smul.addr %s385, 4
      %s387 = scalar_lea.vmem %s2, %s386
      %p388 = pneg %p131
      %p389 = pneg %p128
      %p390 = pneg %p152
      %p391 = pneg %p149
      %p392 = pneg %p173
      %p393 = pneg %p170
      %p394 = pneg %p194
      %p395 = pneg %p191
      %p396 = pneg %p222
      %p397 = pneg %p219
      %s398 = sadd.s32 %s24, %s25
      %s399 = smul.u32 8, %s398
      %p400 = scmp.lt.s32.totalorder %s399, 15
      %s401 = scalar_select %p400, %s399, 15
      %s402 = smul.addr %s401, 4
      %s403 = scalar_lea.vmem %s6, %s402
      %p404 = pneg %p248
      %p405 = pneg %p245
      %p406 = scmp.lt.s32.totalorder %s24, 1
      %s407 = scalar_select %p406, %s24, 1
      %s408 = smul.addr %s407, 8
      %s409 = scalar_lea.vmem %s7, %s408
      %p410 = pneg %p274
      %p411 = pneg %p271
      %p412 = scmp.lt.s32.totalorder %s24, 1
      %s413 = scalar_select %p412, %s24, 1
      %s414 = smul.addr %s413, 8
      %s415 = scalar_lea.vmem %s8, %s414
      %s416 = sadd.s32 %s24, %s25
      %s417 = smul.u32 8, %s416
      %p418 = scmp.lt.s32.totalorder %s417, 15
      %s419 = scalar_select %p418, %s417, 15
      %s420 = smul.addr %s419, 4
      %s421 = scalar_lea.vmem %s0, %s420
      %s422 = sadd.s32 %s24, %s25
      %s423 = smul.u32 8, %s422
      %s424 = smul.u32 %s24, 8
      %s425 = smul.u32 %s25, 8
      %s426 = sadd.s32 %s424, %s425
      %s427 = ssub.s32 %s426, 1
      %p428 = scmp.gt.s32.totalorder %s427, 0
      %s429 = scalar_select %p428, %s427, 0
      %p430 = scmp.lt.s32.totalorder %s429, 15
      %s431 = scalar_select %p430, %s429, 15
      %s432 = smul.addr %s431, 4
      %s433 = scalar_lea.vmem %s1, %s432
      %s434 = smul.u32 %s24, 8
      %s435 = smul.u32 %s25, 8
      %s436 = sadd.s32 %s434, %s435
      %s437 = ssub.s32 %s436, 1
      %p438 = scmp.gt.s32.totalorder %s437, 0
      %s439 = scalar_select %p438, %s437, 0
      %s440 = smul.u32 %s24, 8
      %s441 = sadd.s32 %s25, 1
      %s442 = smul.u32 %s441, 8
      %s443 = sadd.s32 %s440, %s442
      %p444 = scmp.lt.s32.totalorder %s443, 15
      %s445 = scalar_select %p444, %s443, 15
      %p446 = scmp.lt.s32.totalorder %s445, 15
      %s447 = scalar_select %p446, %s445, 15
      %s448 = smul.addr %s447, 4
      %s449 = scalar_lea.vmem %s2, %s448
      %s450 = smul.u32 %s24, 8
      %s451 = sadd.s32 %s25, 1
      %s452 = smul.u32 %s451, 8
      %s453 = sadd.s32 %s450, %s452
      %p454 = scmp.lt.s32.totalorder %s453, 15
      %s455 = scalar_select %p454, %s453, 15
      %s456 = sadd.s32 %s24, %s25
      %s457 = smul.u32 8, %s456
      %p458 = scmp.lt.s32.totalorder %s457, 15
      %s459 = scalar_select %p458, %s457, 15
      %s460 = smul.addr %s459, 4
      %s461 = scalar_lea.vmem %s6, %s460
      %s462 = sadd.s32 %s24, %s25
      %s463 = smul.u32 8, %s462
      %p464 = scmp.lt.s32.totalorder %s24, 1
      %s465 = scalar_select %p464, %s24, 1
      %s466 = smul.addr %s465, 8
      %s467 = scalar_lea.vmem %s7, %s466
      %p468 = scmp.lt.s32.totalorder %s24, 1
      %s469 = scalar_select %p468, %s24, 1
      %s470 = smul.addr %s469, 8
      %s471 = scalar_lea.vmem %s8, %s470
      %v473 = vld [vmem:[%s3] sm:$0x1]
      %v474 = vld [vmem:[%s4] sm:$0x1]
      %p475 = scmp.gt.s32.totalorder %s25, 0
      %s476 = scalar_select %p475, 1, 0
      %s477 = scvt.s32.f32 %s476
      %p478 = scmp.lt.s32.totalorder %s25, 0
      %s479 = scalar_select %p478, 1, 0
      %s480 = scvt.s32.f32 %s479
      %v481 = vld [vmem:[%s433] sm:$0xf]
      %v482 = vunpack.c.l.bf16 %v481
      %v484 = vperm.slane %v473, 0
      %v486 = vmul.f32 %v482, %v484
      %v488 = vperm.slane %v474, 0
      %v490 = vadd.f32 %v486, %v488
      %v491 = vmax.f32 %v490, 0.0
      %v492 = vstv %s477
      %v493 = vmul.f32 %v491, %v492
      %v494 = vld [vmem:[%s421] sm:$0xf]
      %v495 = vld [vmem:[%s421 + $0x4] sm:$0xf]
      %v496 = vld [vmem:[%s421 + $0x8] sm:$0xf]
      %v497 = vld [vmem:[%s421 + $0xc] sm:$0xf]
      %v498 = vld [vmem:[%s421 + $0x10] sm:$0xf]
      %v499 = vld [vmem:[%s421 + $0x14] sm:$0xf]
      %v500 = vld [vmem:[%s421 + $0x18] sm:$0xf]
      %v501 = vld [vmem:[%s421 + $0x1c] sm:$0xf]
      %v502 = vunpack.c.l.bf16 %v494
      %v503 = vunpack.c.l.bf16 %v495
      %v504 = vunpack.c.l.bf16 %v496
      %v505 = vunpack.c.l.bf16 %v497
      %v506 = vunpack.c.l.bf16 %v498
      %v507 = vunpack.c.l.bf16 %v499
      %v508 = vunpack.c.l.bf16 %v500
      %v509 = vunpack.c.l.bf16 %v501
      %v510 = vmul.f32 %v502, %v484
      %v511 = vmul.f32 %v503, %v484
      %v512 = vmul.f32 %v504, %v484
      %v513 = vmul.f32 %v505, %v484
      %v514 = vmul.f32 %v506, %v484
      %v515 = vmul.f32 %v507, %v484
      %v516 = vmul.f32 %v508, %v484
      %v517 = vmul.f32 %v509, %v484
      %v518 = vadd.f32 %v510, %v488
      %v519 = vadd.f32 %v511, %v488
      %v520 = vadd.f32 %v512, %v488
      %v521 = vadd.f32 %v513, %v488
      %v522 = vadd.f32 %v514, %v488
      %v523 = vadd.f32 %v515, %v488
      %v524 = vadd.f32 %v516, %v488
      %v525 = vadd.f32 %v517, %v488
      %v526 = vmax.f32 %v518, 0.0
      %v527 = vmax.f32 %v519, 0.0
      %v528 = vmax.f32 %v520, 0.0
      %v529 = vmax.f32 %v521, 0.0
      %v530 = vmax.f32 %v522, 0.0
      %v531 = vmax.f32 %v523, 0.0
      %v532 = vmax.f32 %v524, 0.0
      %v533 = vmax.f32 %v525, 0.0
      %v534 = vld [vmem:[%s449] sm:$0xf]
      %v535 = vunpack.c.l.bf16 %v534
      %v536 = vmul.f32 %v535, %v484
      %v537 = vadd.f32 %v536, %v488
      %v538 = vmax.f32 %v537, 0.0
      %v539 = vstv %s480
      %v540 = vmul.f32 %v538, %v539
      %v541 = vpack.c.bf16 %v493, %v493
      %v542 = vpack.c.bf16 %v526, %v526
      %v543 = vpack.c.bf16 %v527, %v527
      %v544 = vpack.c.bf16 %v528, %v528
      %v545 = vpack.c.bf16 %v529, %v529
      %v546 = vpack.c.bf16 %v530, %v530
      %v547 = vpack.c.bf16 %v531, %v531
      %v548 = vpack.c.bf16 %v532, %v532
      %v549 = vpack.c.bf16 %v533, %v533
      %v550 = vpack.c.bf16 %v540, %v540
      %v561 = vunpack.c.l.b16 %v541
      %v562 = vunpack.c.l.b16 %v542
      %v563 = vunpack.c.l.b16 %v543
      %v564 = vunpack.c.l.b16 %v544
      %v565 = vunpack.c.l.b16 %v545
      %v566 = vunpack.c.l.b16 %v546
      %v567 = vunpack.c.l.b16 %v547
      %v568 = vunpack.c.l.b16 %v548
      %v569 = vunpack.c.l.b16 %v549
      %v570 = vunpack.c.l.b16 %v550
      %v571 = vpack.c.b16 %v561, %v561
      %v572 = vpack.c.b16 %v562, %v562
      %v573 = vpack.c.b16 %v563, %v563
      %v574 = vpack.c.b16 %v564, %v564
      %v575 = vpack.c.b16 %v565, %v565
      %v576 = vpack.c.b16 %v566, %v566
      %v577 = vpack.c.b16 %v567, %v567
      %v578 = vpack.c.b16 %v568, %v568
      %v579 = vpack.c.b16 %v569, %v569
      %v580 = vpack.c.b16 %v570, %v570
      %v582 = vshrl.u32 %v571, 16
      %v584 = vrot.slane %v582, 7
      %v585 = vshll.u32 %v571, 16
      %v587 = vor.u32 %v584, %v585
      %v589 = vshrl.u32 %v572, 16
      %v591 = vrot.slane %v589, 7
      %v592 = vshll.u32 %v572, 16
      %v594 = vor.u32 %v591, %v592
      %v596 = vshrl.u32 %v573, 16
      %v598 = vrot.slane %v596, 7
      %v599 = vshll.u32 %v573, 16
      %v601 = vor.u32 %v598, %v599
      %v603 = vshrl.u32 %v574, 16
      %v605 = vrot.slane %v603, 7
      %v606 = vshll.u32 %v574, 16
      %v608 = vor.u32 %v605, %v606
      %v610 = vshrl.u32 %v575, 16
      %v612 = vrot.slane %v610, 7
      %v613 = vshll.u32 %v575, 16
      %v615 = vor.u32 %v612, %v613
      %v617 = vshrl.u32 %v576, 16
      %v619 = vrot.slane %v617, 7
      %v620 = vshll.u32 %v576, 16
      %v622 = vor.u32 %v619, %v620
      %v624 = vshrl.u32 %v577, 16
      %v626 = vrot.slane %v624, 7
      %v627 = vshll.u32 %v577, 16
      %v629 = vor.u32 %v626, %v627
      %v631 = vshrl.u32 %v578, 16
      %v633 = vrot.slane %v631, 7
      %v634 = vshll.u32 %v578, 16
      %v636 = vor.u32 %v633, %v634
      %v638 = vshrl.u32 %v579, 16
      %v640 = vrot.slane %v638, 7
      %v641 = vshll.u32 %v579, 16
      %v643 = vor.u32 %v640, %v641
      %v645 = vshrl.u32 %v580, 16
      %v647 = vrot.slane %v645, 7
      %v648 = vshll.u32 %v580, 16
      %v650 = vor.u32 %v647, %v648
      %vm661 = vcmask 1040384
      %vm662 = vsmask.f32 256
      %vm663 = vmand %vm661, %vm662
      %v664 = vsel %vm663, 0, %v587
      %v665 = vsel %vm663, 0, %v594
      %v666 = vsel %vm663, 0, %v601
      %v667 = vsel %vm663, 0, %v608
      %v668 = vsel %vm663, 0, %v615
      %v669 = vsel %vm663, 0, %v622
      %v670 = vsel %vm663, 0, %v629
      %v671 = vsel %vm663, 0, %v636
      %v672 = vsel %vm663, 0, %v643
      %v673 = vsel %vm663, 0, %v650
      %v674 = vrot.slane %v585, 1
      %v675 = vor.u32 %v582, %v674
      %v676 = vrot.slane %v592, 1
      %v677 = vor.u32 %v589, %v676
      %v678 = vrot.slane %v599, 1
      %v679 = vor.u32 %v596, %v678
      %v680 = vrot.slane %v606, 1
      %v681 = vor.u32 %v603, %v680
      %v682 = vrot.slane %v613, 1
      %v683 = vor.u32 %v610, %v682
      %v684 = vrot.slane %v620, 1
      %v685 = vor.u32 %v617, %v684
      %v686 = vrot.slane %v627, 1
      %v687 = vor.u32 %v624, %v686
      %v688 = vrot.slane %v634, 1
      %v689 = vor.u32 %v631, %v688
      %v690 = vrot.slane %v641, 1
      %v691 = vor.u32 %v638, %v690
      %v692 = vrot.slane %v648, 1
      %v693 = vor.u32 %v645, %v692
      %vm704 = vcmask 1043456
      %vm705 = vsmask.f32 3328
      %vm706 = vmand %vm704, %vm705
      %v707 = vsel %vm706, %v675, 0
      %v708 = vsel %vm706, %v677, 0
      %v709 = vsel %vm706, %v679, 0
      %v710 = vsel %vm706, %v681, 0
      %v711 = vsel %vm706, %v683, 0
      %v712 = vsel %vm706, %v685, 0
      %v713 = vsel %vm706, %v687, 0
      %v714 = vsel %vm706, %v689, 0
      %v715 = vsel %vm706, %v691, 0
      %v716 = vsel %vm706, %v693, 0
      %717 = vrot.lane.b32.xlu0 %v571, 8
      %v718 = vpop.permute.xlu0 %717
      %719 = vrot.lane.b32.xlu0 %v572, 8
      %v720 = vpop.permute.xlu0 %719
      %721 = vrot.lane.b32.xlu0 %v573, 8
      %v722 = vpop.permute.xlu0 %721
      %723 = vrot.lane.b32.xlu0 %v574, 8
      %v724 = vpop.permute.xlu0 %723
      %725 = vrot.lane.b32.xlu0 %v575, 8
      %v726 = vpop.permute.xlu0 %725
      %727 = vrot.lane.b32.xlu0 %v576, 8
      %v728 = vpop.permute.xlu0 %727
      %729 = vrot.lane.b32.xlu0 %v577, 8
      %v730 = vpop.permute.xlu0 %729
      %731 = vrot.lane.b32.xlu0 %v578, 8
      %v732 = vpop.permute.xlu0 %731
      %733 = vrot.lane.b32.xlu0 %v579, 8
      %v734 = vpop.permute.xlu0 %733
      %735 = vrot.lane.b32.xlu0 %v580, 8
      %v736 = vpop.permute.xlu0 %735
      %747 = vrot.lane.b32.xlu0 %v707, 16
      %v748 = vpop.permute.xlu0 %747
      %749 = vrot.lane.b32.xlu0 %v708, 16
      %v750 = vpop.permute.xlu0 %749
      %751 = vrot.lane.b32.xlu0 %v709, 16
      %v752 = vpop.permute.xlu0 %751
      %753 = vrot.lane.b32.xlu0 %v710, 16
      %v754 = vpop.permute.xlu0 %753
      %755 = vrot.lane.b32.xlu0 %v711, 16
      %v756 = vpop.permute.xlu0 %755
      %757 = vrot.lane.b32.xlu0 %v712, 16
      %v758 = vpop.permute.xlu0 %757
      %759 = vrot.lane.b32.xlu0 %v713, 16
      %v760 = vpop.permute.xlu0 %759
      %761 = vrot.lane.b32.xlu0 %v714, 16
      %v762 = vpop.permute.xlu0 %761
      %763 = vrot.lane.b32.xlu0 %v715, 16
      %v764 = vpop.permute.xlu0 %763
      %765 = vrot.lane.b32.xlu0 %v716, 16
      %v766 = vpop.permute.xlu0 %765
      %vm767 = vcmask 64512
      %v770 = vsel %vm767, %v664, %v718
      %v773 = vsel %vm767, %v665, %v720
      %v776 = vsel %vm767, %v666, %v722
      %v779 = vsel %vm767, %v667, %v724
      %v782 = vsel %vm767, %v668, %v726
      %v785 = vsel %vm767, %v669, %v728
      %v788 = vsel %vm767, %v670, %v730
      %v791 = vsel %vm767, %v671, %v732
      %v794 = vsel %vm767, %v672, %v734
      %v797 = vsel %vm767, %v673, %v736
      %vm798 = vcmask 130048
      %v800 = vsel %vm798, %v770, %v748
      %v802 = vsel %vm798, %v773, %v750
      %v804 = vsel %vm798, %v776, %v752
      %v806 = vsel %vm798, %v779, %v754
      %v808 = vsel %vm798, %v782, %v756
      %v810 = vsel %vm798, %v785, %v758
      %v812 = vsel %vm798, %v788, %v760
      %v814 = vsel %vm798, %v791, %v762
      %v816 = vsel %vm798, %v794, %v764
      %v818 = vsel %vm798, %v797, %v766
      %v819 = vld [vmem:[%s5] sm:$0xf]
      %v820 = vld [vmem:[%s5 + $0x4] sm:$0xf]
      %v821 = vld [vmem:[%s5 + $0x8] sm:$0xf]
      %s822 = scalar_lea.vmem %s5, 12
      %v823 = vld [vmem:[%s822] sm:$0xf]
      %v824 = vld [vmem:[%s822 + $0x4] sm:$0xf]
      %v825 = vld [vmem:[%s822 + $0x8] sm:$0xf]
      %v834 = vunpack.c.l.b16 %v802
      %v835 = vunpack.c.l.b16 %v804
      %v836 = vunpack.c.l.b16 %v806
      %v837 = vunpack.c.l.b16 %v808
      %v838 = vunpack.c.l.b16 %v810
      %v839 = vunpack.c.l.b16 %v812
      %v840 = vunpack.c.l.b16 %v814
      %v841 = vunpack.c.l.b16 %v816
      %v842 = vpack.c.b16 %v835, %v834
      %v843 = vpack.c.b16 %v837, %v836
      %v844 = vpack.c.b16 %v839, %v838
      %v845 = vpack.c.b16 %v841, %v840
      %v849 = vunpack.c.l.b16 %v823
      %v850 = vunpack.c.l.b16 %v824
      %v851 = vunpack.c.l.b16 %v825
      %v852 = vpack.c.b16 %v850, %v849
      %v853 = vpack.c.b16 %v851, %v851
      %vm855 = vcmask 195584
      %v857 = vsel %vm855, %v842, 0
      %v860 = vsel %vm855, %v843, 0
      %v863 = vsel %vm855, %v844, 0
      %v866 = vsel %vm855, %v845, 0
      %vm868 = vcmask 1043456
      %v870 = vsel %vm868, %v853, 0
      %872 = vmatpush.bf16.msra.mxu0 0
      %873 = vmatpush.bf16.msra.mxu0 0
      %874 = vmatpush.bf16.msra.mxu0 0
      %875 = vmatpush.bf16.msra.mxu0 0
      %876 = vmatpush.bf16.msra.mxu0 0
      %877 = vmatpush.bf16.msra.mxu0 0
      %878 = vmatpush.bf16.msra.mxu0 %v870
      %879 = vmatpush.bf16.msra.mxu0 %v852
      %880 = vmatmul.bf16.gmra.mxu0 %v857
      %v881 = vpop.f32.mrf.mxu0
      %v882 = vadd.f32 0.0, %v881
      %v883 = vpop.f32.mrf.mxu0
      %v884 = vadd.f32 0.0, %v883
      %885 = vmatmul.bf16.gmra.mxu0 %v860
      %v886 = vpop.f32.mrf.mxu0
      %v887 = vadd.f32 0.0, %v886
      %v888 = vpop.f32.mrf.mxu0
      %v889 = vadd.f32 0.0, %v888
      %890 = vmatmul.bf16.gmra.mxu0 %v863
      %v891 = vpop.f32.mrf.mxu0
      %v892 = vadd.f32 0.0, %v891
      %v893 = vpop.f32.mrf.mxu0
      %v894 = vadd.f32 0.0, %v893
      %895 = vmatmul.bf16.gmra.mxu0 %v866
      %v896 = vpop.f32.mrf.mxu0
      %v897 = vadd.f32 0.0, %v896
      %v898 = vpop.f32.mrf.mxu0
      %v899 = vadd.f32 0.0, %v898
      %900 = vdwg.mxu0
      %v902 = vunpack.c.l.b16 %v800
      %v903 = vpack.c.b16 %v834, %v902
      %v904 = vpack.c.b16 %v836, %v835
      %v905 = vpack.c.b16 %v838, %v837
      %v906 = vpack.c.b16 %v840, %v839
      %v910 = vunpack.c.l.b16 %v819
      %v911 = vunpack.c.l.b16 %v820
      %v912 = vunpack.c.l.b16 %v821
      %v913 = vpack.c.b16 %v911, %v910
      %v914 = vpack.c.b16 %v912, %v912
      %v917 = vsel %vm855, %v903, 0
      %v920 = vsel %vm855, %v904, 0
      %v923 = vsel %vm855, %v905, 0
      %v926 = vsel %vm855, %v906, 0
      %v929 = vsel %vm868, %v914, 0
      %931 = vmatpush.bf16.msra.mxu0 0
      %932 = vmatpush.bf16.msra.mxu0 0
      %933 = vmatpush.bf16.msra.mxu0 0
      %934 = vmatpush.bf16.msra.mxu0 0
      %935 = vmatpush.bf16.msra.mxu0 0
      %936 = vmatpush.bf16.msra.mxu0 0
      %937 = vmatpush.bf16.msra.mxu0 %v929
      %938 = vmatpush.bf16.msra.mxu0 %v913
      %939 = vmatmul.bf16.gmra.mxu0 %v917
      %v940 = vpop.f32.mrf.mxu0
      %v941 = vadd.f32 %v882, %v940
      %v942 = vpop.f32.mrf.mxu0
      %v943 = vadd.f32 %v884, %v942
      %944 = vmatmul.bf16.gmra.mxu0 %v920
      %v945 = vpop.f32.mrf.mxu0
      %v946 = vadd.f32 %v887, %v945
      %v947 = vpop.f32.mrf.mxu0
      %v948 = vadd.f32 %v889, %v947
      %949 = vmatmul.bf16.gmra.mxu0 %v923
      %v950 = vpop.f32.mrf.mxu0
      %v951 = vadd.f32 %v892, %v950
      %v952 = vpop.f32.mrf.mxu0
      %v953 = vadd.f32 %v894, %v952
      %954 = vmatmul.bf16.gmra.mxu0 %v926
      %v955 = vpop.f32.mrf.mxu0
      %v956 = vadd.f32 %v897, %v955
      %v957 = vpop.f32.mrf.mxu0
      %v958 = vadd.f32 %v899, %v957
      %959 = vdwg.mxu0
      %s960 = scalar_lea.vmem %s5, 24
      %v961 = vld [vmem:[%s960] sm:$0xf]
      %v962 = vld [vmem:[%s960 + $0x4] sm:$0xf]
      %v963 = vld [vmem:[%s960 + $0x8] sm:$0xf]
      %v965 = vunpack.c.l.b16 %v818
      %v966 = vpack.c.b16 %v965, %v841
      %v970 = vunpack.c.l.b16 %v961
      %v971 = vunpack.c.l.b16 %v962
      %v972 = vunpack.c.l.b16 %v963
      %v973 = vpack.c.b16 %v971, %v970
      %v974 = vpack.c.b16 %v972, %v972
      %v977 = vsel %vm855, %v966, 0
      %v980 = vsel %vm868, %v974, 0
      %982 = vmatpush.bf16.msra.mxu0 0
      %983 = vmatpush.bf16.msra.mxu0 0
      %984 = vmatpush.bf16.msra.mxu0 0
      %985 = vmatpush.bf16.msra.mxu0 0
      %986 = vmatpush.bf16.msra.mxu0 0
      %987 = vmatpush.bf16.msra.mxu0 0
      %988 = vmatpush.bf16.msra.mxu0 %v980
      %989 = vmatpush.bf16.msra.mxu0 %v973
      %990 = vmatmul.bf16.gmra.mxu0 %v920
      %v991 = vpop.f32.mrf.mxu0
      %v992 = vadd.f32 0.0, %v991
      %v993 = vpop.f32.mrf.mxu0
      %v994 = vadd.f32 0.0, %v993
      %995 = vmatmul.bf16.gmra.mxu0 %v923
      %v996 = vpop.f32.mrf.mxu0
      %v997 = vadd.f32 0.0, %v996
      %v998 = vpop.f32.mrf.mxu0
      %v999 = vadd.f32 0.0, %v998
      %1000 = vmatmul.bf16.gmra.mxu0 %v926
      %v1001 = vpop.f32.mrf.mxu0
      %v1002 = vadd.f32 0.0, %v1001
      %v1003 = vpop.f32.mrf.mxu0
      %v1004 = vadd.f32 0.0, %v1003
      %1005 = vmatmul.bf16.gmra.mxu0 %v977
      %v1006 = vpop.f32.mrf.mxu0
      %v1007 = vadd.f32 0.0, %v1006
      %v1008 = vpop.f32.mrf.mxu0
      %v1009 = vadd.f32 0.0, %v1008
      %1010 = vdwg.mxu0
      %v1011 = vadd.f32 %v941, %v992
      %v1012 = vadd.f32 %v943, %v994
      %v1013 = vadd.f32 %v946, %v997
      %v1014 = vadd.f32 %v948, %v999
      %v1015 = vadd.f32 %v951, %v1002
      %v1016 = vadd.f32 %v953, %v1004
      %v1017 = vadd.f32 %v956, %v1007
      %v1018 = vadd.f32 %v958, %v1009
      %p1019 = scmp.eq.s32.totalorder %s25, 0
      // Predicated region
      $region45: #{bottleneck_pallas_nhwc.5} parent=43 // pred_check
        %p1020 = pneg %p1019
      $region46: #{bottleneck_pallas_nhwc.5} parent=43 // pred_check_branch
        %1022 = sbr.rel (%p1020) target = $region48
      $region47: #{bottleneck_pallas_nhwc.5} parent=43 // pred_region
        %1023 = vst.msk [vmem:[%s467] sm:$0xff] %vm767, 0.0
        %1024 = vst.msk [vmem:[%s471] sm:$0xff] %vm767, 0.0
      $region48: #{bottleneck_pallas_nhwc.5} parent=43 // pred_fallthru
        _
      %v1025 = vld [vmem:[%s467] sm:$0xff]
      %v1026 = vsel %vm767, %v1011, 0.0
      %v1027 = vsel %vm767, %v1012, 0.0
      %v1028 = vadd.f32 %v1026, %v1027
      %v1029 = vsel %vm767, %v1013, 0.0
      %v1030 = vadd.f32 %v1028, %v1029
      %v1031 = vsel %vm767, %v1014, 0.0
      %v1032 = vadd.f32 %v1030, %v1031
      %v1033 = vsel %vm767, %v1015, 0.0
      %v1034 = vadd.f32 %v1032, %v1033
      %v1035 = vsel %vm767, %v1016, 0.0
      %v1036 = vadd.f32 %v1034, %v1035
      %v1037 = vsel %vm767, %v1017, 0.0
      %v1038 = vadd.f32 %v1036, %v1037
      %v1039 = vsel %vm767, %v1018, 0.0
      %v1040 = vadd.f32 %v1038, %v1039
      %v1041 = vrot.slane %v1040, 4
      %v1042 = vadd.f32 %v1040, %v1041
      %v1043 = vrot.slane %v1042, 2
      %v1044 = vadd.f32 %v1042, %v1043
      %v1045 = vrot.slane %v1044, 1
      %v1046 = vadd.f32 %v1044, %v1045
      %v1047 = vadd.f32 %v1025, %v1046
      %1048 = vst.msk [vmem:[%s467] sm:$0xff] %vm767, %v1047
      %v1049 = vld [vmem:[%s471] sm:$0xff]
      %v1050 = vmul.f32 %v1011, %v1011
      %v1051 = vmul.f32 %v1012, %v1012
      %v1052 = vmul.f32 %v1013, %v1013
      %v1053 = vmul.f32 %v1014, %v1014
      %v1054 = vmul.f32 %v1015, %v1015
      %v1055 = vmul.f32 %v1016, %v1016
      %v1056 = vmul.f32 %v1017, %v1017
      %v1057 = vmul.f32 %v1018, %v1018
      %v1058 = vsel %vm767, %v1050, 0.0
      %v1059 = vsel %vm767, %v1051, 0.0
      %v1060 = vadd.f32 %v1058, %v1059
      %v1061 = vsel %vm767, %v1052, 0.0
      %v1062 = vadd.f32 %v1060, %v1061
      %v1063 = vsel %vm767, %v1053, 0.0
      %v1064 = vadd.f32 %v1062, %v1063
      %v1065 = vsel %vm767, %v1054, 0.0
      %v1066 = vadd.f32 %v1064, %v1065
      %v1067 = vsel %vm767, %v1055, 0.0
      %v1068 = vadd.f32 %v1066, %v1067
      %v1069 = vsel %vm767, %v1056, 0.0
      %v1070 = vadd.f32 %v1068, %v1069
      %v1071 = vsel %vm767, %v1057, 0.0
      %v1072 = vadd.f32 %v1070, %v1071
      %v1073 = vrot.slane %v1072, 4
      %v1074 = vadd.f32 %v1072, %v1073
      %v1075 = vrot.slane %v1074, 2
      %v1076 = vadd.f32 %v1074, %v1075
      %v1077 = vrot.slane %v1076, 1
      %v1078 = vadd.f32 %v1076, %v1077
      %v1079 = vadd.f32 %v1049, %v1078
      %1080 = vst.msk [vmem:[%s471] sm:$0xff] %vm767, %v1079
      %v1081 = vpack.c.bf16 %v1011, %v1011
      %v1082 = vpack.c.bf16 %v1012, %v1012
      %v1083 = vpack.c.bf16 %v1013, %v1013
      %v1084 = vpack.c.bf16 %v1014, %v1014
      %v1085 = vpack.c.bf16 %v1015, %v1015
      %v1086 = vpack.c.bf16 %v1016, %v1016
      %v1087 = vpack.c.bf16 %v1017, %v1017
      %v1088 = vpack.c.bf16 %v1018, %v1018
      %vm1089 = vcmask 60416
      %1090 = vst.msk [vmem:[%s461] sm:$0xf] %vm1089, %v1081
      %1091 = vst.msk [vmem:[%s461 + $0x4] sm:$0xf] %vm1089, %v1082
      %1092 = vst.msk [vmem:[%s461 + $0x8] sm:$0xf] %vm1089, %v1083
      %1093 = vst.msk [vmem:[%s461 + $0xc] sm:$0xf] %vm1089, %v1084
      %1094 = vst.msk [vmem:[%s461 + $0x10] sm:$0xf] %vm1089, %v1085
      %1095 = vst.msk [vmem:[%s461 + $0x14] sm:$0xf] %vm1089, %v1086
      %1096 = vst.msk [vmem:[%s461 + $0x18] sm:$0xf] %vm1089, %v1087
      %1097 = vst.msk [vmem:[%s461 + $0x1c] sm:$0xf] %vm1089, %v1088
      %s1098 = sadd.s32 %s24, %s25
      %s1099 = smul.u32 8, %s1098
      %p1100 = scmp.lt.s32.totalorder %s1099, 15
      %s1101 = scalar_select %p1100, %s1099, 15
      %s1102 = smul.addr %s1101, 4
      %s1103 = scalar_lea.vmem %s6, %s1102
      %p1104 = scmp.lt.s32.totalorder %s24, 1
      %s1105 = scalar_select %p1104, %s24, 1
      %s1106 = smul.addr %s1105, 8
      %s1107 = scalar_lea.vmem %s7, %s1106
      %p1108 = scmp.lt.s32.totalorder %s24, 1
      %s1109 = scalar_select %p1108, %s24, 1
      %s1110 = smul.addr %s1109, 8
      %s1111 = scalar_lea.vmem %s8, %s1110
      // Predicated region
      $region49: #{bottleneck_pallas_nhwc.5} parent=43 // pred_check
        %p1112 = pneg %p219
      $region50: #{bottleneck_pallas_nhwc.5} parent=43 // pred_check_branch
        %1114 = sbr.rel (%p1112) target = $region52
      $region51: #{bottleneck_pallas_nhwc.5} parent=43 // pred_region
        %s1115 = sadd.s32 %s24, %s25
        %s1116 = smul.u32 8, %s1115
      $region52: #{bottleneck_pallas_nhwc.5} parent=43 // pred_fallthru
        _
      // Predicated region
      $region53: #{bottleneck_pallas_nhwc.5} parent=43 // pred_check
        %p1117 = pneg %p245
      $region54: #{bottleneck_pallas_nhwc.5} parent=43 // pred_check_branch
        %1119 = sbr.rel (%p1117) target = $region56
      $region55: #{bottleneck_pallas_nhwc.5} parent=43 // pred_region
        _
      $region56: #{bottleneck_pallas_nhwc.5} parent=43 // pred_fallthru
        _
      // Predicated region
      $region57: #{bottleneck_pallas_nhwc.5} parent=43 // pred_check
        %p1120 = pneg %p271
      $region58: #{bottleneck_pallas_nhwc.5} parent=43 // pred_check_branch
        %1122 = sbr.rel (%p1120) target = $region60
      $region59: #{bottleneck_pallas_nhwc.5} parent=43 // pred_region
        _
      $region60: #{bottleneck_pallas_nhwc.5} parent=43 // pred_fallthru
        _
    $region44: #{bottleneck_pallas_nhwc.5} parent=5 // pred_fallthru
      _
    %p1123 = scmp.le.s32.totalorder 2, %s15
    // Predicated region
    $region61: #{bottleneck_pallas_nhwc.5} parent=5 // pred_check
      %p1124 = pneg %p1123
    $region62: #{bottleneck_pallas_nhwc.5} parent=5 // pred_check_branch
      %1126 = sbr.rel (%p1124) target = $region64
    $region63: #{bottleneck_pallas_nhwc.5} parent=5 // pred_region
      %s1127 = ssub.s32 %s15, 2
      // Predicated region
      $region65: #{bottleneck_pallas_nhwc.5} parent=63 // pred_check
        %p1128 = pneg %p225
      $region66: #{bottleneck_pallas_nhwc.5} parent=63 // pred_check_branch
        %1130 = sbr.rel (%p1128) target = $region68
      $region67: #{bottleneck_pallas_nhwc.5} parent=63 // pred_region
        %s1131 = sadd.s32 %s26, %s27
        %s1132 = smul.u32 8, %s1131
        %p1133 = scmp.lt.s32.totalorder %s1132, 15
        %s1134 = scalar_select %p1133, %s1132, 15
        %s1135 = smul.addr %s1134, 4
        %s1136 = scalar_lea.vmem %s6, %s1135
      $region68: #{bottleneck_pallas_nhwc.5} parent=63 // pred_fallthru
        _
      // Predicated region
      $region69: #{bottleneck_pallas_nhwc.5} parent=63 // pred_check
        %p1137 = pneg %p251
      $region70: #{bottleneck_pallas_nhwc.5} parent=63 // pred_check_branch
        %1139 = sbr.rel (%p1137) target = $region72
      $region71: #{bottleneck_pallas_nhwc.5} parent=63 // pred_region
        %p1140 = scmp.lt.s32.totalorder %s26, 1
        %s1141 = scalar_select %p1140, %s26, 1
        %s1142 = smul.addr %s1141, 8
        %s1143 = scalar_lea.vmem %s7, %s1142
      $region72: #{bottleneck_pallas_nhwc.5} parent=63 // pred_fallthru
        _
      // Predicated region
      $region73: #{bottleneck_pallas_nhwc.5} parent=63 // pred_check
        %p1144 = pneg %p277
      $region74: #{bottleneck_pallas_nhwc.5} parent=63 // pred_check_branch
        %1146 = sbr.rel (%p1144) target = $region76
      $region75: #{bottleneck_pallas_nhwc.5} parent=63 // pred_region
        %p1147 = scmp.lt.s32.totalorder %s26, 1
        %s1148 = scalar_select %p1147, %s26, 1
        %s1149 = smul.addr %s1148, 8
        %s1150 = scalar_lea.vmem %s8, %s1149
      $region76: #{bottleneck_pallas_nhwc.5} parent=63 // pred_fallthru
        _
    $region64: #{bottleneck_pallas_nhwc.5} parent=5 // pred_fallthru
      _
  $region6: #{bottleneck_pallas_nhwc.5} parent=0 // loop_footer
    %s19 = sadd.s32 1, %s15
  $region7: #{bottleneck_pallas_nhwc.5} parent=0 // loop_footer_branch
    %14 = sbr.rel target = $region3
  $region8: #{bottleneck_pallas_nhwc.5} parent=0 // loop_exit
    _

</llo_original>
